<compile_context>
chip_gen: v7x
topology: tpu7x:2x2x1
jax: 0.10.0
libtpu: 0.0.40
codegen_flags: <defaults>
</compile_context>

<pallas_src>
import functools

import jax
import jax.numpy as jnp
from jax.experimental import pallas as pl
from jax.experimental.pallas import tpu as pltpu


# ----------------------------------------------------------------------------
# tile picker: largest divisor of T whose (Tt*B)-row block is sublane aligned
# and fits a conservative VMEM budget (keeps v5e/v6e scoped limits and v7x's
# 64 MiB comfortable even with double buffering).
# ----------------------------------------------------------------------------
def _time_tile(T, B, bytes_per_row, max_tile=256, budget=4 << 20):
    divs = [d for d in range(1, T + 1) if T % d == 0]
    legal = [d for d in divs if (d * B) % 8 == 0 or d == T]
    good = [d for d in legal if d <= max_tile and d * B * bytes_per_row <= budget]
    if good:
        return max(good)
    return min(legal)


# ----------------------------------------------------------------------------
# Kernel 1: fused input projection for both directions
#   (Tt*B, E) @ (E, 8H') + b  -> fwd half / bwd half written to two outputs.
# ----------------------------------------------------------------------------
def _proj_fused_kernel(x_ref, w_ref, b_ref, of_ref, ob_ref):
    G = of_ref.shape[-1]
    y = jnp.dot(x_ref[...], w_ref[...],
                preferred_element_type=jnp.float32) + b_ref[...]
    of_ref[...] = y[:, :G].astype(of_ref.dtype)
    ob_ref[...] = y[:, G:].astype(ob_ref.dtype)


def input_projection_fused(x2d, w_fused, b_fused, *, Tt, B):
    TB, E = x2d.shape
    G2 = w_fused.shape[1]
    G = G2 // 2
    rows = Tt * B
    n = TB // rows
    return pl.pallas_call(
        _proj_fused_kernel,
        out_shape=(jax.ShapeDtypeStruct((TB, G), jnp.float32),
                   jax.ShapeDtypeStruct((TB, G), jnp.float32)),
        grid=(n,),
        in_specs=[
            pl.BlockSpec((rows, E), lambda i: (i, 0)),
            pl.BlockSpec((E, G2), lambda i: (0, 0)),
            pl.BlockSpec((1, G2), lambda i: (0, 0)),
        ],
        out_specs=(pl.BlockSpec((rows, G), lambda i: (i, 0)),
                   pl.BlockSpec((rows, G), lambda i: (i, 0))),
        compiler_params=pltpu.CompilerParams(
            dimension_semantics=("parallel",)),
        cost_estimate=pl.CostEstimate(
            flops=2 * TB * E * G2,
            transcendentals=0,
            bytes_accessed=4 * (TB * E + E * G2 + G2 + 2 * TB * G)),
    )(x2d, w_fused, b_fused)


# ----------------------------------------------------------------------------
# Kernel 2: LSTM recurrence for one direction, chunked over time.
#   grid=(T//Tc,) is sequential ("arbitrary"); each grid step runs a fully
#   unrolled static loop over Tc timesteps.  Gate layout is (i,f,o,g) so one
#   sigmoid covers a contiguous (B, 3H') slab.  Validity mask is computed
#   in-kernel from seq_len (B,1); states are gated with jnp.where so that
#   - outputs past seq_len are exactly zero (pad_packed_sequence behaviour)
#   - the reverse direction effectively starts its recurrence at t=seq_len-1.
# ----------------------------------------------------------------------------
def _lstm_dir_kernel(xp_ref, whh_ref, sl_ref, out_ref, h_ref, c_ref,
                     *, reverse, Tc, B):
    @pl.when(pl.program_id(0) == 0)
    def _():
        h_ref[...] = jnp.zeros(h_ref.shape, h_ref.dtype)
        c_ref[...] = jnp.zeros(c_ref.shape, c_ref.dtype)

    Hh = h_ref.shape[-1]
    whh = whh_ref[...]                      # hoisted: reused every step
    seq_len = sl_ref[...]                   # (B, 1) int32
    i = pl.program_id(0)
    n = pl.num_programs(0)
    base = ((n - 1 - i) if reverse else i) * Tc   # first global t of this chunk

    # Fully unrolled static loop (chunk boundary bounds live ranges).
    for s in range(Tc):
        local = (Tc - 1 - s) if reverse else s     # static row offset in chunk
        t = base + local                           # traced global time index
        x_g = xp_ref[local * B:(local + 1) * B, :]             # (B, 4H')
        gates = x_g + jnp.dot(h_ref[...], whh,
                              preferred_element_type=jnp.float32)
        sg = jax.nn.sigmoid(gates[:, :3 * Hh])     # one EUP slab: i | f | o
        ig = sg[:, 0 * Hh:1 * Hh]
        fg = sg[:, 1 * Hh:2 * Hh]
        og = sg[:, 2 * Hh:3 * Hh]
        gg = jnp.tanh(gates[:, 3 * Hh:4 * Hh])

        c_new = fg * c_ref[...] + ig * gg
        h_new = og * jnp.tanh(c_new)

        valid = t < seq_len                        # (B, 1) bool
        c_ref[...] = jnp.where(valid, c_new, c_ref[...])
        h_ref[...] = jnp.where(valid, h_new, h_ref[...])
        out_ref[local * B:(local + 1) * B, :] = jnp.where(
            valid, h_new, jnp.zeros(h_new.shape, h_new.dtype)
        ).astype(out_ref.dtype)


def lstm_direction(xproj2d, w_hh_t, seqlen_col, T, B, *, reverse, Tc):
    TB, G = xproj2d.shape
    assert TB == T * B
    Hh = G // 4
    n_chunks = T // Tc
    rows = Tc * B
    if reverse:
        tmap = lambda i: (n_chunks - 1 - i, 0)
    else:
        tmap = lambda i: (i, 0)
    kernel = functools.partial(_lstm_dir_kernel, reverse=reverse, Tc=Tc, B=B)
    return pl.pallas_call(
        kernel,
        out_shape=jax.ShapeDtypeStruct((TB, Hh), jnp.float32),
        grid=(n_chunks,),
        in_specs=[
            pl.BlockSpec((rows, G), tmap),
            pl.BlockSpec((Hh, G), lambda i: (0, 0)),
            pl.BlockSpec((B, 1), lambda i: (0, 0)),
        ],
        out_specs=pl.BlockSpec((rows, Hh), tmap),
        scratch_shapes=[
            pltpu.VMEM((B, Hh), jnp.float32),   # h state (persists across grid)
            pltpu.VMEM((B, Hh), jnp.float32),   # c state
        ],
        compiler_params=pltpu.CompilerParams(
            dimension_semantics=("arbitrary",)),
        cost_estimate=pl.CostEstimate(
            flops=2 * T * B * Hh * G + 10 * T * B * Hh,
            transcendentals=5 * T * B * Hh,
            bytes_accessed=4 * (T * B * G + Hh * G + B + T * B * Hh)),
    )(xproj2d, w_hh_t, seqlen_col)


# ----------------------------------------------------------------------------
# Kernel 3: fc (Linear) over every timestep fused with the max over time.
#   Tiled over T; running max accumulator in VMEM scratch; finalized on the
#   last grid step.  The (T, B, C) logits tensor is never materialized.
# ----------------------------------------------------------------------------
def _fc_max_kernel(h_ref, w_ref, b_ref, o_ref, acc_ref, *, Tt, B):
    @pl.when(pl.program_id(0) == 0)
    def _():
        acc_ref[...] = jnp.full(acc_ref.shape, -jnp.inf, acc_ref.dtype)

    logits = jnp.dot(h_ref[...], w_ref[...],
                     preferred_element_type=jnp.float32) + b_ref[...]
    acc = acc_ref[...]
    for t in range(Tt):                       # static, fully unrolled reduce
        acc = jnp.maximum(acc, logits[t * B:(t + 1) * B, :])
    acc_ref[...] = acc

    @pl.when(pl.program_id(0) == pl.num_programs(0) - 1)
    def _():
        o_ref[...] = acc_ref[...].astype(o_ref.dtype)


def fc_max(h2d, w_t, b, *, Tt, B):
    TB, H = h2d.shape
    C = w_t.shape[1]
    rows = Tt * B
    n = TB // rows
    kernel = functools.partial(_fc_max_kernel, Tt=Tt, B=B)
    # TODO(synk): for production sizes pad C up to 128 so the (B, C) output
    # store is a full unmasked vreg (here C=num_classes is kept exact).
    return pl.pallas_call(
        kernel,
        out_shape=jax.ShapeDtypeStruct((B, C), jnp.float32),
        grid=(n,),
        in_specs=[
            pl.BlockSpec((rows, H), lambda i: (i, 0)),
            pl.BlockSpec((H, C), lambda i: (0, 0)),
            pl.BlockSpec((1, C), lambda i: (0, 0)),
        ],
        out_specs=pl.BlockSpec((B, C), lambda i: (0, 0)),
        scratch_shapes=[pltpu.VMEM((B, C), jnp.float32)],
        compiler_params=pltpu.CompilerParams(
            dimension_semantics=("arbitrary",)),
        cost_estimate=pl.CostEstimate(
            flops=2 * TB * H * C,
            transcendentals=0,
            bytes_accessed=4 * (TB * H + H * C + C + B * C)),
    )(h2d, w_t, b.reshape(1, C))


# ----------------------------------------------------------------------------
# Forward wrapper (glue: embedding gather, layout, weight fusion/reorder)
# ----------------------------------------------------------------------------
def _reorder_gates(a):
    """Permute packed gate columns (i, f, g, o) -> (i, f, o, g)."""
    blocks = jnp.split(a, 4, axis=-1)
    return jnp.concatenate([blocks[0], blocks[1], blocks[3], blocks[2]], axis=-1)


def bilstm_maxpool_cls(params, chars, seq_len):
    B, T = chars.shape
    emb = params["embed"][chars].astype(jnp.float32)     # (B, T, E) gather (glue)
    x = jnp.transpose(emb, (1, 0, 2))                    # (T, B, E) time-major
    E = x.shape[-1]
    x2d = x.reshape(T * B, E)                            # collapse T into M

    pf, pb = params["lstm"]["fwd"], params["lstm"]["bwd"]
    Hh = pf["w_hh_T"].shape[0]
    G = 4 * Hh

    # Fuse fwd+bwd input projections; reorder gate columns for the sigmoid slab.
    w_ih_fused = jnp.concatenate(
        [_reorder_gates(pf["w_ih_T"]), _reorder_gates(pb["w_ih_T"])], axis=1)
    b_fused = jnp.concatenate(
        [_reorder_gates((pf["b_ih"] + pf["b_hh"])[None, :]),
         _reorder_gates((pb["b_ih"] + pb["b_hh"])[None, :])], axis=1)

    Tt_proj = _time_tile(T, B, bytes_per_row=4 * max(E, 2 * G), max_tile=256)
    xproj_f, xproj_b = input_projection_fused(
        x2d, w_ih_fused, b_fused, Tt=Tt_proj, B=B)       # each (T*B, 4H')

    seqlen_col = seq_len.astype(jnp.int32).reshape(B, 1)
    Tc = _time_tile(T, B, bytes_per_row=4 * G, max_tile=16)
    h_f = lstm_direction(xproj_f, _reorder_gates(pf["w_hh_T"]), seqlen_col,
                         T, B, reverse=False, Tc=Tc)
    h_b = lstm_direction(xproj_b, _reorder_gates(pb["w_hh_T"]), seqlen_col,
                         T, B, reverse=True, Tc=Tc)
    # TODO(synk): on v7x the two independent directions could run concurrently
    # on the two TensorCores (core_map / core_parallel leading axis).
    h2d = jnp.concatenate([h_f, h_b], axis=-1)           # (T*B, hidden_size)

    # self.dropout_layer: identity in eval mode (no RNG applied)
    Tt_fc = _time_tile(T, B, bytes_per_row=4 * 2 * Hh, max_tile=256)
    pred = fc_max(h2d, params["fc_w_T"], params["fc_b"], Tt=Tt_fc, B=B)
    return {"pred": pred}


# ----------------------------------------------------------------------------
# Deterministic parameter initialization (mirrors the module's shapes)
# ----------------------------------------------------------------------------
def init_params(key, vocab, embed_dim, hidden_size, num_classes):
    Hh = hidden_size // 2            # per-direction hidden size
    G = 4 * Hh
    ks = jax.random.split(key, 13)
    k_lstm = 1.0 / jnp.sqrt(Hh)
    k_fc = 1.0 / jnp.sqrt(hidden_size)

    def u(k, shape, bound):
        return jax.random.uniform(k, shape, jnp.float32, -bound, bound)

    def lstm_dir(k0, k1, k2, k3):
        return {
            "w_ih_T": u(k0, (embed_dim, G), k_lstm),     # (E, 4H') == W_ih^T
            "w_hh_T": u(k1, (Hh, G), k_lstm),            # (H', 4H') == W_hh^T
            "b_ih": u(k2, (G,), k_lstm),
            "b_hh": u(k3, (G,), k_lstm),
        }

    params = {
        "embed": jax.random.normal(ks[0], (vocab, embed_dim), jnp.float32),
        "lstm": {
            "fwd": lstm_dir(ks[1], ks[2], ks[3], ks[4]),
            "bwd": lstm_dir(ks[5], ks[6], ks[7], ks[8]),
        },
        "fc_w_T": u(ks[9], (hidden_size, num_classes), k_fc),
        "fc_b": u(ks[10], (num_classes,), k_fc),
        # w_omega_id / u_omega_id exist in __init__ but are unused in forward()
        "w_omega_id": u(ks[11], (hidden_size, hidden_size), 0.1),
        "u_omega_id": u(ks[12], (hidden_size, 1), 0.1),
    }
    return params


if __name__ == "__main__":
    VOCAB, EMBED, HIDDEN, NUM_CLASSES = 50, 32, 32, 8
    B, T = 2, 8

    key = jax.random.PRNGKey(0)
    kp, kc = jax.random.split(key)
    params = init_params(kp, VOCAB, EMBED, HIDDEN, NUM_CLASSES)

    chars = jax.random.randint(kc, (B, T), 0, VOCAB, dtype=jnp.int32)
    seq_len = jnp.array([T, 5], dtype=jnp.int32)

    out = jax.jit(bilstm_maxpool_cls)(params, chars, seq_len)
    pred = jax.block_until_ready(out["pred"])
    assert pred.shape == (B, NUM_CLASSES)
    print("KERNEL_OK")
</pallas_src>

<mosaic_0001>
module attributes {stable_mosaic.version = 11 : i64} {
  func.func @_proj_fused_kernel(%arg0: i32, %arg1: memref<16x32xf32, #tpu.memory_space<vmem>>, %arg2: memref<32x128xf32, #tpu.memory_space<vmem>>, %arg3: memref<1x128xf32, #tpu.memory_space<vmem>>, %arg4: memref<16x64xf32, #tpu.memory_space<vmem>>, %arg5: memref<16x64xf32, #tpu.memory_space<vmem>>) attributes {dimension_semantics = [#tpu.dimension_semantics<parallel>], iteration_bounds = array<i64: 1>, scalar_prefetch = 0 : i64, scratch_operands = 0 : i64, tpu.core_type = #tpu.core_type<tc>, window_params = [{transform_indices = @transform_0, window_bounds = array<i64: 16, 32>}, {pipeline_mode = #tpu.pipeline_mode<synchronous>, transform_indices = @transform_1, window_bounds = array<i64: 32, 128>}, {pipeline_mode = #tpu.pipeline_mode<synchronous>, transform_indices = @transform_2, window_bounds = array<i64: 1, 128>}, {transform_indices = @transform_3, window_bounds = array<i64: 16, 64>}, {transform_indices = @transform_4, window_bounds = array<i64: 16, 64>}]} {
    %c0 = arith.constant 0 : index
    %c0_0 = arith.constant 0 : index
    %0 = vector.load %arg1[%c0, %c0_0] : memref<16x32xf32, #tpu.memory_space<vmem>>, vector<16x32xf32>
    %c0_1 = arith.constant 0 : index
    %c0_2 = arith.constant 0 : index
    %1 = vector.load %arg2[%c0_1, %c0_2] : memref<32x128xf32, #tpu.memory_space<vmem>>, vector<32x128xf32>
    %cst = arith.constant dense<0.000000e+00> : vector<16x128xf32>
    %2 = tpu.matmul %0, %1, %cst {dimension_numbers = #tpu.dot_dimension_numbers<[1], [0], [0], [1], [0, 0, 1, 1], [], []>} : vector<16x32xf32>, vector<32x128xf32>, vector<16x128xf32> -> vector<16x128xf32>
    %c0_3 = arith.constant 0 : index
    %c0_4 = arith.constant 0 : index
    %3 = vector.load %arg3[%c0_3, %c0_4] : memref<1x128xf32, #tpu.memory_space<vmem>>, vector<1x128xf32>
    %4 = vector.broadcast %3 : vector<1x128xf32> to vector<16x128xf32>
    %5 = arith.addf %2, %4 : vector<16x128xf32>
    %6 = vector.extract_strided_slice %5 {offsets = [0, 0], sizes = [16, 64], strides = [1, 1]} : vector<16x128xf32> to vector<16x64xf32>
    %c0_5 = arith.constant 0 : index
    %c0_6 = arith.constant 0 : index
    %7 = vector.load %arg4[%c0_5, %c0_6] : memref<16x64xf32, #tpu.memory_space<vmem>>, vector<16x64xf32>
    tpu.vector_store %arg4[%c0_5, %c0_6], %6 {strides = array<i32>} : memref<16x64xf32, #tpu.memory_space<vmem>>, vector<16x64xf32>,
    %8 = vector.extract_strided_slice %5 {offsets = [0, 64], sizes = [16, 64], strides = [1, 1]} : vector<16x128xf32> to vector<16x64xf32>
    %c0_7 = arith.constant 0 : index
    %c0_8 = arith.constant 0 : index
    %9 = vector.load %arg5[%c0_7, %c0_8] : memref<16x64xf32, #tpu.memory_space<vmem>>, vector<16x64xf32>
    tpu.vector_store %arg5[%c0_7, %c0_8], %8 {strides = array<i32>} : memref<16x64xf32, #tpu.memory_space<vmem>>, vector<16x64xf32>,
    return
  }
  func.func @transform_0(%arg0: i32) -> (i32, i32) {
    %c0_i32 = arith.constant 0 : i32
    %c0_i32_0 = arith.constant 0 : i32
    return %arg0, %c0_i32 : i32, i32
  }
  func.func @transform_1(%arg0: i32) -> (i32, i32) {
    %c0_i32 = arith.constant 0 : i32
    %c0_i32_0 = arith.constant 0 : i32
    %c0_i32_1 = arith.constant 0 : i32
    return %c0_i32, %c0_i32_0 : i32, i32
  }
  func.func @transform_2(%arg0: i32) -> (i32, i32) {
    %c0_i32 = arith.constant 0 : i32
    %c0_i32_0 = arith.constant 0 : i32
    %c0_i32_1 = arith.constant 0 : i32
    return %c0_i32, %c0_i32_0 : i32, i32
  }
  func.func @transform_3(%arg0: i32) -> (i32, i32) {
    %c0_i32 = arith.constant 0 : i32
    %c0_i32_0 = arith.constant 0 : i32
    return %arg0, %c0_i32 : i32, i32
  }
  func.func @transform_4(%arg0: i32) -> (i32, i32) {
    %c0_i32 = arith.constant 0 : i32
    %c0_i32_0 = arith.constant 0 : i32
    return %arg0, %c0_i32 : i32, i32
  }
}

module attributes {stable_mosaic.version = 11 : i64} {
  func.func @_lstm_dir_kernel(%arg0: i32, %arg1: memref<16x64xf32, #tpu.memory_space<vmem>>, %arg2: memref<16x64xf32, #tpu.memory_space<vmem>>, %arg3: memref<2x1xi32, #tpu.memory_space<vmem>>, %arg4: memref<16x16xf32, #tpu.memory_space<vmem>>, %arg5: memref<2x16xf32, #tpu.memory_space<vmem>>, %arg6: memref<2x16xf32, #tpu.memory_space<vmem>>) attributes {dimension_semantics = [#tpu.dimension_semantics<arbitrary>], iteration_bounds = array<i64: 1>, scalar_prefetch = 0 : i64, scratch_operands = 2 : i64, tpu.core_type = #tpu.core_type<tc>, window_params = [{transform_indices = @transform_0, window_bounds = array<i64: 16, 64>}, {pipeline_mode = #tpu.pipeline_mode<synchronous>, transform_indices = @transform_1, window_bounds = array<i64: 16, 64>}, {pipeline_mode = #tpu.pipeline_mode<synchronous>, transform_indices = @transform_2, window_bounds = array<i64: 2, 1>}, {transform_indices = @transform_3, window_bounds = array<i64: 16, 16>}]} {
    %c0_i32 = arith.constant 0 : i32
    %0 = arith.cmpi eq, %arg0, %c0_i32 : i32
    %1 = arith.extui %0 : i1 to i32
    %c0_i32_0 = arith.constant 0 : i32
    %2 = arith.cmpi ne, %1, %c0_i32_0 : i32
    scf.if %2 {
      %cst_149 = arith.constant 0.000000e+00 : f32
      %318 = vector.broadcast %cst_149 : f32 to vector<2x16xf32>
      %c0_150 = arith.constant 0 : index
      %c0_151 = arith.constant 0 : index
      %319 = vector.load %arg5[%c0_150, %c0_151] : memref<2x16xf32, #tpu.memory_space<vmem>>, vector<2x16xf32>
      tpu.vector_store %arg5[%c0_150, %c0_151], %318 {strides = array<i32>} : memref<2x16xf32, #tpu.memory_space<vmem>>, vector<2x16xf32>,
      %cst_152 = arith.constant 0.000000e+00 : f32
      %320 = vector.broadcast %cst_152 : f32 to vector<2x16xf32>
      %c0_153 = arith.constant 0 : index
      %c0_154 = arith.constant 0 : index
      %321 = vector.load %arg6[%c0_153, %c0_154] : memref<2x16xf32, #tpu.memory_space<vmem>>, vector<2x16xf32>
      tpu.vector_store %arg6[%c0_153, %c0_154], %320 {strides = array<i32>} : memref<2x16xf32, #tpu.memory_space<vmem>>, vector<2x16xf32>,
    } else {
    }
    %c0 = arith.constant 0 : index
    %c0_1 = arith.constant 0 : index
    %3 = vector.load %arg2[%c0, %c0_1] : memref<16x64xf32, #tpu.memory_space<vmem>>, vector<16x64xf32>
    %c0_2 = arith.constant 0 : index
    %c0_3 = arith.constant 0 : index
    %4 = vector.load %arg3[%c0_2, %c0_3] : memref<2x1xi32, #tpu.memory_space<vmem>>, vector<2x1xi32>
    %c8_i32 = arith.constant 8 : i32
    %5 = arith.muli %arg0, %c8_i32 : i32
    %c0_i32_4 = arith.constant 0 : i32
    %6 = arith.addi %5, %c0_i32_4 : i32
    %c0_5 = arith.constant 0 : index
    %c0_6 = arith.constant 0 : index
    %7 = vector.load %arg1[%c0_5, %c0_6] : memref<16x64xf32, #tpu.memory_space<vmem>>, vector<2x64xf32>
    %c0_7 = arith.constant 0 : index
    %c0_8 = arith.constant 0 : index
    %8 = vector.load %arg5[%c0_7, %c0_8] : memref<2x16xf32, #tpu.memory_space<vmem>>, vector<2x16xf32>
    %cst = arith.constant dense<0.000000e+00> : vector<2x64xf32>
    %9 = tpu.matmul %8, %3, %cst {dimension_numbers = #tpu.dot_dimension_numbers<[1], [0], [0], [1], [0, 0, 1, 1], [], []>} : vector<2x16xf32>, vector<16x64xf32>, vector<2x64xf32> -> vector<2x64xf32>
    %10 = arith.addf %7, %9 : vector<2x64xf32>
    %11 = vector.extract_strided_slice %10 {offsets = [0, 0], sizes = [2, 48], strides = [1, 1]} : vector<2x64xf32> to vector<2x48xf32>
    %12 = arith.negf %11 : vector<2x48xf32>
    %13 = math.exp %12 : vector<2x48xf32>
    %cst_9 = arith.constant 1.000000e+00 : f32
    %14 = vector.broadcast %cst_9 : f32 to vector<2x48xf32>
    %15 = arith.addf %14, %13 : vector<2x48xf32>
    %16 = arith.divf %14, %15 : vector<2x48xf32>
    %17 = vector.extract_strided_slice %16 {offsets = [0, 0], sizes = [2, 16], strides = [1, 1]} : vector<2x48xf32> to vector<2x16xf32>
    %18 = vector.extract_strided_slice %16 {offsets = [0, 16], sizes = [2, 16], strides = [1, 1]} : vector<2x48xf32> to vector<2x16xf32>
    %19 = vector.extract_strided_slice %16 {offsets = [0, 32], sizes = [2, 16], strides = [1, 1]} : vector<2x48xf32> to vector<2x16xf32>
    %20 = vector.extract_strided_slice %10 {offsets = [0, 48], sizes = [2, 16], strides = [1, 1]} : vector<2x64xf32> to vector<2x16xf32>
    %21 = math.tanh %20 : vector<2x16xf32>
    %c0_10 = arith.constant 0 : index
    %c0_11 = arith.constant 0 : index
    %22 = vector.load %arg6[%c0_10, %c0_11] : memref<2x16xf32, #tpu.memory_space<vmem>>, vector<2x16xf32>
    %23 = arith.mulf %18, %22 : vector<2x16xf32>
    %24 = arith.mulf %17, %21 : vector<2x16xf32>
    %25 = arith.addf %23, %24 : vector<2x16xf32>
    %26 = math.tanh %25 : vector<2x16xf32>
    %27 = arith.mulf %19, %26 : vector<2x16xf32>
    %28 = vector.broadcast %6 : i32 to vector<2x1xi32>
    %29 = arith.cmpi slt, %28, %4 : vector<2x1xi32>
    %c0_12 = arith.constant 0 : index
    %c0_13 = arith.constant 0 : index
    %30 = vector.load %arg6[%c0_12, %c0_13] : memref<2x16xf32, #tpu.memory_space<vmem>>, vector<2x16xf32>
    %31 = vector.shape_cast %29 : vector<2x1xi1> to vector<2x1xi1>
    %32 = vector.broadcast %31 : vector<2x1xi1> to vector<2x16xi1>
    %33 = arith.select %32, %25, %30 : vector<2x16xi1>, vector<2x16xf32>
    %c0_14 = arith.constant 0 : index
    %c0_15 = arith.constant 0 : index
    %34 = vector.load %arg6[%c0_14, %c0_15] : memref<2x16xf32, #tpu.memory_space<vmem>>, vector<2x16xf32>
    tpu.vector_store %arg6[%c0_14, %c0_15], %33 {strides = array<i32>} : memref<2x16xf32, #tpu.memory_space<vmem>>, vector<2x16xf32>,
    %c0_16 = arith.constant 0 : index
    %c0_17 = arith.constant 0 : index
    %35 = vector.load %arg5[%c0_16, %c0_17] : memref<2x16xf32, #tpu.memory_space<vmem>>, vector<2x16xf32>
    %36 = vector.shape_cast %29 : vector<2x1xi1> to vector<2x1xi1>
    %37 = vector.broadcast %36 : vector<2x1xi1> to vector<2x16xi1>
    %38 = arith.select %37, %27, %35 : vector<2x16xi1>, vector<2x16xf32>
    %c0_18 = arith.constant 0 : index
    %c0_19 = arith.constant 0 : index
    %39 = vector.load %arg5[%c0_18, %c0_19] : memref<2x16xf32, #tpu.memory_space<vmem>>, vector<2x16xf32>
    tpu.vector_store %arg5[%c0_18, %c0_19], %38 {strides = array<i32>} : memref<2x16xf32, #tpu.memory_space<vmem>>, vector<2x16xf32>,
    %cst_20 = arith.constant 0.000000e+00 : f32
    %40 = vector.broadcast %cst_20 : f32 to vector<2x16xf32>
    %41 = vector.shape_cast %29 : vector<2x1xi1> to vector<2x1xi1>
    %42 = vector.broadcast %41 : vector<2x1xi1> to vector<2x16xi1>
    %43 = arith.select %42, %27, %40 : vector<2x16xi1>, vector<2x16xf32>
    %c0_21 = arith.constant 0 : index
    %c0_22 = arith.constant 0 : index
    %44 = vector.load %arg4[%c0_21, %c0_22] : memref<16x16xf32, #tpu.memory_space<vmem>>, vector<2x16xf32>
    tpu.vector_store %arg4[%c0_21, %c0_22], %43 {strides = array<i32>} : memref<16x16xf32, #tpu.memory_space<vmem>>, vector<2x16xf32>,
    %c1_i32 = arith.constant 1 : i32
    %45 = arith.addi %5, %c1_i32 : i32
    %c2 = arith.constant 2 : index
    %c0_23 = arith.constant 0 : index
    %46 = vector.load %arg1[%c2, %c0_23] : memref<16x64xf32, #tpu.memory_space<vmem>>, vector<2x64xf32>
    %c0_24 = arith.constant 0 : index
    %c0_25 = arith.constant 0 : index
    %47 = vector.load %arg5[%c0_24, %c0_25] : memref<2x16xf32, #tpu.memory_space<vmem>>, vector<2x16xf32>
    %cst_26 = arith.constant dense<0.000000e+00> : vector<2x64xf32>
    %48 = tpu.matmul %47, %3, %cst_26 {dimension_numbers = #tpu.dot_dimension_numbers<[1], [0], [0], [1], [0, 0, 1, 1], [], []>} : vector<2x16xf32>, vector<16x64xf32>, vector<2x64xf32> -> vector<2x64xf32>
    %49 = arith.addf %46, %48 : vector<2x64xf32>
    %50 = vector.extract_strided_slice %49 {offsets = [0, 0], sizes = [2, 48], strides = [1, 1]} : vector<2x64xf32> to vector<2x48xf32>
    %51 = arith.negf %50 : vector<2x48xf32>
    %52 = math.exp %51 : vector<2x48xf32>
    %cst_27 = arith.constant 1.000000e+00 : f32
    %53 = vector.broadcast %cst_27 : f32 to vector<2x48xf32>
    %54 = arith.addf %53, %52 : vector<2x48xf32>
    %55 = arith.divf %53, %54 : vector<2x48xf32>
    %56 = vector.extract_strided_slice %55 {offsets = [0, 0], sizes = [2, 16], strides = [1, 1]} : vector<2x48xf32> to vector<2x16xf32>
    %57 = vector.extract_strided_slice %55 {offsets = [0, 16], sizes = [2, 16], strides = [1, 1]} : vector<2x48xf32> to vector<2x16xf32>
    %58 = vector.extract_strided_slice %55 {offsets = [0, 32], sizes = [2, 16], strides = [1, 1]} : vector<2x48xf32> to vector<2x16xf32>
    %59 = vector.extract_strided_slice %49 {offsets = [0, 48], sizes = [2, 16], strides = [1, 1]} : vector<2x64xf32> to vector<2x16xf32>
    %60 = math.tanh %59 : vector<2x16xf32>
    %c0_28 = arith.constant 0 : index
    %c0_29 = arith.constant 0 : index
    %61 = vector.load %arg6[%c0_28, %c0_29] : memref<2x16xf32, #tpu.memory_space<vmem>>, vector<2x16xf32>
    %62 = arith.mulf %57, %61 : vector<2x16xf32>
    %63 = arith.mulf %56, %60 : vector<2x16xf32>
    %64 = arith.addf %62, %63 : vector<2x16xf32>
    %65 = math.tanh %64 : vector<2x16xf32>
    %66 = arith.mulf %58, %65 : vector<2x16xf32>
    %67 = vector.broadcast %45 : i32 to vector<2x1xi32>
    %68 = arith.cmpi slt, %67, %4 : vector<2x1xi32>
    %c0_30 = arith.constant 0 : index
    %c0_31 = arith.constant 0 : index
    %69 = vector.load %arg6[%c0_30, %c0_31] : memref<2x16xf32, #tpu.memory_space<vmem>>, vector<2x16xf32>
    %70 = vector.shape_cast %68 : vector<2x1xi1> to vector<2x1xi1>
    %71 = vector.broadcast %70 : vector<2x1xi1> to vector<2x16xi1>
    %72 = arith.select %71, %64, %69 : vector<2x16xi1>, vector<2x16xf32>
    %c0_32 = arith.constant 0 : index
    %c0_33 = arith.constant 0 : index
    %73 = vector.load %arg6[%c0_32, %c0_33] : memref<2x16xf32, #tpu.memory_space<vmem>>, vector<2x16xf32>
    tpu.vector_store %arg6[%c0_32, %c0_33], %72 {strides = array<i32>} : memref<2x16xf32, #tpu.memory_space<vmem>>, vector<2x16xf32>,
    %c0_34 = arith.constant 0 : index
    %c0_35 = arith.constant 0 : index
    %74 = vector.load %arg5[%c0_34, %c0_35] : memref<2x16xf32, #tpu.memory_space<vmem>>, vector<2x16xf32>
    %75 = vector.shape_cast %68 : vector<2x1xi1> to vector<2x1xi1>
    %76 = vector.broadcast %75 : vector<2x1xi1> to vector<2x16xi1>
    %77 = arith.select %76, %66, %74 : vector<2x16xi1>, vector<2x16xf32>
    %c0_36 = arith.constant 0 : index
    %c0_37 = arith.constant 0 : index
    %78 = vector.load %arg5[%c0_36, %c0_37] : memref<2x16xf32, #tpu.memory_space<vmem>>, vector<2x16xf32>
    tpu.vector_store %arg5[%c0_36, %c0_37], %77 {strides = array<i32>} : memref<2x16xf32, #tpu.memory_space<vmem>>, vector<2x16xf32>,
    %cst_38 = arith.constant 0.000000e+00 : f32
    %79 = vector.broadcast %cst_38 : f32 to vector<2x16xf32>
    %80 = vector.shape_cast %68 : vector<2x1xi1> to vector<2x1xi1>
    %81 = vector.broadcast %80 : vector<2x1xi1> to vector<2x16xi1>
    %82 = arith.select %81, %66, %79 : vector<2x16xi1>, vector<2x16xf32>
    %c2_39 = arith.constant 2 : index
    %c0_40 = arith.constant 0 : index
    %83 = vector.load %arg4[%c2_39, %c0_40] : memref<16x16xf32, #tpu.memory_space<vmem>>, vector<2x16xf32>
    tpu.vector_store %arg4[%c2_39, %c0_40], %82 {strides = array<i32>} : memref<16x16xf32, #tpu.memory_space<vmem>>, vector<2x16xf32>,
    %c2_i32 = arith.constant 2 : i32
    %84 = arith.addi %5, %c2_i32 : i32
    %c4 = arith.constant 4 : index
    %c0_41 = arith.constant 0 : index
    %85 = vector.load %arg1[%c4, %c0_41] : memref<16x64xf32, #tpu.memory_space<vmem>>, vector<2x64xf32>
    %c0_42 = arith.constant 0 : index
    %c0_43 = arith.constant 0 : index
    %86 = vector.load %arg5[%c0_42, %c0_43] : memref<2x16xf32, #tpu.memory_space<vmem>>, vector<2x16xf32>
    %cst_44 = arith.constant dense<0.000000e+00> : vector<2x64xf32>
    %87 = tpu.matmul %86, %3, %cst_44 {dimension_numbers = #tpu.dot_dimension_numbers<[1], [0], [0], [1], [0, 0, 1, 1], [], []>} : vector<2x16xf32>, vector<16x64xf32>, vector<2x64xf32> -> vector<2x64xf32>
    %88 = arith.addf %85, %87 : vector<2x64xf32>
    %89 = vector.extract_strided_slice %88 {offsets = [0, 0], sizes = [2, 48], strides = [1, 1]} : vector<2x64xf32> to vector<2x48xf32>
    %90 = arith.negf %89 : vector<2x48xf32>
    %91 = math.exp %90 : vector<2x48xf32>
    %cst_45 = arith.constant 1.000000e+00 : f32
    %92 = vector.broadcast %cst_45 : f32 to vector<2x48xf32>
    %93 = arith.addf %92, %91 : vector<2x48xf32>
    %94 = arith.divf %92, %93 : vector<2x48xf32>
    %95 = vector.extract_strided_slice %94 {offsets = [0, 0], sizes = [2, 16], strides = [1, 1]} : vector<2x48xf32> to vector<2x16xf32>
    %96 = vector.extract_strided_slice %94 {offsets = [0, 16], sizes = [2, 16], strides = [1, 1]} : vector<2x48xf32> to vector<2x16xf32>
    %97 = vector.extract_strided_slice %94 {offsets = [0, 32], sizes = [2, 16], strides = [1, 1]} : vector<2x48xf32> to vector<2x16xf32>
    %98 = vector.extract_strided_slice %88 {offsets = [0, 48], sizes = [2, 16], strides = [1, 1]} : vector<2x64xf32> to vector<2x16xf32>
    %99 = math.tanh %98 : vector<2x16xf32>
    %c0_46 = arith.constant 0 : index
    %c0_47 = arith.constant 0 : index
    %100 = vector.load %arg6[%c0_46, %c0_47] : memref<2x16xf32, #tpu.memory_space<vmem>>, vector<2x16xf32>
    %101 = arith.mulf %96, %100 : vector<2x16xf32>
    %102 = arith.mulf %95, %99 : vector<2x16xf32>
    %103 = arith.addf %101, %102 : vector<2x16xf32>
    %104 = math.tanh %103 : vector<2x16xf32>
    %105 = arith.mulf %97, %104 : vector<2x16xf32>
    %106 = vector.broadcast %84 : i32 to vector<2x1xi32>
    %107 = arith.cmpi slt, %106, %4 : vector<2x1xi32>
    %c0_48 = arith.constant 0 : index
    %c0_49 = arith.constant 0 : index
    %108 = vector.load %arg6[%c0_48, %c0_49] : memref<2x16xf32, #tpu.memory_space<vmem>>, vector<2x16xf32>
    %109 = vector.shape_cast %107 : vector<2x1xi1> to vector<2x1xi1>
    %110 = vector.broadcast %109 : vector<2x1xi1> to vector<2x16xi1>
    %111 = arith.select %110, %103, %108 : vector<2x16xi1>, vector<2x16xf32>
    %c0_50 = arith.constant 0 : index
    %c0_51 = arith.constant 0 : index
    %112 = vector.load %arg6[%c0_50, %c0_51] : memref<2x16xf32, #tpu.memory_space<vmem>>, vector<2x16xf32>
    tpu.vector_store %arg6[%c0_50, %c0_51], %111 {strides = array<i32>} : memref<2x16xf32, #tpu.memory_space<vmem>>, vector<2x16xf32>,
    %c0_52 = arith.constant 0 : index
    %c0_53 = arith.constant 0 : index
    %113 = vector.load %arg5[%c0_52, %c0_53] : memref<2x16xf32, #tpu.memory_space<vmem>>, vector<2x16xf32>
    %114 = vector.shape_cast %107 : vector<2x1xi1> to vector<2x1xi1>
    %115 = vector.broadcast %114 : vector<2x1xi1> to vector<2x16xi1>
    %116 = arith.select %115, %105, %113 : vector<2x16xi1>, vector<2x16xf32>
    %c0_54 = arith.constant 0 : index
    %c0_55 = arith.constant 0 : index
    %117 = vector.load %arg5[%c0_54, %c0_55] : memref<2x16xf32, #tpu.memory_space<vmem>>, vector<2x16xf32>
    tpu.vector_store %arg5[%c0_54, %c0_55], %116 {strides = array<i32>} : memref<2x16xf32, #tpu.memory_space<vmem>>, vector<2x16xf32>,
    %cst_56 = arith.constant 0.000000e+00 : f32
    %118 = vector.broadcast %cst_56 : f32 to vector<2x16xf32>
    %119 = vector.shape_cast %107 : vector<2x1xi1> to vector<2x1xi1>
    %120 = vector.broadcast %119 : vector<2x1xi1> to vector<2x16xi1>
    %121 = arith.select %120, %105, %118 : vector<2x16xi1>, vector<2x16xf32>
    %c4_57 = arith.constant 4 : index
    %c0_58 = arith.constant 0 : index
    %122 = vector.load %arg4[%c4_57, %c0_58] : memref<16x16xf32, #tpu.memory_space<vmem>>, vector<2x16xf32>
    tpu.vector_store %arg4[%c4_57, %c0_58], %121 {strides = array<i32>} : memref<16x16xf32, #tpu.memory_space<vmem>>, vector<2x16xf32>,
    %c3_i32 = arith.constant 3 : i32
    %123 = arith.addi %5, %c3_i32 : i32
    %c6 = arith.constant 6 : index
    %c0_59 = arith.constant 0 : index
    %124 = vector.load %arg1[%c6, %c0_59] : memref<16x64xf32, #tpu.memory_space<vmem>>, vector<2x64xf32>
    %c0_60 = arith.constant 0 : index
    %c0_61 = arith.constant 0 : index
    %125 = vector.load %arg5[%c0_60, %c0_61] : memref<2x16xf32, #tpu.memory_space<vmem>>, vector<2x16xf32>
    %cst_62 = arith.constant dense<0.000000e+00> : vector<2x64xf32>
    %126 = tpu.matmul %125, %3, %cst_62 {dimension_numbers = #tpu.dot_dimension_numbers<[1], [0], [0], [1], [0, 0, 1, 1], [], []>} : vector<2x16xf32>, vector<16x64xf32>, vector<2x64xf32> -> vector<2x64xf32>
    %127 = arith.addf %124, %126 : vector<2x64xf32>
    %128 = vector.extract_strided_slice %127 {offsets = [0, 0], sizes = [2, 48], strides = [1, 1]} : vector<2x64xf32> to vector<2x48xf32>
    %129 = arith.negf %128 : vector<2x48xf32>
    %130 = math.exp %129 : vector<2x48xf32>
    %cst_63 = arith.constant 1.000000e+00 : f32
    %131 = vector.broadcast %cst_63 : f32 to vector<2x48xf32>
    %132 = arith.addf %131, %130 : vector<2x48xf32>
    %133 = arith.divf %131, %132 : vector<2x48xf32>
    %134 = vector.extract_strided_slice %133 {offsets = [0, 0], sizes = [2, 16], strides = [1, 1]} : vector<2x48xf32> to vector<2x16xf32>
    %135 = vector.extract_strided_slice %133 {offsets = [0, 16], sizes = [2, 16], strides = [1, 1]} : vector<2x48xf32> to vector<2x16xf32>
    %136 = vector.extract_strided_slice %133 {offsets = [0, 32], sizes = [2, 16], strides = [1, 1]} : vector<2x48xf32> to vector<2x16xf32>
    %137 = vector.extract_strided_slice %127 {offsets = [0, 48], sizes = [2, 16], strides = [1, 1]} : vector<2x64xf32> to vector<2x16xf32>
    %138 = math.tanh %137 : vector<2x16xf32>
    %c0_64 = arith.constant 0 : index
    %c0_65 = arith.constant 0 : index
    %139 = vector.load %arg6[%c0_64, %c0_65] : memref<2x16xf32, #tpu.memory_space<vmem>>, vector<2x16xf32>
    %140 = arith.mulf %135, %139 : vector<2x16xf32>
    %141 = arith.mulf %134, %138 : vector<2x16xf32>
    %142 = arith.addf %140, %141 : vector<2x16xf32>
    %143 = math.tanh %142 : vector<2x16xf32>
    %144 = arith.mulf %136, %143 : vector<2x16xf32>
    %145 = vector.broadcast %123 : i32 to vector<2x1xi32>
    %146 = arith.cmpi slt, %145, %4 : vector<2x1xi32>
    %c0_66 = arith.constant 0 : index
    %c0_67 = arith.constant 0 : index
    %147 = vector.load %arg6[%c0_66, %c0_67] : memref<2x16xf32, #tpu.memory_space<vmem>>, vector<2x16xf32>
    %148 = vector.shape_cast %146 : vector<2x1xi1> to vector<2x1xi1>
    %149 = vector.broadcast %148 : vector<2x1xi1> to vector<2x16xi1>
    %150 = arith.select %149, %142, %147 : vector<2x16xi1>, vector<2x16xf32>
    %c0_68 = arith.constant 0 : index
    %c0_69 = arith.constant 0 : index
    %151 = vector.load %arg6[%c0_68, %c0_69] : memref<2x16xf32, #tpu.memory_space<vmem>>, vector<2x16xf32>
    tpu.vector_store %arg6[%c0_68, %c0_69], %150 {strides = array<i32>} : memref<2x16xf32, #tpu.memory_space<vmem>>, vector<2x16xf32>,
    %c0_70 = arith.constant 0 : index
    %c0_71 = arith.constant 0 : index
    %152 = vector.load %arg5[%c0_70, %c0_71] : memref<2x16xf32, #tpu.memory_space<vmem>>, vector<2x16xf32>
    %153 = vector.shape_cast %146 : vector<2x1xi1> to vector<2x1xi1>
    %154 = vector.broadcast %153 : vector<2x1xi1> to vector<2x16xi1>
    %155 = arith.select %154, %144, %152 : vector<2x16xi1>, vector<2x16xf32>
    %c0_72 = arith.constant 0 : index
    %c0_73 = arith.constant 0 : index
    %156 = vector.load %arg5[%c0_72, %c0_73] : memref<2x16xf32, #tpu.memory_space<vmem>>, vector<2x16xf32>
    tpu.vector_store %arg5[%c0_72, %c0_73], %155 {strides = array<i32>} : memref<2x16xf32, #tpu.memory_space<vmem>>, vector<2x16xf32>,
    %cst_74 = arith.constant 0.000000e+00 : f32
    %157 = vector.broadcast %cst_74 : f32 to vector<2x16xf32>
    %158 = vector.shape_cast %146 : vector<2x1xi1> to vector<2x1xi1>
    %159 = vector.broadcast %158 : vector<2x1xi1> to vector<2x16xi1>
    %160 = arith.select %159, %144, %157 : vector<2x16xi1>, vector<2x16xf32>
    %c6_75 = arith.constant 6 : index
    %c0_76 = arith.constant 0 : index
    %161 = vector.load %arg4[%c6_75, %c0_76] : memref<16x16xf32, #tpu.memory_space<vmem>>, vector<2x16xf32>
    tpu.vector_store %arg4[%c6_75, %c0_76], %160 {strides = array<i32>} : memref<16x16xf32, #tpu.memory_space<vmem>>, vector<2x16xf32>,
    %c4_i32 = arith.constant 4 : i32
    %162 = arith.addi %5, %c4_i32 : i32
    %c8 = arith.constant 8 : index
    %c0_77 = arith.constant 0 : index
    %163 = vector.load %arg1[%c8, %c0_77] : memref<16x64xf32, #tpu.memory_space<vmem>>, vector<2x64xf32>
    %c0_78 = arith.constant 0 : index
    %c0_79 = arith.constant 0 : index
    %164 = vector.load %arg5[%c0_78, %c0_79] : memref<2x16xf32, #tpu.memory_space<vmem>>, vector<2x16xf32>
    %cst_80 = arith.constant dense<0.000000e+00> : vector<2x64xf32>
    %165 = tpu.matmul %164, %3, %cst_80 {dimension_numbers = #tpu.dot_dimension_numbers<[1], [0], [0], [1], [0, 0, 1, 1], [], []>} : vector<2x16xf32>, vector<16x64xf32>, vector<2x64xf32> -> vector<2x64xf32>
    %166 = arith.addf %163, %165 : vector<2x64xf32>
    %167 = vector.extract_strided_slice %166 {offsets = [0, 0], sizes = [2, 48], strides = [1, 1]} : vector<2x64xf32> to vector<2x48xf32>
    %168 = arith.negf %167 : vector<2x48xf32>
    %169 = math.exp %168 : vector<2x48xf32>
    %cst_81 = arith.constant 1.000000e+00 : f32
    %170 = vector.broadcast %cst_81 : f32 to vector<2x48xf32>
    %171 = arith.addf %170, %169 : vector<2x48xf32>
    %172 = arith.divf %170, %171 : vector<2x48xf32>
    %173 = vector.extract_strided_slice %172 {offsets = [0, 0], sizes = [2, 16], strides = [1, 1]} : vector<2x48xf32> to vector<2x16xf32>
    %174 = vector.extract_strided_slice %172 {offsets = [0, 16], sizes = [2, 16], strides = [1, 1]} : vector<2x48xf32> to vector<2x16xf32>
    %175 = vector.extract_strided_slice %172 {offsets = [0, 32], sizes = [2, 16], strides = [1, 1]} : vector<2x48xf32> to vector<2x16xf32>
    %176 = vector.extract_strided_slice %166 {offsets = [0, 48], sizes = [2, 16], strides = [1, 1]} : vector<2x64xf32> to vector<2x16xf32>
    %177 = math.tanh %176 : vector<2x16xf32>
    %c0_82 = arith.constant 0 : index
    %c0_83 = arith.constant 0 : index
    %178 = vector.load %arg6[%c0_82, %c0_83] : memref<2x16xf32, #tpu.memory_space<vmem>>, vector<2x16xf32>
    %179 = arith.mulf %174, %178 : vector<2x16xf32>
    %180 = arith.mulf %173, %177 : vector<2x16xf32>
    %181 = arith.addf %179, %180 : vector<2x16xf32>
    %182 = math.tanh %181 : vector<2x16xf32>
    %183 = arith.mulf %175, %182 : vector<2x16xf32>
    %184 = vector.broadcast %162 : i32 to vector<2x1xi32>
    %185 = arith.cmpi slt, %184, %4 : vector<2x1xi32>
    %c0_84 = arith.constant 0 : index
    %c0_85 = arith.constant 0 : index
    %186 = vector.load %arg6[%c0_84, %c0_85] : memref<2x16xf32, #tpu.memory_space<vmem>>, vector<2x16xf32>
    %187 = vector.shape_cast %185 : vector<2x1xi1> to vector<2x1xi1>
    %188 = vector.broadcast %187 : vector<2x1xi1> to vector<2x16xi1>
    %189 = arith.select %188, %181, %186 : vector<2x16xi1>, vector<2x16xf32>
    %c0_86 = arith.constant 0 : index
    %c0_87 = arith.constant 0 : index
    %190 = vector.load %arg6[%c0_86, %c0_87] : memref<2x16xf32, #tpu.memory_space<vmem>>, vector<2x16xf32>
    tpu.vector_store %arg6[%c0_86, %c0_87], %189 {strides = array<i32>} : memref<2x16xf32, #tpu.memory_space<vmem>>, vector<2x16xf32>,
    %c0_88 = arith.constant 0 : index
    %c0_89 = arith.constant 0 : index
    %191 = vector.load %arg5[%c0_88, %c0_89] : memref<2x16xf32, #tpu.memory_space<vmem>>, vector<2x16xf32>
    %192 = vector.shape_cast %185 : vector<2x1xi1> to vector<2x1xi1>
    %193 = vector.broadcast %192 : vector<2x1xi1> to vector<2x16xi1>
    %194 = arith.select %193, %183, %191 : vector<2x16xi1>, vector<2x16xf32>
    %c0_90 = arith.constant 0 : index
    %c0_91 = arith.constant 0 : index
    %195 = vector.load %arg5[%c0_90, %c0_91] : memref<2x16xf32, #tpu.memory_space<vmem>>, vector<2x16xf32>
    tpu.vector_store %arg5[%c0_90, %c0_91], %194 {strides = array<i32>} : memref<2x16xf32, #tpu.memory_space<vmem>>, vector<2x16xf32>,
    %cst_92 = arith.constant 0.000000e+00 : f32
    %196 = vector.broadcast %cst_92 : f32 to vector<2x16xf32>
    %197 = vector.shape_cast %185 : vector<2x1xi1> to vector<2x1xi1>
    %198 = vector.broadcast %197 : vector<2x1xi1> to vector<2x16xi1>
    %199 = arith.select %198, %183, %196 : vector<2x16xi1>, vector<2x16xf32>
    %c8_93 = arith.constant 8 : index
    %c0_94 = arith.constant 0 : index
    %200 = vector.load %arg4[%c8_93, %c0_94] : memref<16x16xf32, #tpu.memory_space<vmem>>, vector<2x16xf32>
    tpu.vector_store %arg4[%c8_93, %c0_94], %199 {strides = array<i32>} : memref<16x16xf32, #tpu.memory_space<vmem>>, vector<2x16xf32>,
    %c5_i32 = arith.constant 5 : i32
    %201 = arith.addi %5, %c5_i32 : i32
    %c10 = arith.constant 10 : index
    %c0_95 = arith.constant 0 : index
    %202 = vector.load %arg1[%c10, %c0_95] : memref<16x64xf32, #tpu.memory_space<vmem>>, vector<2x64xf32>
    %c0_96 = arith.constant 0 : index
    %c0_97 = arith.constant 0 : index
    %203 = vector.load %arg5[%c0_96, %c0_97] : memref<2x16xf32, #tpu.memory_space<vmem>>, vector<2x16xf32>
    %cst_98 = arith.constant dense<0.000000e+00> : vector<2x64xf32>
    %204 = tpu.matmul %203, %3, %cst_98 {dimension_numbers = #tpu.dot_dimension_numbers<[1], [0], [0], [1], [0, 0, 1, 1], [], []>} : vector<2x16xf32>, vector<16x64xf32>, vector<2x64xf32> -> vector<2x64xf32>
    %205 = arith.addf %202, %204 : vector<2x64xf32>
    %206 = vector.extract_strided_slice %205 {offsets = [0, 0], sizes = [2, 48], strides = [1, 1]} : vector<2x64xf32> to vector<2x48xf32>
    %207 = arith.negf %206 : vector<2x48xf32>
    %208 = math.exp %207 : vector<2x48xf32>
    %cst_99 = arith.constant 1.000000e+00 : f32
    %209 = vector.broadcast %cst_99 : f32 to vector<2x48xf32>
    %210 = arith.addf %209, %208 : vector<2x48xf32>
    %211 = arith.divf %209, %210 : vector<2x48xf32>
    %212 = vector.extract_strided_slice %211 {offsets = [0, 0], sizes = [2, 16], strides = [1, 1]} : vector<2x48xf32> to vector<2x16xf32>
    %213 = vector.extract_strided_slice %211 {offsets = [0, 16], sizes = [2, 16], strides = [1, 1]} : vector<2x48xf32> to vector<2x16xf32>
    %214 = vector.extract_strided_slice %211 {offsets = [0, 32], sizes = [2, 16], strides = [1, 1]} : vector<2x48xf32> to vector<2x16xf32>
    %215 = vector.extract_strided_slice %205 {offsets = [0, 48], sizes = [2, 16], strides = [1, 1]} : vector<2x64xf32> to vector<2x16xf32>
    %216 = math.tanh %215 : vector<2x16xf32>
    %c0_100 = arith.constant 0 : index
    %c0_101 = arith.constant 0 : index
    %217 = vector.load %arg6[%c0_100, %c0_101] : memref<2x16xf32, #tpu.memory_space<vmem>>, vector<2x16xf32>
    %218 = arith.mulf %213, %217 : vector<2x16xf32>
    %219 = arith.mulf %212, %216 : vector<2x16xf32>
    %220 = arith.addf %218, %219 : vector<2x16xf32>
    %221 = math.tanh %220 : vector<2x16xf32>
    %222 = arith.mulf %214, %221 : vector<2x16xf32>
    %223 = vector.broadcast %201 : i32 to vector<2x1xi32>
    %224 = arith.cmpi slt, %223, %4 : vector<2x1xi32>
    %c0_102 = arith.constant 0 : index
    %c0_103 = arith.constant 0 : index
    %225 = vector.load %arg6[%c0_102, %c0_103] : memref<2x16xf32, #tpu.memory_space<vmem>>, vector<2x16xf32>
    %226 = vector.shape_cast %224 : vector<2x1xi1> to vector<2x1xi1>
    %227 = vector.broadcast %226 : vector<2x1xi1> to vector<2x16xi1>
    %228 = arith.select %227, %220, %225 : vector<2x16xi1>, vector<2x16xf32>
    %c0_104 = arith.constant 0 : index
    %c0_105 = arith.constant 0 : index
    %229 = vector.load %arg6[%c0_104, %c0_105] : memref<2x16xf32, #tpu.memory_space<vmem>>, vector<2x16xf32>
    tpu.vector_store %arg6[%c0_104, %c0_105], %228 {strides = array<i32>} : memref<2x16xf32, #tpu.memory_space<vmem>>, vector<2x16xf32>,
    %c0_106 = arith.constant 0 : index
    %c0_107 = arith.constant 0 : index
    %230 = vector.load %arg5[%c0_106, %c0_107] : memref<2x16xf32, #tpu.memory_space<vmem>>, vector<2x16xf32>
    %231 = vector.shape_cast %224 : vector<2x1xi1> to vector<2x1xi1>
    %232 = vector.broadcast %231 : vector<2x1xi1> to vector<2x16xi1>
    %233 = arith.select %232, %222, %230 : vector<2x16xi1>, vector<2x16xf32>
    %c0_108 = arith.constant 0 : index
    %c0_109 = arith.constant 0 : index
    %234 = vector.load %arg5[%c0_108, %c0_109] : memref<2x16xf32, #tpu.memory_space<vmem>>, vector<2x16xf32>
    tpu.vector_store %arg5[%c0_108, %c0_109], %233 {strides = array<i32>} : memref<2x16xf32, #tpu.memory_space<vmem>>, vector<2x16xf32>,
    %cst_110 = arith.constant 0.000000e+00 : f32
    %235 = vector.broadcast %cst_110 : f32 to vector<2x16xf32>
    %236 = vector.shape_cast %224 : vector<2x1xi1> to vector<2x1xi1>
    %237 = vector.broadcast %236 : vector<2x1xi1> to vector<2x16xi1>
    %238 = arith.select %237, %222, %235 : vector<2x16xi1>, vector<2x16xf32>
    %c10_111 = arith.constant 10 : index
    %c0_112 = arith.constant 0 : index
    %239 = vector.load %arg4[%c10_111, %c0_112] : memref<16x16xf32, #tpu.memory_space<vmem>>, vector<2x16xf32>
    tpu.vector_store %arg4[%c10_111, %c0_112], %238 {strides = array<i32>} : memref<16x16xf32, #tpu.memory_space<vmem>>, vector<2x16xf32>,
    %c6_i32 = arith.constant 6 : i32
    %240 = arith.addi %5, %c6_i32 : i32
    %c12 = arith.constant 12 : index
    %c0_113 = arith.constant 0 : index
    %241 = vector.load %arg1[%c12, %c0_113] : memref<16x64xf32, #tpu.memory_space<vmem>>, vector<2x64xf32>
    %c0_114 = arith.constant 0 : index
    %c0_115 = arith.constant 0 : index
    %242 = vector.load %arg5[%c0_114, %c0_115] : memref<2x16xf32, #tpu.memory_space<vmem>>, vector<2x16xf32>
    %cst_116 = arith.constant dense<0.000000e+00> : vector<2x64xf32>
    %243 = tpu.matmul %242, %3, %cst_116 {dimension_numbers = #tpu.dot_dimension_numbers<[1], [0], [0], [1], [0, 0, 1, 1], [], []>} : vector<2x16xf32>, vector<16x64xf32>, vector<2x64xf32> -> vector<2x64xf32>
    %244 = arith.addf %241, %243 : vector<2x64xf32>
    %245 = vector.extract_strided_slice %244 {offsets = [0, 0], sizes = [2, 48], strides = [1, 1]} : vector<2x64xf32> to vector<2x48xf32>
    %246 = arith.negf %245 : vector<2x48xf32>
    %247 = math.exp %246 : vector<2x48xf32>
    %cst_117 = arith.constant 1.000000e+00 : f32
    %248 = vector.broadcast %cst_117 : f32 to vector<2x48xf32>
    %249 = arith.addf %248, %247 : vector<2x48xf32>
    %250 = arith.divf %248, %249 : vector<2x48xf32>
    %251 = vector.extract_strided_slice %250 {offsets = [0, 0], sizes = [2, 16], strides = [1, 1]} : vector<2x48xf32> to vector<2x16xf32>
    %252 = vector.extract_strided_slice %250 {offsets = [0, 16], sizes = [2, 16], strides = [1, 1]} : vector<2x48xf32> to vector<2x16xf32>
    %253 = vector.extract_strided_slice %250 {offsets = [0, 32], sizes = [2, 16], strides = [1, 1]} : vector<2x48xf32> to vector<2x16xf32>
    %254 = vector.extract_strided_slice %244 {offsets = [0, 48], sizes = [2, 16], strides = [1, 1]} : vector<2x64xf32> to vector<2x16xf32>
    %255 = math.tanh %254 : vector<2x16xf32>
    %c0_118 = arith.constant 0 : index
    %c0_119 = arith.constant 0 : index
    %256 = vector.load %arg6[%c0_118, %c0_119] : memref<2x16xf32, #tpu.memory_space<vmem>>, vector<2x16xf32>
    %257 = arith.mulf %252, %256 : vector<2x16xf32>
    %258 = arith.mulf %251, %255 : vector<2x16xf32>
    %259 = arith.addf %257, %258 : vector<2x16xf32>
    %260 = math.tanh %259 : vector<2x16xf32>
    %261 = arith.mulf %253, %260 : vector<2x16xf32>
    %262 = vector.broadcast %240 : i32 to vector<2x1xi32>
    %263 = arith.cmpi slt, %262, %4 : vector<2x1xi32>
    %c0_120 = arith.constant 0 : index
    %c0_121 = arith.constant 0 : index
    %264 = vector.load %arg6[%c0_120, %c0_121] : memref<2x16xf32, #tpu.memory_space<vmem>>, vector<2x16xf32>
    %265 = vector.shape_cast %263 : vector<2x1xi1> to vector<2x1xi1>
    %266 = vector.broadcast %265 : vector<2x1xi1> to vector<2x16xi1>
    %267 = arith.select %266, %259, %264 : vector<2x16xi1>, vector<2x16xf32>
    %c0_122 = arith.constant 0 : index
    %c0_123 = arith.constant 0 : index
    %268 = vector.load %arg6[%c0_122, %c0_123] : memref<2x16xf32, #tpu.memory_space<vmem>>, vector<2x16xf32>
    tpu.vector_store %arg6[%c0_122, %c0_123], %267 {strides = array<i32>} : memref<2x16xf32, #tpu.memory_space<vmem>>, vector<2x16xf32>,
    %c0_124 = arith.constant 0 : index
    %c0_125 = arith.constant 0 : index
    %269 = vector.load %arg5[%c0_124, %c0_125] : memref<2x16xf32, #tpu.memory_space<vmem>>, vector<2x16xf32>
    %270 = vector.shape_cast %263 : vector<2x1xi1> to vector<2x1xi1>
    %271 = vector.broadcast %270 : vector<2x1xi1> to vector<2x16xi1>
    %272 = arith.select %271, %261, %269 : vector<2x16xi1>, vector<2x16xf32>
    %c0_126 = arith.constant 0 : index
    %c0_127 = arith.constant 0 : index
    %273 = vector.load %arg5[%c0_126, %c0_127] : memref<2x16xf32, #tpu.memory_space<vmem>>, vector<2x16xf32>
    tpu.vector_store %arg5[%c0_126, %c0_127], %272 {strides = array<i32>} : memref<2x16xf32, #tpu.memory_space<vmem>>, vector<2x16xf32>,
    %cst_128 = arith.constant 0.000000e+00 : f32
    %274 = vector.broadcast %cst_128 : f32 to vector<2x16xf32>
    %275 = vector.shape_cast %263 : vector<2x1xi1> to vector<2x1xi1>
    %276 = vector.broadcast %275 : vector<2x1xi1> to vector<2x16xi1>
    %277 = arith.select %276, %261, %274 : vector<2x16xi1>, vector<2x16xf32>
    %c12_129 = arith.constant 12 : index
    %c0_130 = arith.constant 0 : index
    %278 = vector.load %arg4[%c12_129, %c0_130] : memref<16x16xf32, #tpu.memory_space<vmem>>, vector<2x16xf32>
    tpu.vector_store %arg4[%c12_129, %c0_130], %277 {strides = array<i32>} : memref<16x16xf32, #tpu.memory_space<vmem>>, vector<2x16xf32>,
    %c7_i32 = arith.constant 7 : i32
    %279 = arith.addi %5, %c7_i32 : i32
    %c14 = arith.constant 14 : index
    %c0_131 = arith.constant 0 : index
    %280 = vector.load %arg1[%c14, %c0_131] : memref<16x64xf32, #tpu.memory_space<vmem>>, vector<2x64xf32>
    %c0_132 = arith.constant 0 : index
    %c0_133 = arith.constant 0 : index
    %281 = vector.load %arg5[%c0_132, %c0_133] : memref<2x16xf32, #tpu.memory_space<vmem>>, vector<2x16xf32>
    %cst_134 = arith.constant dense<0.000000e+00> : vector<2x64xf32>
    %282 = tpu.matmul %281, %3, %cst_134 {dimension_numbers = #tpu.dot_dimension_numbers<[1], [0], [0], [1], [0, 0, 1, 1], [], []>} : vector<2x16xf32>, vector<16x64xf32>, vector<2x64xf32> -> vector<2x64xf32>
    %283 = arith.addf %280, %282 : vector<2x64xf32>
    %284 = vector.extract_strided_slice %283 {offsets = [0, 0], sizes = [2, 48], strides = [1, 1]} : vector<2x64xf32> to vector<2x48xf32>
    %285 = arith.negf %284 : vector<2x48xf32>
    %286 = math.exp %285 : vector<2x48xf32>
    %cst_135 = arith.constant 1.000000e+00 : f32
    %287 = vector.broadcast %cst_135 : f32 to vector<2x48xf32>
    %288 = arith.addf %287, %286 : vector<2x48xf32>
    %289 = arith.divf %287, %288 : vector<2x48xf32>
    %290 = vector.extract_strided_slice %289 {offsets = [0, 0], sizes = [2, 16], strides = [1, 1]} : vector<2x48xf32> to vector<2x16xf32>
    %291 = vector.extract_strided_slice %289 {offsets = [0, 16], sizes = [2, 16], strides = [1, 1]} : vector<2x48xf32> to vector<2x16xf32>
    %292 = vector.extract_strided_slice %289 {offsets = [0, 32], sizes = [2, 16], strides = [1, 1]} : vector<2x48xf32> to vector<2x16xf32>
    %293 = vector.extract_strided_slice %283 {offsets = [0, 48], sizes = [2, 16], strides = [1, 1]} : vector<2x64xf32> to vector<2x16xf32>
    %294 = math.tanh %293 : vector<2x16xf32>
    %c0_136 = arith.constant 0 : index
    %c0_137 = arith.constant 0 : index
    %295 = vector.load %arg6[%c0_136, %c0_137] : memref<2x16xf32, #tpu.memory_space<vmem>>, vector<2x16xf32>
    %296 = arith.mulf %291, %295 : vector<2x16xf32>
    %297 = arith.mulf %290, %294 : vector<2x16xf32>
    %298 = arith.addf %296, %297 : vector<2x16xf32>
    %299 = math.tanh %298 : vector<2x16xf32>
    %300 = arith.mulf %292, %299 : vector<2x16xf32>
    %301 = vector.broadcast %279 : i32 to vector<2x1xi32>
    %302 = arith.cmpi slt, %301, %4 : vector<2x1xi32>
    %c0_138 = arith.constant 0 : index
    %c0_139 = arith.constant 0 : index
    %303 = vector.load %arg6[%c0_138, %c0_139] : memref<2x16xf32, #tpu.memory_space<vmem>>, vector<2x16xf32>
    %304 = vector.shape_cast %302 : vector<2x1xi1> to vector<2x1xi1>
    %305 = vector.broadcast %304 : vector<2x1xi1> to vector<2x16xi1>
    %306 = arith.select %305, %298, %303 : vector<2x16xi1>, vector<2x16xf32>
    %c0_140 = arith.constant 0 : index
    %c0_141 = arith.constant 0 : index
    %307 = vector.load %arg6[%c0_140, %c0_141] : memref<2x16xf32, #tpu.memory_space<vmem>>, vector<2x16xf32>
    tpu.vector_store %arg6[%c0_140, %c0_141], %306 {strides = array<i32>} : memref<2x16xf32, #tpu.memory_space<vmem>>, vector<2x16xf32>,
    %c0_142 = arith.constant 0 : index
    %c0_143 = arith.constant 0 : index
    %308 = vector.load %arg5[%c0_142, %c0_143] : memref<2x16xf32, #tpu.memory_space<vmem>>, vector<2x16xf32>
    %309 = vector.shape_cast %302 : vector<2x1xi1> to vector<2x1xi1>
    %310 = vector.broadcast %309 : vector<2x1xi1> to vector<2x16xi1>
    %311 = arith.select %310, %300, %308 : vector<2x16xi1>, vector<2x16xf32>
    %c0_144 = arith.constant 0 : index
    %c0_145 = arith.constant 0 : index
    %312 = vector.load %arg5[%c0_144, %c0_145] : memref<2x16xf32, #tpu.memory_space<vmem>>, vector<2x16xf32>
    tpu.vector_store %arg5[%c0_144, %c0_145], %311 {strides = array<i32>} : memref<2x16xf32, #tpu.memory_space<vmem>>, vector<2x16xf32>,
    %cst_146 = arith.constant 0.000000e+00 : f32
    %313 = vector.broadcast %cst_146 : f32 to vector<2x16xf32>
    %314 = vector.shape_cast %302 : vector<2x1xi1> to vector<2x1xi1>
    %315 = vector.broadcast %314 : vector<2x1xi1> to vector<2x16xi1>
    %316 = arith.select %315, %300, %313 : vector<2x16xi1>, vector<2x16xf32>
    %c14_147 = arith.constant 14 : index
    %c0_148 = arith.constant 0 : index
    %317 = vector.load %arg4[%c14_147, %c0_148] : memref<16x16xf32, #tpu.memory_space<vmem>>, vector<2x16xf32>
    tpu.vector_store %arg4[%c14_147, %c0_148], %316 {strides = array<i32>} : memref<16x16xf32, #tpu.memory_space<vmem>>, vector<2x16xf32>,
    return
  }
  func.func @transform_0(%arg0: i32) -> (i32, i32) {
    %c0_i32 = arith.constant 0 : i32
    %c0_i32_0 = arith.constant 0 : i32
    return %arg0, %c0_i32 : i32, i32
  }
  func.func @transform_1(%arg0: i32) -> (i32, i32) {
    %c0_i32 = arith.constant 0 : i32
    %c0_i32_0 = arith.constant 0 : i32
    %c0_i32_1 = arith.constant 0 : i32
    return %c0_i32, %c0_i32_0 : i32, i32
  }
  func.func @transform_2(%arg0: i32) -> (i32, i32) {
    %c0_i32 = arith.constant 0 : i32
    %c0_i32_0 = arith.constant 0 : i32
    %c0_i32_1 = arith.constant 0 : i32
    return %c0_i32, %c0_i32_0 : i32, i32
  }
  func.func @transform_3(%arg0: i32) -> (i32, i32) {
    %c0_i32 = arith.constant 0 : i32
    %c0_i32_0 = arith.constant 0 : i32
    return %arg0, %c0_i32 : i32, i32
  }
}

module attributes {stable_mosaic.version = 11 : i64} {
  func.func @_lstm_dir_kernel(%arg0: i32, %arg1: memref<16x64xf32, #tpu.memory_space<vmem>>, %arg2: memref<16x64xf32, #tpu.memory_space<vmem>>, %arg3: memref<2x1xi32, #tpu.memory_space<vmem>>, %arg4: memref<16x16xf32, #tpu.memory_space<vmem>>, %arg5: memref<2x16xf32, #tpu.memory_space<vmem>>, %arg6: memref<2x16xf32, #tpu.memory_space<vmem>>) attributes {dimension_semantics = [#tpu.dimension_semantics<arbitrary>], iteration_bounds = array<i64: 1>, scalar_prefetch = 0 : i64, scratch_operands = 2 : i64, tpu.core_type = #tpu.core_type<tc>, window_params = [{transform_indices = @transform_0, window_bounds = array<i64: 16, 64>}, {pipeline_mode = #tpu.pipeline_mode<synchronous>, transform_indices = @transform_1, window_bounds = array<i64: 16, 64>}, {pipeline_mode = #tpu.pipeline_mode<synchronous>, transform_indices = @transform_2, window_bounds = array<i64: 2, 1>}, {transform_indices = @transform_3, window_bounds = array<i64: 16, 16>}]} {
    %c0_i32 = arith.constant 0 : i32
    %0 = arith.cmpi eq, %arg0, %c0_i32 : i32
    %1 = arith.extui %0 : i1 to i32
    %c0_i32_0 = arith.constant 0 : i32
    %2 = arith.cmpi ne, %1, %c0_i32_0 : i32
    scf.if %2 {
      %cst_150 = arith.constant 0.000000e+00 : f32
      %319 = vector.broadcast %cst_150 : f32 to vector<2x16xf32>
      %c0_151 = arith.constant 0 : index
      %c0_152 = arith.constant 0 : index
      %320 = vector.load %arg5[%c0_151, %c0_152] : memref<2x16xf32, #tpu.memory_space<vmem>>, vector<2x16xf32>
      tpu.vector_store %arg5[%c0_151, %c0_152], %319 {strides = array<i32>} : memref<2x16xf32, #tpu.memory_space<vmem>>, vector<2x16xf32>,
      %cst_153 = arith.constant 0.000000e+00 : f32
      %321 = vector.broadcast %cst_153 : f32 to vector<2x16xf32>
      %c0_154 = arith.constant 0 : index
      %c0_155 = arith.constant 0 : index
      %322 = vector.load %arg6[%c0_154, %c0_155] : memref<2x16xf32, #tpu.memory_space<vmem>>, vector<2x16xf32>
      tpu.vector_store %arg6[%c0_154, %c0_155], %321 {strides = array<i32>} : memref<2x16xf32, #tpu.memory_space<vmem>>, vector<2x16xf32>,
    } else {
    }
    %c0 = arith.constant 0 : index
    %c0_1 = arith.constant 0 : index
    %3 = vector.load %arg2[%c0, %c0_1] : memref<16x64xf32, #tpu.memory_space<vmem>>, vector<16x64xf32>
    %c0_2 = arith.constant 0 : index
    %c0_3 = arith.constant 0 : index
    %4 = vector.load %arg3[%c0_2, %c0_3] : memref<2x1xi32, #tpu.memory_space<vmem>>, vector<2x1xi32>
    %c0_i32_4 = arith.constant 0 : i32
    %5 = arith.subi %c0_i32_4, %arg0 : i32
    %c8_i32 = arith.constant 8 : i32
    %6 = arith.muli %5, %c8_i32 : i32
    %c7_i32 = arith.constant 7 : i32
    %7 = arith.addi %6, %c7_i32 : i32
    %c14 = arith.constant 14 : index
    %c0_5 = arith.constant 0 : index
    %8 = vector.load %arg1[%c14, %c0_5] : memref<16x64xf32, #tpu.memory_space<vmem>>, vector<2x64xf32>
    %c0_6 = arith.constant 0 : index
    %c0_7 = arith.constant 0 : index
    %9 = vector.load %arg5[%c0_6, %c0_7] : memref<2x16xf32, #tpu.memory_space<vmem>>, vector<2x16xf32>
    %cst = arith.constant dense<0.000000e+00> : vector<2x64xf32>
    %10 = tpu.matmul %9, %3, %cst {dimension_numbers = #tpu.dot_dimension_numbers<[1], [0], [0], [1], [0, 0, 1, 1], [], []>} : vector<2x16xf32>, vector<16x64xf32>, vector<2x64xf32> -> vector<2x64xf32>
    %11 = arith.addf %8, %10 : vector<2x64xf32>
    %12 = vector.extract_strided_slice %11 {offsets = [0, 0], sizes = [2, 48], strides = [1, 1]} : vector<2x64xf32> to vector<2x48xf32>
    %13 = arith.negf %12 : vector<2x48xf32>
    %14 = math.exp %13 : vector<2x48xf32>
    %cst_8 = arith.constant 1.000000e+00 : f32
    %15 = vector.broadcast %cst_8 : f32 to vector<2x48xf32>
    %16 = arith.addf %15, %14 : vector<2x48xf32>
    %17 = arith.divf %15, %16 : vector<2x48xf32>
    %18 = vector.extract_strided_slice %17 {offsets = [0, 0], sizes = [2, 16], strides = [1, 1]} : vector<2x48xf32> to vector<2x16xf32>
    %19 = vector.extract_strided_slice %17 {offsets = [0, 16], sizes = [2, 16], strides = [1, 1]} : vector<2x48xf32> to vector<2x16xf32>
    %20 = vector.extract_strided_slice %17 {offsets = [0, 32], sizes = [2, 16], strides = [1, 1]} : vector<2x48xf32> to vector<2x16xf32>
    %21 = vector.extract_strided_slice %11 {offsets = [0, 48], sizes = [2, 16], strides = [1, 1]} : vector<2x64xf32> to vector<2x16xf32>
    %22 = math.tanh %21 : vector<2x16xf32>
    %c0_9 = arith.constant 0 : index
    %c0_10 = arith.constant 0 : index
    %23 = vector.load %arg6[%c0_9, %c0_10] : memref<2x16xf32, #tpu.memory_space<vmem>>, vector<2x16xf32>
    %24 = arith.mulf %19, %23 : vector<2x16xf32>
    %25 = arith.mulf %18, %22 : vector<2x16xf32>
    %26 = arith.addf %24, %25 : vector<2x16xf32>
    %27 = math.tanh %26 : vector<2x16xf32>
    %28 = arith.mulf %20, %27 : vector<2x16xf32>
    %29 = vector.broadcast %7 : i32 to vector<2x1xi32>
    %30 = arith.cmpi slt, %29, %4 : vector<2x1xi32>
    %c0_11 = arith.constant 0 : index
    %c0_12 = arith.constant 0 : index
    %31 = vector.load %arg6[%c0_11, %c0_12] : memref<2x16xf32, #tpu.memory_space<vmem>>, vector<2x16xf32>
    %32 = vector.shape_cast %30 : vector<2x1xi1> to vector<2x1xi1>
    %33 = vector.broadcast %32 : vector<2x1xi1> to vector<2x16xi1>
    %34 = arith.select %33, %26, %31 : vector<2x16xi1>, vector<2x16xf32>
    %c0_13 = arith.constant 0 : index
    %c0_14 = arith.constant 0 : index
    %35 = vector.load %arg6[%c0_13, %c0_14] : memref<2x16xf32, #tpu.memory_space<vmem>>, vector<2x16xf32>
    tpu.vector_store %arg6[%c0_13, %c0_14], %34 {strides = array<i32>} : memref<2x16xf32, #tpu.memory_space<vmem>>, vector<2x16xf32>,
    %c0_15 = arith.constant 0 : index
    %c0_16 = arith.constant 0 : index
    %36 = vector.load %arg5[%c0_15, %c0_16] : memref<2x16xf32, #tpu.memory_space<vmem>>, vector<2x16xf32>
    %37 = vector.shape_cast %30 : vector<2x1xi1> to vector<2x1xi1>
    %38 = vector.broadcast %37 : vector<2x1xi1> to vector<2x16xi1>
    %39 = arith.select %38, %28, %36 : vector<2x16xi1>, vector<2x16xf32>
    %c0_17 = arith.constant 0 : index
    %c0_18 = arith.constant 0 : index
    %40 = vector.load %arg5[%c0_17, %c0_18] : memref<2x16xf32, #tpu.memory_space<vmem>>, vector<2x16xf32>
    tpu.vector_store %arg5[%c0_17, %c0_18], %39 {strides = array<i32>} : memref<2x16xf32, #tpu.memory_space<vmem>>, vector<2x16xf32>,
    %cst_19 = arith.constant 0.000000e+00 : f32
    %41 = vector.broadcast %cst_19 : f32 to vector<2x16xf32>
    %42 = vector.shape_cast %30 : vector<2x1xi1> to vector<2x1xi1>
    %43 = vector.broadcast %42 : vector<2x1xi1> to vector<2x16xi1>
    %44 = arith.select %43, %28, %41 : vector<2x16xi1>, vector<2x16xf32>
    %c14_20 = arith.constant 14 : index
    %c0_21 = arith.constant 0 : index
    %45 = vector.load %arg4[%c14_20, %c0_21] : memref<16x16xf32, #tpu.memory_space<vmem>>, vector<2x16xf32>
    tpu.vector_store %arg4[%c14_20, %c0_21], %44 {strides = array<i32>} : memref<16x16xf32, #tpu.memory_space<vmem>>, vector<2x16xf32>,
    %c6_i32 = arith.constant 6 : i32
    %46 = arith.addi %6, %c6_i32 : i32
    %c12 = arith.constant 12 : index
    %c0_22 = arith.constant 0 : index
    %47 = vector.load %arg1[%c12, %c0_22] : memref<16x64xf32, #tpu.memory_space<vmem>>, vector<2x64xf32>
    %c0_23 = arith.constant 0 : index
    %c0_24 = arith.constant 0 : index
    %48 = vector.load %arg5[%c0_23, %c0_24] : memref<2x16xf32, #tpu.memory_space<vmem>>, vector<2x16xf32>
    %cst_25 = arith.constant dense<0.000000e+00> : vector<2x64xf32>
    %49 = tpu.matmul %48, %3, %cst_25 {dimension_numbers = #tpu.dot_dimension_numbers<[1], [0], [0], [1], [0, 0, 1, 1], [], []>} : vector<2x16xf32>, vector<16x64xf32>, vector<2x64xf32> -> vector<2x64xf32>
    %50 = arith.addf %47, %49 : vector<2x64xf32>
    %51 = vector.extract_strided_slice %50 {offsets = [0, 0], sizes = [2, 48], strides = [1, 1]} : vector<2x64xf32> to vector<2x48xf32>
    %52 = arith.negf %51 : vector<2x48xf32>
    %53 = math.exp %52 : vector<2x48xf32>
    %cst_26 = arith.constant 1.000000e+00 : f32
    %54 = vector.broadcast %cst_26 : f32 to vector<2x48xf32>
    %55 = arith.addf %54, %53 : vector<2x48xf32>
    %56 = arith.divf %54, %55 : vector<2x48xf32>
    %57 = vector.extract_strided_slice %56 {offsets = [0, 0], sizes = [2, 16], strides = [1, 1]} : vector<2x48xf32> to vector<2x16xf32>
    %58 = vector.extract_strided_slice %56 {offsets = [0, 16], sizes = [2, 16], strides = [1, 1]} : vector<2x48xf32> to vector<2x16xf32>
    %59 = vector.extract_strided_slice %56 {offsets = [0, 32], sizes = [2, 16], strides = [1, 1]} : vector<2x48xf32> to vector<2x16xf32>
    %60 = vector.extract_strided_slice %50 {offsets = [0, 48], sizes = [2, 16], strides = [1, 1]} : vector<2x64xf32> to vector<2x16xf32>
    %61 = math.tanh %60 : vector<2x16xf32>
    %c0_27 = arith.constant 0 : index
    %c0_28 = arith.constant 0 : index
    %62 = vector.load %arg6[%c0_27, %c0_28] : memref<2x16xf32, #tpu.memory_space<vmem>>, vector<2x16xf32>
    %63 = arith.mulf %58, %62 : vector<2x16xf32>
    %64 = arith.mulf %57, %61 : vector<2x16xf32>
    %65 = arith.addf %63, %64 : vector<2x16xf32>
    %66 = math.tanh %65 : vector<2x16xf32>
    %67 = arith.mulf %59, %66 : vector<2x16xf32>
    %68 = vector.broadcast %46 : i32 to vector<2x1xi32>
    %69 = arith.cmpi slt, %68, %4 : vector<2x1xi32>
    %c0_29 = arith.constant 0 : index
    %c0_30 = arith.constant 0 : index
    %70 = vector.load %arg6[%c0_29, %c0_30] : memref<2x16xf32, #tpu.memory_space<vmem>>, vector<2x16xf32>
    %71 = vector.shape_cast %69 : vector<2x1xi1> to vector<2x1xi1>
    %72 = vector.broadcast %71 : vector<2x1xi1> to vector<2x16xi1>
    %73 = arith.select %72, %65, %70 : vector<2x16xi1>, vector<2x16xf32>
    %c0_31 = arith.constant 0 : index
    %c0_32 = arith.constant 0 : index
    %74 = vector.load %arg6[%c0_31, %c0_32] : memref<2x16xf32, #tpu.memory_space<vmem>>, vector<2x16xf32>
    tpu.vector_store %arg6[%c0_31, %c0_32], %73 {strides = array<i32>} : memref<2x16xf32, #tpu.memory_space<vmem>>, vector<2x16xf32>,
    %c0_33 = arith.constant 0 : index
    %c0_34 = arith.constant 0 : index
    %75 = vector.load %arg5[%c0_33, %c0_34] : memref<2x16xf32, #tpu.memory_space<vmem>>, vector<2x16xf32>
    %76 = vector.shape_cast %69 : vector<2x1xi1> to vector<2x1xi1>
    %77 = vector.broadcast %76 : vector<2x1xi1> to vector<2x16xi1>
    %78 = arith.select %77, %67, %75 : vector<2x16xi1>, vector<2x16xf32>
    %c0_35 = arith.constant 0 : index
    %c0_36 = arith.constant 0 : index
    %79 = vector.load %arg5[%c0_35, %c0_36] : memref<2x16xf32, #tpu.memory_space<vmem>>, vector<2x16xf32>
    tpu.vector_store %arg5[%c0_35, %c0_36], %78 {strides = array<i32>} : memref<2x16xf32, #tpu.memory_space<vmem>>, vector<2x16xf32>,
    %cst_37 = arith.constant 0.000000e+00 : f32
    %80 = vector.broadcast %cst_37 : f32 to vector<2x16xf32>
    %81 = vector.shape_cast %69 : vector<2x1xi1> to vector<2x1xi1>
    %82 = vector.broadcast %81 : vector<2x1xi1> to vector<2x16xi1>
    %83 = arith.select %82, %67, %80 : vector<2x16xi1>, vector<2x16xf32>
    %c12_38 = arith.constant 12 : index
    %c0_39 = arith.constant 0 : index
    %84 = vector.load %arg4[%c12_38, %c0_39] : memref<16x16xf32, #tpu.memory_space<vmem>>, vector<2x16xf32>
    tpu.vector_store %arg4[%c12_38, %c0_39], %83 {strides = array<i32>} : memref<16x16xf32, #tpu.memory_space<vmem>>, vector<2x16xf32>,
    %c5_i32 = arith.constant 5 : i32
    %85 = arith.addi %6, %c5_i32 : i32
    %c10 = arith.constant 10 : index
    %c0_40 = arith.constant 0 : index
    %86 = vector.load %arg1[%c10, %c0_40] : memref<16x64xf32, #tpu.memory_space<vmem>>, vector<2x64xf32>
    %c0_41 = arith.constant 0 : index
    %c0_42 = arith.constant 0 : index
    %87 = vector.load %arg5[%c0_41, %c0_42] : memref<2x16xf32, #tpu.memory_space<vmem>>, vector<2x16xf32>
    %cst_43 = arith.constant dense<0.000000e+00> : vector<2x64xf32>
    %88 = tpu.matmul %87, %3, %cst_43 {dimension_numbers = #tpu.dot_dimension_numbers<[1], [0], [0], [1], [0, 0, 1, 1], [], []>} : vector<2x16xf32>, vector<16x64xf32>, vector<2x64xf32> -> vector<2x64xf32>
    %89 = arith.addf %86, %88 : vector<2x64xf32>
    %90 = vector.extract_strided_slice %89 {offsets = [0, 0], sizes = [2, 48], strides = [1, 1]} : vector<2x64xf32> to vector<2x48xf32>
    %91 = arith.negf %90 : vector<2x48xf32>
    %92 = math.exp %91 : vector<2x48xf32>
    %cst_44 = arith.constant 1.000000e+00 : f32
    %93 = vector.broadcast %cst_44 : f32 to vector<2x48xf32>
    %94 = arith.addf %93, %92 : vector<2x48xf32>
    %95 = arith.divf %93, %94 : vector<2x48xf32>
    %96 = vector.extract_strided_slice %95 {offsets = [0, 0], sizes = [2, 16], strides = [1, 1]} : vector<2x48xf32> to vector<2x16xf32>
    %97 = vector.extract_strided_slice %95 {offsets = [0, 16], sizes = [2, 16], strides = [1, 1]} : vector<2x48xf32> to vector<2x16xf32>
    %98 = vector.extract_strided_slice %95 {offsets = [0, 32], sizes = [2, 16], strides = [1, 1]} : vector<2x48xf32> to vector<2x16xf32>
    %99 = vector.extract_strided_slice %89 {offsets = [0, 48], sizes = [2, 16], strides = [1, 1]} : vector<2x64xf32> to vector<2x16xf32>
    %100 = math.tanh %99 : vector<2x16xf32>
    %c0_45 = arith.constant 0 : index
    %c0_46 = arith.constant 0 : index
    %101 = vector.load %arg6[%c0_45, %c0_46] : memref<2x16xf32, #tpu.memory_space<vmem>>, vector<2x16xf32>
    %102 = arith.mulf %97, %101 : vector<2x16xf32>
    %103 = arith.mulf %96, %100 : vector<2x16xf32>
    %104 = arith.addf %102, %103 : vector<2x16xf32>
    %105 = math.tanh %104 : vector<2x16xf32>
    %106 = arith.mulf %98, %105 : vector<2x16xf32>
    %107 = vector.broadcast %85 : i32 to vector<2x1xi32>
    %108 = arith.cmpi slt, %107, %4 : vector<2x1xi32>
    %c0_47 = arith.constant 0 : index
    %c0_48 = arith.constant 0 : index
    %109 = vector.load %arg6[%c0_47, %c0_48] : memref<2x16xf32, #tpu.memory_space<vmem>>, vector<2x16xf32>
    %110 = vector.shape_cast %108 : vector<2x1xi1> to vector<2x1xi1>
    %111 = vector.broadcast %110 : vector<2x1xi1> to vector<2x16xi1>
    %112 = arith.select %111, %104, %109 : vector<2x16xi1>, vector<2x16xf32>
    %c0_49 = arith.constant 0 : index
    %c0_50 = arith.constant 0 : index
    %113 = vector.load %arg6[%c0_49, %c0_50] : memref<2x16xf32, #tpu.memory_space<vmem>>, vector<2x16xf32>
    tpu.vector_store %arg6[%c0_49, %c0_50], %112 {strides = array<i32>} : memref<2x16xf32, #tpu.memory_space<vmem>>, vector<2x16xf32>,
    %c0_51 = arith.constant 0 : index
    %c0_52 = arith.constant 0 : index
    %114 = vector.load %arg5[%c0_51, %c0_52] : memref<2x16xf32, #tpu.memory_space<vmem>>, vector<2x16xf32>
    %115 = vector.shape_cast %108 : vector<2x1xi1> to vector<2x1xi1>
    %116 = vector.broadcast %115 : vector<2x1xi1> to vector<2x16xi1>
    %117 = arith.select %116, %106, %114 : vector<2x16xi1>, vector<2x16xf32>
    %c0_53 = arith.constant 0 : index
    %c0_54 = arith.constant 0 : index
    %118 = vector.load %arg5[%c0_53, %c0_54] : memref<2x16xf32, #tpu.memory_space<vmem>>, vector<2x16xf32>
    tpu.vector_store %arg5[%c0_53, %c0_54], %117 {strides = array<i32>} : memref<2x16xf32, #tpu.memory_space<vmem>>, vector<2x16xf32>,
    %cst_55 = arith.constant 0.000000e+00 : f32
    %119 = vector.broadcast %cst_55 : f32 to vector<2x16xf32>
    %120 = vector.shape_cast %108 : vector<2x1xi1> to vector<2x1xi1>
    %121 = vector.broadcast %120 : vector<2x1xi1> to vector<2x16xi1>
    %122 = arith.select %121, %106, %119 : vector<2x16xi1>, vector<2x16xf32>
    %c10_56 = arith.constant 10 : index
    %c0_57 = arith.constant 0 : index
    %123 = vector.load %arg4[%c10_56, %c0_57] : memref<16x16xf32, #tpu.memory_space<vmem>>, vector<2x16xf32>
    tpu.vector_store %arg4[%c10_56, %c0_57], %122 {strides = array<i32>} : memref<16x16xf32, #tpu.memory_space<vmem>>, vector<2x16xf32>,
    %c4_i32 = arith.constant 4 : i32
    %124 = arith.addi %6, %c4_i32 : i32
    %c8 = arith.constant 8 : index
    %c0_58 = arith.constant 0 : index
    %125 = vector.load %arg1[%c8, %c0_58] : memref<16x64xf32, #tpu.memory_space<vmem>>, vector<2x64xf32>
    %c0_59 = arith.constant 0 : index
    %c0_60 = arith.constant 0 : index
    %126 = vector.load %arg5[%c0_59, %c0_60] : memref<2x16xf32, #tpu.memory_space<vmem>>, vector<2x16xf32>
    %cst_61 = arith.constant dense<0.000000e+00> : vector<2x64xf32>
    %127 = tpu.matmul %126, %3, %cst_61 {dimension_numbers = #tpu.dot_dimension_numbers<[1], [0], [0], [1], [0, 0, 1, 1], [], []>} : vector<2x16xf32>, vector<16x64xf32>, vector<2x64xf32> -> vector<2x64xf32>
    %128 = arith.addf %125, %127 : vector<2x64xf32>
    %129 = vector.extract_strided_slice %128 {offsets = [0, 0], sizes = [2, 48], strides = [1, 1]} : vector<2x64xf32> to vector<2x48xf32>
    %130 = arith.negf %129 : vector<2x48xf32>
    %131 = math.exp %130 : vector<2x48xf32>
    %cst_62 = arith.constant 1.000000e+00 : f32
    %132 = vector.broadcast %cst_62 : f32 to vector<2x48xf32>
    %133 = arith.addf %132, %131 : vector<2x48xf32>
    %134 = arith.divf %132, %133 : vector<2x48xf32>
    %135 = vector.extract_strided_slice %134 {offsets = [0, 0], sizes = [2, 16], strides = [1, 1]} : vector<2x48xf32> to vector<2x16xf32>
    %136 = vector.extract_strided_slice %134 {offsets = [0, 16], sizes = [2, 16], strides = [1, 1]} : vector<2x48xf32> to vector<2x16xf32>
    %137 = vector.extract_strided_slice %134 {offsets = [0, 32], sizes = [2, 16], strides = [1, 1]} : vector<2x48xf32> to vector<2x16xf32>
    %138 = vector.extract_strided_slice %128 {offsets = [0, 48], sizes = [2, 16], strides = [1, 1]} : vector<2x64xf32> to vector<2x16xf32>
    %139 = math.tanh %138 : vector<2x16xf32>
    %c0_63 = arith.constant 0 : index
    %c0_64 = arith.constant 0 : index
    %140 = vector.load %arg6[%c0_63, %c0_64] : memref<2x16xf32, #tpu.memory_space<vmem>>, vector<2x16xf32>
    %141 = arith.mulf %136, %140 : vector<2x16xf32>
    %142 = arith.mulf %135, %139 : vector<2x16xf32>
    %143 = arith.addf %141, %142 : vector<2x16xf32>
    %144 = math.tanh %143 : vector<2x16xf32>
    %145 = arith.mulf %137, %144 : vector<2x16xf32>
    %146 = vector.broadcast %124 : i32 to vector<2x1xi32>
    %147 = arith.cmpi slt, %146, %4 : vector<2x1xi32>
    %c0_65 = arith.constant 0 : index
    %c0_66 = arith.constant 0 : index
    %148 = vector.load %arg6[%c0_65, %c0_66] : memref<2x16xf32, #tpu.memory_space<vmem>>, vector<2x16xf32>
    %149 = vector.shape_cast %147 : vector<2x1xi1> to vector<2x1xi1>
    %150 = vector.broadcast %149 : vector<2x1xi1> to vector<2x16xi1>
    %151 = arith.select %150, %143, %148 : vector<2x16xi1>, vector<2x16xf32>
    %c0_67 = arith.constant 0 : index
    %c0_68 = arith.constant 0 : index
    %152 = vector.load %arg6[%c0_67, %c0_68] : memref<2x16xf32, #tpu.memory_space<vmem>>, vector<2x16xf32>
    tpu.vector_store %arg6[%c0_67, %c0_68], %151 {strides = array<i32>} : memref<2x16xf32, #tpu.memory_space<vmem>>, vector<2x16xf32>,
    %c0_69 = arith.constant 0 : index
    %c0_70 = arith.constant 0 : index
    %153 = vector.load %arg5[%c0_69, %c0_70] : memref<2x16xf32, #tpu.memory_space<vmem>>, vector<2x16xf32>
    %154 = vector.shape_cast %147 : vector<2x1xi1> to vector<2x1xi1>
    %155 = vector.broadcast %154 : vector<2x1xi1> to vector<2x16xi1>
    %156 = arith.select %155, %145, %153 : vector<2x16xi1>, vector<2x16xf32>
    %c0_71 = arith.constant 0 : index
    %c0_72 = arith.constant 0 : index
    %157 = vector.load %arg5[%c0_71, %c0_72] : memref<2x16xf32, #tpu.memory_space<vmem>>, vector<2x16xf32>
    tpu.vector_store %arg5[%c0_71, %c0_72], %156 {strides = array<i32>} : memref<2x16xf32, #tpu.memory_space<vmem>>, vector<2x16xf32>,
    %cst_73 = arith.constant 0.000000e+00 : f32
    %158 = vector.broadcast %cst_73 : f32 to vector<2x16xf32>
    %159 = vector.shape_cast %147 : vector<2x1xi1> to vector<2x1xi1>
    %160 = vector.broadcast %159 : vector<2x1xi1> to vector<2x16xi1>
    %161 = arith.select %160, %145, %158 : vector<2x16xi1>, vector<2x16xf32>
    %c8_74 = arith.constant 8 : index
    %c0_75 = arith.constant 0 : index
    %162 = vector.load %arg4[%c8_74, %c0_75] : memref<16x16xf32, #tpu.memory_space<vmem>>, vector<2x16xf32>
    tpu.vector_store %arg4[%c8_74, %c0_75], %161 {strides = array<i32>} : memref<16x16xf32, #tpu.memory_space<vmem>>, vector<2x16xf32>,
    %c3_i32 = arith.constant 3 : i32
    %163 = arith.addi %6, %c3_i32 : i32
    %c6 = arith.constant 6 : index
    %c0_76 = arith.constant 0 : index
    %164 = vector.load %arg1[%c6, %c0_76] : memref<16x64xf32, #tpu.memory_space<vmem>>, vector<2x64xf32>
    %c0_77 = arith.constant 0 : index
    %c0_78 = arith.constant 0 : index
    %165 = vector.load %arg5[%c0_77, %c0_78] : memref<2x16xf32, #tpu.memory_space<vmem>>, vector<2x16xf32>
    %cst_79 = arith.constant dense<0.000000e+00> : vector<2x64xf32>
    %166 = tpu.matmul %165, %3, %cst_79 {dimension_numbers = #tpu.dot_dimension_numbers<[1], [0], [0], [1], [0, 0, 1, 1], [], []>} : vector<2x16xf32>, vector<16x64xf32>, vector<2x64xf32> -> vector<2x64xf32>
    %167 = arith.addf %164, %166 : vector<2x64xf32>
    %168 = vector.extract_strided_slice %167 {offsets = [0, 0], sizes = [2, 48], strides = [1, 1]} : vector<2x64xf32> to vector<2x48xf32>
    %169 = arith.negf %168 : vector<2x48xf32>
    %170 = math.exp %169 : vector<2x48xf32>
    %cst_80 = arith.constant 1.000000e+00 : f32
    %171 = vector.broadcast %cst_80 : f32 to vector<2x48xf32>
    %172 = arith.addf %171, %170 : vector<2x48xf32>
    %173 = arith.divf %171, %172 : vector<2x48xf32>
    %174 = vector.extract_strided_slice %173 {offsets = [0, 0], sizes = [2, 16], strides = [1, 1]} : vector<2x48xf32> to vector<2x16xf32>
    %175 = vector.extract_strided_slice %173 {offsets = [0, 16], sizes = [2, 16], strides = [1, 1]} : vector<2x48xf32> to vector<2x16xf32>
    %176 = vector.extract_strided_slice %173 {offsets = [0, 32], sizes = [2, 16], strides = [1, 1]} : vector<2x48xf32> to vector<2x16xf32>
    %177 = vector.extract_strided_slice %167 {offsets = [0, 48], sizes = [2, 16], strides = [1, 1]} : vector<2x64xf32> to vector<2x16xf32>
    %178 = math.tanh %177 : vector<2x16xf32>
    %c0_81 = arith.constant 0 : index
    %c0_82 = arith.constant 0 : index
    %179 = vector.load %arg6[%c0_81, %c0_82] : memref<2x16xf32, #tpu.memory_space<vmem>>, vector<2x16xf32>
    %180 = arith.mulf %175, %179 : vector<2x16xf32>
    %181 = arith.mulf %174, %178 : vector<2x16xf32>
    %182 = arith.addf %180, %181 : vector<2x16xf32>
    %183 = math.tanh %182 : vector<2x16xf32>
    %184 = arith.mulf %176, %183 : vector<2x16xf32>
    %185 = vector.broadcast %163 : i32 to vector<2x1xi32>
    %186 = arith.cmpi slt, %185, %4 : vector<2x1xi32>
    %c0_83 = arith.constant 0 : index
    %c0_84 = arith.constant 0 : index
    %187 = vector.load %arg6[%c0_83, %c0_84] : memref<2x16xf32, #tpu.memory_space<vmem>>, vector<2x16xf32>
    %188 = vector.shape_cast %186 : vector<2x1xi1> to vector<2x1xi1>
    %189 = vector.broadcast %188 : vector<2x1xi1> to vector<2x16xi1>
    %190 = arith.select %189, %182, %187 : vector<2x16xi1>, vector<2x16xf32>
    %c0_85 = arith.constant 0 : index
    %c0_86 = arith.constant 0 : index
    %191 = vector.load %arg6[%c0_85, %c0_86] : memref<2x16xf32, #tpu.memory_space<vmem>>, vector<2x16xf32>
    tpu.vector_store %arg6[%c0_85, %c0_86], %190 {strides = array<i32>} : memref<2x16xf32, #tpu.memory_space<vmem>>, vector<2x16xf32>,
    %c0_87 = arith.constant 0 : index
    %c0_88 = arith.constant 0 : index
    %192 = vector.load %arg5[%c0_87, %c0_88] : memref<2x16xf32, #tpu.memory_space<vmem>>, vector<2x16xf32>
    %193 = vector.shape_cast %186 : vector<2x1xi1> to vector<2x1xi1>
    %194 = vector.broadcast %193 : vector<2x1xi1> to vector<2x16xi1>
    %195 = arith.select %194, %184, %192 : vector<2x16xi1>, vector<2x16xf32>
    %c0_89 = arith.constant 0 : index
    %c0_90 = arith.constant 0 : index
    %196 = vector.load %arg5[%c0_89, %c0_90] : memref<2x16xf32, #tpu.memory_space<vmem>>, vector<2x16xf32>
    tpu.vector_store %arg5[%c0_89, %c0_90], %195 {strides = array<i32>} : memref<2x16xf32, #tpu.memory_space<vmem>>, vector<2x16xf32>,
    %cst_91 = arith.constant 0.000000e+00 : f32
    %197 = vector.broadcast %cst_91 : f32 to vector<2x16xf32>
    %198 = vector.shape_cast %186 : vector<2x1xi1> to vector<2x1xi1>
    %199 = vector.broadcast %198 : vector<2x1xi1> to vector<2x16xi1>
    %200 = arith.select %199, %184, %197 : vector<2x16xi1>, vector<2x16xf32>
    %c6_92 = arith.constant 6 : index
    %c0_93 = arith.constant 0 : index
    %201 = vector.load %arg4[%c6_92, %c0_93] : memref<16x16xf32, #tpu.memory_space<vmem>>, vector<2x16xf32>
    tpu.vector_store %arg4[%c6_92, %c0_93], %200 {strides = array<i32>} : memref<16x16xf32, #tpu.memory_space<vmem>>, vector<2x16xf32>,
    %c2_i32 = arith.constant 2 : i32
    %202 = arith.addi %6, %c2_i32 : i32
    %c4 = arith.constant 4 : index
    %c0_94 = arith.constant 0 : index
    %203 = vector.load %arg1[%c4, %c0_94] : memref<16x64xf32, #tpu.memory_space<vmem>>, vector<2x64xf32>
    %c0_95 = arith.constant 0 : index
    %c0_96 = arith.constant 0 : index
    %204 = vector.load %arg5[%c0_95, %c0_96] : memref<2x16xf32, #tpu.memory_space<vmem>>, vector<2x16xf32>
    %cst_97 = arith.constant dense<0.000000e+00> : vector<2x64xf32>
    %205 = tpu.matmul %204, %3, %cst_97 {dimension_numbers = #tpu.dot_dimension_numbers<[1], [0], [0], [1], [0, 0, 1, 1], [], []>} : vector<2x16xf32>, vector<16x64xf32>, vector<2x64xf32> -> vector<2x64xf32>
    %206 = arith.addf %203, %205 : vector<2x64xf32>
    %207 = vector.extract_strided_slice %206 {offsets = [0, 0], sizes = [2, 48], strides = [1, 1]} : vector<2x64xf32> to vector<2x48xf32>
    %208 = arith.negf %207 : vector<2x48xf32>
    %209 = math.exp %208 : vector<2x48xf32>
    %cst_98 = arith.constant 1.000000e+00 : f32
    %210 = vector.broadcast %cst_98 : f32 to vector<2x48xf32>
    %211 = arith.addf %210, %209 : vector<2x48xf32>
    %212 = arith.divf %210, %211 : vector<2x48xf32>
    %213 = vector.extract_strided_slice %212 {offsets = [0, 0], sizes = [2, 16], strides = [1, 1]} : vector<2x48xf32> to vector<2x16xf32>
    %214 = vector.extract_strided_slice %212 {offsets = [0, 16], sizes = [2, 16], strides = [1, 1]} : vector<2x48xf32> to vector<2x16xf32>
    %215 = vector.extract_strided_slice %212 {offsets = [0, 32], sizes = [2, 16], strides = [1, 1]} : vector<2x48xf32> to vector<2x16xf32>
    %216 = vector.extract_strided_slice %206 {offsets = [0, 48], sizes = [2, 16], strides = [1, 1]} : vector<2x64xf32> to vector<2x16xf32>
    %217 = math.tanh %216 : vector<2x16xf32>
    %c0_99 = arith.constant 0 : index
    %c0_100 = arith.constant 0 : index
    %218 = vector.load %arg6[%c0_99, %c0_100] : memref<2x16xf32, #tpu.memory_space<vmem>>, vector<2x16xf32>
    %219 = arith.mulf %214, %218 : vector<2x16xf32>
    %220 = arith.mulf %213, %217 : vector<2x16xf32>
    %221 = arith.addf %219, %220 : vector<2x16xf32>
    %222 = math.tanh %221 : vector<2x16xf32>
    %223 = arith.mulf %215, %222 : vector<2x16xf32>
    %224 = vector.broadcast %202 : i32 to vector<2x1xi32>
    %225 = arith.cmpi slt, %224, %4 : vector<2x1xi32>
    %c0_101 = arith.constant 0 : index
    %c0_102 = arith.constant 0 : index
    %226 = vector.load %arg6[%c0_101, %c0_102] : memref<2x16xf32, #tpu.memory_space<vmem>>, vector<2x16xf32>
    %227 = vector.shape_cast %225 : vector<2x1xi1> to vector<2x1xi1>
    %228 = vector.broadcast %227 : vector<2x1xi1> to vector<2x16xi1>
    %229 = arith.select %228, %221, %226 : vector<2x16xi1>, vector<2x16xf32>
    %c0_103 = arith.constant 0 : index
    %c0_104 = arith.constant 0 : index
    %230 = vector.load %arg6[%c0_103, %c0_104] : memref<2x16xf32, #tpu.memory_space<vmem>>, vector<2x16xf32>
    tpu.vector_store %arg6[%c0_103, %c0_104], %229 {strides = array<i32>} : memref<2x16xf32, #tpu.memory_space<vmem>>, vector<2x16xf32>,
    %c0_105 = arith.constant 0 : index
    %c0_106 = arith.constant 0 : index
    %231 = vector.load %arg5[%c0_105, %c0_106] : memref<2x16xf32, #tpu.memory_space<vmem>>, vector<2x16xf32>
    %232 = vector.shape_cast %225 : vector<2x1xi1> to vector<2x1xi1>
    %233 = vector.broadcast %232 : vector<2x1xi1> to vector<2x16xi1>
    %234 = arith.select %233, %223, %231 : vector<2x16xi1>, vector<2x16xf32>
    %c0_107 = arith.constant 0 : index
    %c0_108 = arith.constant 0 : index
    %235 = vector.load %arg5[%c0_107, %c0_108] : memref<2x16xf32, #tpu.memory_space<vmem>>, vector<2x16xf32>
    tpu.vector_store %arg5[%c0_107, %c0_108], %234 {strides = array<i32>} : memref<2x16xf32, #tpu.memory_space<vmem>>, vector<2x16xf32>,
    %cst_109 = arith.constant 0.000000e+00 : f32
    %236 = vector.broadcast %cst_109 : f32 to vector<2x16xf32>
    %237 = vector.shape_cast %225 : vector<2x1xi1> to vector<2x1xi1>
    %238 = vector.broadcast %237 : vector<2x1xi1> to vector<2x16xi1>
    %239 = arith.select %238, %223, %236 : vector<2x16xi1>, vector<2x16xf32>
    %c4_110 = arith.constant 4 : index
    %c0_111 = arith.constant 0 : index
    %240 = vector.load %arg4[%c4_110, %c0_111] : memref<16x16xf32, #tpu.memory_space<vmem>>, vector<2x16xf32>
    tpu.vector_store %arg4[%c4_110, %c0_111], %239 {strides = array<i32>} : memref<16x16xf32, #tpu.memory_space<vmem>>, vector<2x16xf32>,
    %c1_i32 = arith.constant 1 : i32
    %241 = arith.addi %6, %c1_i32 : i32
    %c2 = arith.constant 2 : index
    %c0_112 = arith.constant 0 : index
    %242 = vector.load %arg1[%c2, %c0_112] : memref<16x64xf32, #tpu.memory_space<vmem>>, vector<2x64xf32>
    %c0_113 = arith.constant 0 : index
    %c0_114 = arith.constant 0 : index
    %243 = vector.load %arg5[%c0_113, %c0_114] : memref<2x16xf32, #tpu.memory_space<vmem>>, vector<2x16xf32>
    %cst_115 = arith.constant dense<0.000000e+00> : vector<2x64xf32>
    %244 = tpu.matmul %243, %3, %cst_115 {dimension_numbers = #tpu.dot_dimension_numbers<[1], [0], [0], [1], [0, 0, 1, 1], [], []>} : vector<2x16xf32>, vector<16x64xf32>, vector<2x64xf32> -> vector<2x64xf32>
    %245 = arith.addf %242, %244 : vector<2x64xf32>
    %246 = vector.extract_strided_slice %245 {offsets = [0, 0], sizes = [2, 48], strides = [1, 1]} : vector<2x64xf32> to vector<2x48xf32>
    %247 = arith.negf %246 : vector<2x48xf32>
    %248 = math.exp %247 : vector<2x48xf32>
    %cst_116 = arith.constant 1.000000e+00 : f32
    %249 = vector.broadcast %cst_116 : f32 to vector<2x48xf32>
    %250 = arith.addf %249, %248 : vector<2x48xf32>
    %251 = arith.divf %249, %250 : vector<2x48xf32>
    %252 = vector.extract_strided_slice %251 {offsets = [0, 0], sizes = [2, 16], strides = [1, 1]} : vector<2x48xf32> to vector<2x16xf32>
    %253 = vector.extract_strided_slice %251 {offsets = [0, 16], sizes = [2, 16], strides = [1, 1]} : vector<2x48xf32> to vector<2x16xf32>
    %254 = vector.extract_strided_slice %251 {offsets = [0, 32], sizes = [2, 16], strides = [1, 1]} : vector<2x48xf32> to vector<2x16xf32>
    %255 = vector.extract_strided_slice %245 {offsets = [0, 48], sizes = [2, 16], strides = [1, 1]} : vector<2x64xf32> to vector<2x16xf32>
    %256 = math.tanh %255 : vector<2x16xf32>
    %c0_117 = arith.constant 0 : index
    %c0_118 = arith.constant 0 : index
    %257 = vector.load %arg6[%c0_117, %c0_118] : memref<2x16xf32, #tpu.memory_space<vmem>>, vector<2x16xf32>
    %258 = arith.mulf %253, %257 : vector<2x16xf32>
    %259 = arith.mulf %252, %256 : vector<2x16xf32>
    %260 = arith.addf %258, %259 : vector<2x16xf32>
    %261 = math.tanh %260 : vector<2x16xf32>
    %262 = arith.mulf %254, %261 : vector<2x16xf32>
    %263 = vector.broadcast %241 : i32 to vector<2x1xi32>
    %264 = arith.cmpi slt, %263, %4 : vector<2x1xi32>
    %c0_119 = arith.constant 0 : index
    %c0_120 = arith.constant 0 : index
    %265 = vector.load %arg6[%c0_119, %c0_120] : memref<2x16xf32, #tpu.memory_space<vmem>>, vector<2x16xf32>
    %266 = vector.shape_cast %264 : vector<2x1xi1> to vector<2x1xi1>
    %267 = vector.broadcast %266 : vector<2x1xi1> to vector<2x16xi1>
    %268 = arith.select %267, %260, %265 : vector<2x16xi1>, vector<2x16xf32>
    %c0_121 = arith.constant 0 : index
    %c0_122 = arith.constant 0 : index
    %269 = vector.load %arg6[%c0_121, %c0_122] : memref<2x16xf32, #tpu.memory_space<vmem>>, vector<2x16xf32>
    tpu.vector_store %arg6[%c0_121, %c0_122], %268 {strides = array<i32>} : memref<2x16xf32, #tpu.memory_space<vmem>>, vector<2x16xf32>,
    %c0_123 = arith.constant 0 : index
    %c0_124 = arith.constant 0 : index
    %270 = vector.load %arg5[%c0_123, %c0_124] : memref<2x16xf32, #tpu.memory_space<vmem>>, vector<2x16xf32>
    %271 = vector.shape_cast %264 : vector<2x1xi1> to vector<2x1xi1>
    %272 = vector.broadcast %271 : vector<2x1xi1> to vector<2x16xi1>
    %273 = arith.select %272, %262, %270 : vector<2x16xi1>, vector<2x16xf32>
    %c0_125 = arith.constant 0 : index
    %c0_126 = arith.constant 0 : index
    %274 = vector.load %arg5[%c0_125, %c0_126] : memref<2x16xf32, #tpu.memory_space<vmem>>, vector<2x16xf32>
    tpu.vector_store %arg5[%c0_125, %c0_126], %273 {strides = array<i32>} : memref<2x16xf32, #tpu.memory_space<vmem>>, vector<2x16xf32>,
    %cst_127 = arith.constant 0.000000e+00 : f32
    %275 = vector.broadcast %cst_127 : f32 to vector<2x16xf32>
    %276 = vector.shape_cast %264 : vector<2x1xi1> to vector<2x1xi1>
    %277 = vector.broadcast %276 : vector<2x1xi1> to vector<2x16xi1>
    %278 = arith.select %277, %262, %275 : vector<2x16xi1>, vector<2x16xf32>
    %c2_128 = arith.constant 2 : index
    %c0_129 = arith.constant 0 : index
    %279 = vector.load %arg4[%c2_128, %c0_129] : memref<16x16xf32, #tpu.memory_space<vmem>>, vector<2x16xf32>
    tpu.vector_store %arg4[%c2_128, %c0_129], %278 {strides = array<i32>} : memref<16x16xf32, #tpu.memory_space<vmem>>, vector<2x16xf32>,
    %c0_i32_130 = arith.constant 0 : i32
    %280 = arith.addi %6, %c0_i32_130 : i32
    %c0_131 = arith.constant 0 : index
    %c0_132 = arith.constant 0 : index
    %281 = vector.load %arg1[%c0_131, %c0_132] : memref<16x64xf32, #tpu.memory_space<vmem>>, vector<2x64xf32>
    %c0_133 = arith.constant 0 : index
    %c0_134 = arith.constant 0 : index
    %282 = vector.load %arg5[%c0_133, %c0_134] : memref<2x16xf32, #tpu.memory_space<vmem>>, vector<2x16xf32>
    %cst_135 = arith.constant dense<0.000000e+00> : vector<2x64xf32>
    %283 = tpu.matmul %282, %3, %cst_135 {dimension_numbers = #tpu.dot_dimension_numbers<[1], [0], [0], [1], [0, 0, 1, 1], [], []>} : vector<2x16xf32>, vector<16x64xf32>, vector<2x64xf32> -> vector<2x64xf32>
    %284 = arith.addf %281, %283 : vector<2x64xf32>
    %285 = vector.extract_strided_slice %284 {offsets = [0, 0], sizes = [2, 48], strides = [1, 1]} : vector<2x64xf32> to vector<2x48xf32>
    %286 = arith.negf %285 : vector<2x48xf32>
    %287 = math.exp %286 : vector<2x48xf32>
    %cst_136 = arith.constant 1.000000e+00 : f32
    %288 = vector.broadcast %cst_136 : f32 to vector<2x48xf32>
    %289 = arith.addf %288, %287 : vector<2x48xf32>
    %290 = arith.divf %288, %289 : vector<2x48xf32>
    %291 = vector.extract_strided_slice %290 {offsets = [0, 0], sizes = [2, 16], strides = [1, 1]} : vector<2x48xf32> to vector<2x16xf32>
    %292 = vector.extract_strided_slice %290 {offsets = [0, 16], sizes = [2, 16], strides = [1, 1]} : vector<2x48xf32> to vector<2x16xf32>
    %293 = vector.extract_strided_slice %290 {offsets = [0, 32], sizes = [2, 16], strides = [1, 1]} : vector<2x48xf32> to vector<2x16xf32>
    %294 = vector.extract_strided_slice %284 {offsets = [0, 48], sizes = [2, 16], strides = [1, 1]} : vector<2x64xf32> to vector<2x16xf32>
    %295 = math.tanh %294 : vector<2x16xf32>
    %c0_137 = arith.constant 0 : index
    %c0_138 = arith.constant 0 : index
    %296 = vector.load %arg6[%c0_137, %c0_138] : memref<2x16xf32, #tpu.memory_space<vmem>>, vector<2x16xf32>
    %297 = arith.mulf %292, %296 : vector<2x16xf32>
    %298 = arith.mulf %291, %295 : vector<2x16xf32>
    %299 = arith.addf %297, %298 : vector<2x16xf32>
    %300 = math.tanh %299 : vector<2x16xf32>
    %301 = arith.mulf %293, %300 : vector<2x16xf32>
    %302 = vector.broadcast %280 : i32 to vector<2x1xi32>
    %303 = arith.cmpi slt, %302, %4 : vector<2x1xi32>
    %c0_139 = arith.constant 0 : index
    %c0_140 = arith.constant 0 : index
    %304 = vector.load %arg6[%c0_139, %c0_140] : memref<2x16xf32, #tpu.memory_space<vmem>>, vector<2x16xf32>
    %305 = vector.shape_cast %303 : vector<2x1xi1> to vector<2x1xi1>
    %306 = vector.broadcast %305 : vector<2x1xi1> to vector<2x16xi1>
    %307 = arith.select %306, %299, %304 : vector<2x16xi1>, vector<2x16xf32>
    %c0_141 = arith.constant 0 : index
    %c0_142 = arith.constant 0 : index
    %308 = vector.load %arg6[%c0_141, %c0_142] : memref<2x16xf32, #tpu.memory_space<vmem>>, vector<2x16xf32>
    tpu.vector_store %arg6[%c0_141, %c0_142], %307 {strides = array<i32>} : memref<2x16xf32, #tpu.memory_space<vmem>>, vector<2x16xf32>,
    %c0_143 = arith.constant 0 : index
    %c0_144 = arith.constant 0 : index
    %309 = vector.load %arg5[%c0_143, %c0_144] : memref<2x16xf32, #tpu.memory_space<vmem>>, vector<2x16xf32>
    %310 = vector.shape_cast %303 : vector<2x1xi1> to vector<2x1xi1>
    %311 = vector.broadcast %310 : vector<2x1xi1> to vector<2x16xi1>
    %312 = arith.select %311, %301, %309 : vector<2x16xi1>, vector<2x16xf32>
    %c0_145 = arith.constant 0 : index
    %c0_146 = arith.constant 0 : index
    %313 = vector.load %arg5[%c0_145, %c0_146] : memref<2x16xf32, #tpu.memory_space<vmem>>, vector<2x16xf32>
    tpu.vector_store %arg5[%c0_145, %c0_146], %312 {strides = array<i32>} : memref<2x16xf32, #tpu.memory_space<vmem>>, vector<2x16xf32>,
    %cst_147 = arith.constant 0.000000e+00 : f32
    %314 = vector.broadcast %cst_147 : f32 to vector<2x16xf32>
    %315 = vector.shape_cast %303 : vector<2x1xi1> to vector<2x1xi1>
    %316 = vector.broadcast %315 : vector<2x1xi1> to vector<2x16xi1>
    %317 = arith.select %316, %301, %314 : vector<2x16xi1>, vector<2x16xf32>
    %c0_148 = arith.constant 0 : index
    %c0_149 = arith.constant 0 : index
    %318 = vector.load %arg4[%c0_148, %c0_149] : memref<16x16xf32, #tpu.memory_space<vmem>>, vector<2x16xf32>
    tpu.vector_store %arg4[%c0_148, %c0_149], %317 {strides = array<i32>} : memref<16x16xf32, #tpu.memory_space<vmem>>, vector<2x16xf32>,
    return
  }
  func.func @transform_0(%arg0: i32) -> (i32, i32) {
    %c0_i32 = arith.constant 0 : i32
    %0 = arith.subi %c0_i32, %arg0 : i32
    %c0_i32_0 = arith.constant 0 : i32
    %c0_i32_1 = arith.constant 0 : i32
    return %0, %c0_i32_0 : i32, i32
  }
  func.func @transform_1(%arg0: i32) -> (i32, i32) {
    %c0_i32 = arith.constant 0 : i32
    %c0_i32_0 = arith.constant 0 : i32
    %c0_i32_1 = arith.constant 0 : i32
    return %c0_i32, %c0_i32_0 : i32, i32
  }
  func.func @transform_2(%arg0: i32) -> (i32, i32) {
    %c0_i32 = arith.constant 0 : i32
    %c0_i32_0 = arith.constant 0 : i32
    %c0_i32_1 = arith.constant 0 : i32
    return %c0_i32, %c0_i32_0 : i32, i32
  }
  func.func @transform_3(%arg0: i32) -> (i32, i32) {
    %c0_i32 = arith.constant 0 : i32
    %0 = arith.subi %c0_i32, %arg0 : i32
    %c0_i32_0 = arith.constant 0 : i32
    %c0_i32_1 = arith.constant 0 : i32
    return %0, %c0_i32_0 : i32, i32
  }
}

module attributes {stable_mosaic.version = 11 : i64} {
  func.func @_fc_max_kernel(%arg0: i32, %arg1: memref<16x32xf32, #tpu.memory_space<vmem>>, %arg2: memref<32x8xf32, #tpu.memory_space<vmem>>, %arg3: memref<1x8xf32, #tpu.memory_space<vmem>>, %arg4: memref<2x8xf32, #tpu.memory_space<vmem>>, %arg5: memref<2x8xf32, #tpu.memory_space<vmem>>) attributes {dimension_semantics = [#tpu.dimension_semantics<arbitrary>], iteration_bounds = array<i64: 1>, scalar_prefetch = 0 : i64, scratch_operands = 1 : i64, tpu.core_type = #tpu.core_type<tc>, window_params = [{transform_indices = @transform_0, window_bounds = array<i64: 16, 32>}, {pipeline_mode = #tpu.pipeline_mode<synchronous>, transform_indices = @transform_1, window_bounds = array<i64: 32, 8>}, {pipeline_mode = #tpu.pipeline_mode<synchronous>, transform_indices = @transform_2, window_bounds = array<i64: 1, 8>}, {pipeline_mode = #tpu.pipeline_mode<synchronous>, transform_indices = @transform_3, window_bounds = array<i64: 2, 8>}]} {
    %c0_i32 = arith.constant 0 : i32
    %0 = arith.cmpi eq, %arg0, %c0_i32 : i32
    %1 = arith.extui %0 : i1 to i32
    %c0_i32_0 = arith.constant 0 : i32
    %2 = arith.cmpi ne, %1, %c0_i32_0 : i32
    scf.if %2 {
      %cst_12 = arith.constant 0xFF800000 : f32
      %30 = vector.broadcast %cst_12 : f32 to vector<2x8xf32>
      %c0_13 = arith.constant 0 : index
      %c0_14 = arith.constant 0 : index
      %31 = vector.load %arg5[%c0_13, %c0_14] : memref<2x8xf32, #tpu.memory_space<vmem>>, vector<2x8xf32>
      tpu.vector_store %arg5[%c0_13, %c0_14], %30 {strides = array<i32>} : memref<2x8xf32, #tpu.memory_space<vmem>>, vector<2x8xf32>,
    } else {
    }
    %c0 = arith.constant 0 : index
    %c0_1 = arith.constant 0 : index
    %3 = vector.load %arg1[%c0, %c0_1] : memref<16x32xf32, #tpu.memory_space<vmem>>, vector<16x32xf32>
    %c0_2 = arith.constant 0 : index
    %c0_3 = arith.constant 0 : index
    %4 = vector.load %arg2[%c0_2, %c0_3] : memref<32x8xf32, #tpu.memory_space<vmem>>, vector<32x8xf32>
    %cst = arith.constant dense<0.000000e+00> : vector<16x8xf32>
    %5 = tpu.matmul %3, %4, %cst {dimension_numbers = #tpu.dot_dimension_numbers<[1], [0], [0], [1], [0, 0, 1, 1], [], []>} : vector<16x32xf32>, vector<32x8xf32>, vector<16x8xf32> -> vector<16x8xf32>
    %c0_4 = arith.constant 0 : index
    %c0_5 = arith.constant 0 : index
    %6 = vector.load %arg3[%c0_4, %c0_5] : memref<1x8xf32, #tpu.memory_space<vmem>>, vector<1x8xf32>
    %7 = vector.broadcast %6 : vector<1x8xf32> to vector<16x8xf32>
    %8 = arith.addf %5, %7 : vector<16x8xf32>
    %c0_6 = arith.constant 0 : index
    %c0_7 = arith.constant 0 : index
    %9 = vector.load %arg5[%c0_6, %c0_7] : memref<2x8xf32, #tpu.memory_space<vmem>>, vector<2x8xf32>
    %10 = vector.extract_strided_slice %8 {offsets = [0, 0], sizes = [2, 8], strides = [1, 1]} : vector<16x8xf32> to vector<2x8xf32>
    %11 = arith.maximumf %9, %10 : vector<2x8xf32>
    %12 = vector.extract_strided_slice %8 {offsets = [2, 0], sizes = [2, 8], strides = [1, 1]} : vector<16x8xf32> to vector<2x8xf32>
    %13 = arith.maximumf %11, %12 : vector<2x8xf32>
    %14 = vector.extract_strided_slice %8 {offsets = [4, 0], sizes = [2, 8], strides = [1, 1]} : vector<16x8xf32> to vector<2x8xf32>
    %15 = arith.maximumf %13, %14 : vector<2x8xf32>
    %16 = vector.extract_strided_slice %8 {offsets = [6, 0], sizes = [2, 8], strides = [1, 1]} : vector<16x8xf32> to vector<2x8xf32>
    %17 = arith.maximumf %15, %16 : vector<2x8xf32>
    %18 = vector.extract_strided_slice %8 {offsets = [8, 0], sizes = [2, 8], strides = [1, 1]} : vector<16x8xf32> to vector<2x8xf32>
    %19 = arith.maximumf %17, %18 : vector<2x8xf32>
    %20 = vector.extract_strided_slice %8 {offsets = [10, 0], sizes = [2, 8], strides = [1, 1]} : vector<16x8xf32> to vector<2x8xf32>
    %21 = arith.maximumf %19, %20 : vector<2x8xf32>
    %22 = vector.extract_strided_slice %8 {offsets = [12, 0], sizes = [2, 8], strides = [1, 1]} : vector<16x8xf32> to vector<2x8xf32>
    %23 = arith.maximumf %21, %22 : vector<2x8xf32>
    %24 = vector.extract_strided_slice %8 {offsets = [14, 0], sizes = [2, 8], strides = [1, 1]} : vector<16x8xf32> to vector<2x8xf32>
    %25 = arith.maximumf %23, %24 : vector<2x8xf32>
    %c0_8 = arith.constant 0 : index
    %c0_9 = arith.constant 0 : index
    %26 = vector.load %arg5[%c0_8, %c0_9] : memref<2x8xf32, #tpu.memory_space<vmem>>, vector<2x8xf32>
    tpu.vector_store %arg5[%c0_8, %c0_9], %25 {strides = array<i32>} : memref<2x8xf32, #tpu.memory_space<vmem>>, vector<2x8xf32>,
    %c0_i32_10 = arith.constant 0 : i32
    %27 = arith.cmpi eq, %arg0, %c0_i32_10 : i32
    %28 = arith.extui %27 : i1 to i32
    %c0_i32_11 = arith.constant 0 : i32
    %29 = arith.cmpi ne, %28, %c0_i32_11 : i32
    scf.if %29 {
      %c0_12 = arith.constant 0 : index
      %c0_13 = arith.constant 0 : index
      %30 = vector.load %arg5[%c0_12, %c0_13] : memref<2x8xf32, #tpu.memory_space<vmem>>, vector<2x8xf32>
      %c0_14 = arith.constant 0 : index
      %c0_15 = arith.constant 0 : index
      %31 = vector.load %arg4[%c0_14, %c0_15] : memref<2x8xf32, #tpu.memory_space<vmem>>, vector<2x8xf32>
      tpu.vector_store %arg4[%c0_14, %c0_15], %30 {strides = array<i32>} : memref<2x8xf32, #tpu.memory_space<vmem>>, vector<2x8xf32>,
    } else {
    }
    return
  }
  func.func @transform_0(%arg0: i32) -> (i32, i32) {
    %c0_i32 = arith.constant 0 : i32
    %c0_i32_0 = arith.constant 0 : i32
    return %arg0, %c0_i32 : i32, i32
  }
  func.func @transform_1(%arg0: i32) -> (i32, i32) {
    %c0_i32 = arith.constant 0 : i32
    %c0_i32_0 = arith.constant 0 : i32
    %c0_i32_1 = arith.constant 0 : i32
    return %c0_i32, %c0_i32_0 : i32, i32
  }
  func.func @transform_2(%arg0: i32) -> (i32, i32) {
    %c0_i32 = arith.constant 0 : i32
    %c0_i32_0 = arith.constant 0 : i32
    %c0_i32_1 = arith.constant 0 : i32
    return %c0_i32, %c0_i32_0 : i32, i32
  }
  func.func @transform_3(%arg0: i32) -> (i32, i32) {
    %c0_i32 = arith.constant 0 : i32
    %c0_i32_0 = arith.constant 0 : i32
    %c0_i32_1 = arith.constant 0 : i32
    return %c0_i32, %c0_i32_0 : i32, i32
  }
}

</mosaic_0001>

<llo_original>
// kernel: bilstm_maxpool_cls.7
$region0: #{bilstm_maxpool_cls.7}
  #allocation0 [shape = 'u32[]', space=smem, size = 0x4, offset = 0x4, fixed_abs, tag = 'smem constant byte address 0x4 - core index']
  #allocation1 [shape = 'u32[144,128]{1,0:T(1,128)}', space=vmem, size = 0x12000, scoped, tag = 'internal scratch']
  #allocation2 [shape = 'f32[2,8]{1,0:T(2,128)}', space=vmem, size = 0x400, scoped, tag = 'scratch operand']
  %s0 = inlined_call_operand.vmem [shape: f32[16,32], index: 0, kind: input, shape index: {}]
  %s1 = inlined_call_operand.vmem [shape: f32[32,8], index: 1, kind: input, shape index: {}]
  %s2 = inlined_call_operand.vmem [shape: f32[1,8], index: 2, kind: input, shape index: {}]
  %s3 = inlined_call_operand.hbm [shape: f32[2,8], index: 3, kind: output, shape index: {}]
  %s4 = sld [smem:[#allocation0]]
  $region30: #{bilstm_maxpool_cls.7} parent=0
    _
  %s6 = ssub.s32 1, %s4
  %s7 = scalar_select 0, %s6, %s4
  $region1: #{bilstm_maxpool_cls.7} parent=0
    #allocation3 [shape = 'u8[1024]{0}', space=vmem, size = 0x400, scoped, tag = 'output window, operand 0, single buffered']
    #allocation4 [shape = 's32[1]{0}', space=sflag, size = 0x4, scoped, tag = 'scoped memory for bilstm_maxpool_cls.7']
    %8 = vsyncpa [#allocation4], 0
    // Predicated region
    $region2: #{bilstm_maxpool_cls.7} parent=1 // pred_check
      _
    $region3: #{bilstm_maxpool_cls.7} parent=1 // pred_check_branch
      %10 = sbr.rel (0) target = $region5
    $region4: #{bilstm_maxpool_cls.7} parent=1 // pred_region
      _
    $region5: #{bilstm_maxpool_cls.7} parent=1 // pred_fallthru
      _
    // Predicated region
    $region6: #{bilstm_maxpool_cls.7} parent=1 // pred_check
      _
    $region7: #{bilstm_maxpool_cls.7} parent=1 // pred_check_branch
      %12 = sbr.rel (0) target = $region9
    $region8: #{bilstm_maxpool_cls.7} parent=1 // pred_region
      _
    $region9: #{bilstm_maxpool_cls.7} parent=1 // pred_fallthru
      _
    // Predicated region
    $region10: #{bilstm_maxpool_cls.7} parent=1 // pred_check
      _
    $region11: #{bilstm_maxpool_cls.7} parent=1 // pred_check_branch
      %14 = sbr.rel (0) target = $region13
    $region12: #{bilstm_maxpool_cls.7} parent=1 // pred_region
      _
    $region13: #{bilstm_maxpool_cls.7} parent=1 // pred_fallthru
      _
    %p15 = scmp.eq.s32.totalorder 0, 0
    // Predicated region
    $region14: #{bilstm_maxpool_cls.7} parent=1 // pred_check
      %p16 = pneg %p15
    $region15: #{bilstm_maxpool_cls.7} parent=1 // pred_check_branch
      %18 = sbr.rel (%p16) target = $region17
    $region16: #{bilstm_maxpool_cls.7} parent=1 // pred_region
      %vm19 = vcmask 58368
      %20 = vst.msk [vmem:[#allocation2] sm:$0x3] %vm19, -inf
    $region17: #{bilstm_maxpool_cls.7} parent=1 // pred_fallthru
      _
    %v21 = vld [vmem:[%s0] sm:$0xff]
    %v22 = vld [vmem:[%s0 + $0x8] sm:$0xff]
    %v23 = vld [vmem:[%s1] sm:$0xff]
    %v24 = vld [vmem:[%s1 + $0x8] sm:$0xff]
    %v25 = vld [vmem:[%s1 + $0x10] sm:$0xff]
    %v26 = vld [vmem:[%s1 + $0x18] sm:$0xff]
    %v27 = vld [vmem:[%s2] sm:$0x1]
    %v29 = vlaneseq
    %v30 = vshrl.u32 %v29, 7
    %v31 = vsub.s32 0, %v30
    %v32 = vrot.slane %v27, %v31
    %vm34 = vcmask 261120
    %v36 = vsel %vm34, %v21, 0
    %v39 = vsel %vm34, %v22, 0
    %41 = vmatprep.subr.mxu0 0.0
    %42 = vmatpush1.msra.mxu0 %v23
    %43 = vmatprep.subr.mxu0 0.0
    %44 = vmatpush1.msra.mxu0 %v24
    %45 = vmatprep.subr.mxu0 0.0
    %46 = vmatpush1.msra.mxu0 %v25
    %47 = vmatprep.subr.mxu0 0.0
    %48 = vmatpush1.msra.mxu0 %v26
    %49 = vmatprep.subr.mxu0 0.0
    %50 = vmatpush1.msra.mxu0 0.0
    %51 = vmatprep.subr.mxu0 0.0
    %52 = vmatpush1.msra.mxu0 0.0
    %53 = vmatprep.subr.mxu0 0.0
    %54 = vmatpush1.msra.mxu0 0.0
    %55 = vmatprep.subr.mxu0 0.0
    %56 = vmatpush1.msra.mxu0 0.0
    %57 = vmatprep.subr.mxu0 0.0
    %58 = vmatpush1.msra.mxu0 0.0
    %59 = vmatprep.subr.mxu0 0.0
    %60 = vmatpush1.msra.mxu0 0.0
    %61 = vmatprep.subr.mxu0 0.0
    %62 = vmatpush1.msra.mxu0 0.0
    %63 = vmatprep.subr.mxu0 0.0
    %64 = vmatpush1.msra.mxu0 0.0
    %65 = vmatprep.subr.mxu0 0.0
    %66 = vmatpush1.msra.mxu0 0.0
    %67 = vmatprep.subr.mxu0 0.0
    %68 = vmatpush1.msra.mxu0 0.0
    %69 = vmatprep.subr.mxu0 0.0
    %70 = vmatpush1.msra.mxu0 0.0
    %71 = vmatprep.subr.mxu0 0.0
    %72 = vmatpush1.msra.mxu0 0.0
    %73 = vmatprep.subr.mxu0 0.0
    %74 = vmatpush1.msra.mxu0 0.0
    %75 = vmatprep.subr.mxu0 0.0
    %76 = vmatpush1.msra.mxu0 0.0
    %77 = vmatprep.subr.mxu0 0.0
    %78 = vmatpush1.msra.mxu0 0.0
    %79 = vmatprep.subr.mxu0 0.0
    %80 = vmatpush1.msra.mxu0 0.0
    %81 = vmatprep.subr.mxu0 0.0
    %82 = vmatpush1.msra.mxu0 0.0
    %83 = vmatprep.subr.mxu0 0.0
    %84 = vmatpush1.msra.mxu0 0.0
    %85 = vmatprep.subr.mxu0 0.0
    %86 = vmatpush1.msra.mxu0 0.0
    %87 = vmatprep.subr.mxu0 0.0
    %88 = vmatpush1.msra.mxu0 0.0
    %89 = vmatprep.subr.mxu0 0.0
    %90 = vmatpush1.msra.mxu0 0.0
    %91 = vmatprep.subr.mxu0 0.0
    %92 = vmatpush1.msra.mxu0 0.0
    %93 = vmatprep.subr.mxu0 0.0
    %94 = vmatpush1.msra.mxu0 0.0
    %95 = vmatprep.subr.mxu0 0.0
    %96 = vmatpush1.msra.mxu0 0.0
    %97 = vmatprep.subr.mxu0 0.0
    %98 = vmatpush1.msra.mxu0 0.0
    %99 = vmatprep.subr.mxu0 0.0
    %100 = vmatpush1.msra.mxu0 0.0
    %101 = vmatprep.subr.mxu0 0.0
    %102 = vmatpush1.msra.mxu0 0.0
    %103 = vmatprep.subr.mxu0 0.0
    %104 = vmatpush1.msra.mxu0 0.0
    %105 = vmatprep.mubr.f32.mxu0 0.0
    %106 = vmatmul.mubr.f32.gmra.mrb[0].mxu0 %v36
    %v107 = vpop.f32.mrb[0].mxu0
    %v108 = vadd.f32 %v32, %v107
    %v109 = vpop.f32.mrb[0].mxu0
    %110 = vmatprep.mubr.f32.mxu0 0.0
    %111 = vmatmul.mubr.f32.gmra.mrb[0].mxu0 %v39
    %v112 = vpop.f32.mrb[0].mxu0
    %v113 = vadd.f32 %v32, %v112
    %v114 = vpop.f32.mrb[0].mxu0
    %115 = vdwg.mxu0
    %v116 = vld [vmem:[#allocation2] sm:$0x3]
    %v117 = vmax.f32 %v116, %v108
    %v119 = vrot.slane %v108, 2
    %v121 = vmax.f32 %v117, %v119
    %v122 = vrot.slane %v108, 4
    %v124 = vmax.f32 %v121, %v122
    %v125 = vrot.slane %v108, 6
    %v127 = vmax.f32 %v124, %v125
    %v128 = vmax.f32 %v127, %v113
    %v130 = vrot.slane %v113, 2
    %v132 = vmax.f32 %v128, %v130
    %v133 = vrot.slane %v113, 4
    %v135 = vmax.f32 %v132, %v133
    %v136 = vrot.slane %v113, 6
    %v138 = vmax.f32 %v135, %v136
    %vm139 = vcmask 58368
    %140 = vst.msk [vmem:[#allocation2] sm:$0x3] %vm139, %v138
    // Predicated region
    $region18: #{bilstm_maxpool_cls.7} parent=1 // pred_check
      %p141 = pneg %p15
    $region19: #{bilstm_maxpool_cls.7} parent=1 // pred_check_branch
      %143 = sbr.rel (%p141) target = $region21
    $region20: #{bilstm_maxpool_cls.7} parent=1 // pred_region
      %v144 = vld [vmem:[#allocation2] sm:$0x3]
      %145 = vst.msk [vmem:[#allocation3] sm:$0x3] %vm139, %v144
    $region21: #{bilstm_maxpool_cls.7} parent=1 // pred_fallthru
      _
    // Predicated region
    $region22: #{bilstm_maxpool_cls.7} parent=1 // pred_check
      _
    $region23: #{bilstm_maxpool_cls.7} parent=1 // pred_check_branch
      %147 = sbr.rel (0) target = $region25
    $region24: #{bilstm_maxpool_cls.7} parent=1 // pred_region
      %s149 = ssub.s32 32, 32
      %150 = vsyncadd [#allocation4], %s149
      %s152 = sshll.u32 [#allocation3], 4
      %s153 = int_to_ptr.vmem [resolvable:$true] %s152
      %155 = dma.vmem_to_hbm [thread:$0]  %s153, 32, %s3, [#allocation4]
    $region25: #{bilstm_maxpool_cls.7} parent=1 // pred_fallthru
      _
    // Predicated region
    $region26: #{bilstm_maxpool_cls.7} parent=1 // pred_check
      _
    $region27: #{bilstm_maxpool_cls.7} parent=1 // pred_check_branch
      %157 = sbr.rel (0) target = $region29
    $region28: #{bilstm_maxpool_cls.7} parent=1 // pred_region
      %158 = dma.done [#allocation4], 32
    $region29: #{bilstm_maxpool_cls.7} parent=1 // pred_fallthru
      _
    %159 = vsyncpa [#allocation4], 1

// kernel: bilstm_maxpool_cls.4
$region0: #{bilstm_maxpool_cls.4}
  #allocation0 [shape = 'u32[]', space=smem, size = 0x4, offset = 0x4, fixed_abs, tag = 'smem constant byte address 0x4 - core index']
  #allocation1 [shape = 'u32[144,128]{1,0:T(1,128)}', space=vmem, size = 0x12000, scoped, tag = 'internal scratch']
  %s0 = inlined_call_operand.vmem [shape: f32[16,32], index: 0, kind: input, shape index: {}]
  %s1 = inlined_call_operand.vmem [shape: f32[32,128], index: 1, kind: input, shape index: {}]
  %s2 = inlined_call_operand.vmem [shape: f32[1,128], index: 2, kind: input, shape index: {}]
  %s3 = inlined_call_operand.vmem [shape: f32[16,64], index: 3, kind: output, shape index: {0}]
  %s4 = inlined_call_operand.vmem [shape: f32[16,64], index: 4, kind: output, shape index: {1}]
  %5 = xla_tuple %s3, %s4
  %s6 = sld [smem:[#allocation0]]
  $region30: #{bilstm_maxpool_cls.4} parent=0
    _
  %s8 = ssub.s32 1, %s6
  %s9 = scalar_select 0, %s8, %s6
  // Predicated region
  $region2: #{bilstm_maxpool_cls.4} parent=0 // pred_check
    _
  $region3: #{bilstm_maxpool_cls.4} parent=0 // pred_check_branch
    %11 = sbr.rel (0) target = $region5
  $region4: #{bilstm_maxpool_cls.4} parent=0 // pred_region
    _
  $region5: #{bilstm_maxpool_cls.4} parent=0 // pred_fallthru
    _
  // Predicated region
  $region6: #{bilstm_maxpool_cls.4} parent=0 // pred_check
    _
  $region7: #{bilstm_maxpool_cls.4} parent=0 // pred_check_branch
    %13 = sbr.rel (0) target = $region9
  $region8: #{bilstm_maxpool_cls.4} parent=0 // pred_region
    _
  $region9: #{bilstm_maxpool_cls.4} parent=0 // pred_fallthru
    _
  // Predicated region
  $region10: #{bilstm_maxpool_cls.4} parent=0 // pred_check
    _
  $region11: #{bilstm_maxpool_cls.4} parent=0 // pred_check_branch
    %15 = sbr.rel (0) target = $region13
  $region12: #{bilstm_maxpool_cls.4} parent=0 // pred_region
    _
  $region13: #{bilstm_maxpool_cls.4} parent=0 // pred_fallthru
    _
  %v16 = vld [vmem:[%s0] sm:$0xff]
  %v17 = vld [vmem:[%s0 + $0x8] sm:$0xff]
  %v18 = vld [vmem:[%s1] sm:$0xff]
  %v19 = vld [vmem:[%s1 + $0x8] sm:$0xff]
  %v20 = vld [vmem:[%s1 + $0x10] sm:$0xff]
  %v21 = vld [vmem:[%s1 + $0x18] sm:$0xff]
  %v22 = vld [vmem:[%s2] sm:$0x1]
  %v24 = vlaneseq
  %v25 = vshrl.u32 %v24, 7
  %v26 = vsub.s32 0, %v25
  %v27 = vrot.slane %v22, %v26
  %vm29 = vcmask 261120
  %v31 = vsel %vm29, %v16, 0
  %v34 = vsel %vm29, %v17, 0
  %36 = vmatprep.subr.mxu0 0.0
  %37 = vmatpush1.msra.mxu0 %v18
  %38 = vmatprep.subr.mxu0 0.0
  %39 = vmatpush1.msra.mxu0 %v19
  %40 = vmatprep.subr.mxu0 0.0
  %41 = vmatpush1.msra.mxu0 %v20
  %42 = vmatprep.subr.mxu0 0.0
  %43 = vmatpush1.msra.mxu0 %v21
  %44 = vmatprep.subr.mxu0 0.0
  %45 = vmatpush1.msra.mxu0 0.0
  %46 = vmatprep.subr.mxu0 0.0
  %47 = vmatpush1.msra.mxu0 0.0
  %48 = vmatprep.subr.mxu0 0.0
  %49 = vmatpush1.msra.mxu0 0.0
  %50 = vmatprep.subr.mxu0 0.0
  %51 = vmatpush1.msra.mxu0 0.0
  %52 = vmatprep.subr.mxu0 0.0
  %53 = vmatpush1.msra.mxu0 0.0
  %54 = vmatprep.subr.mxu0 0.0
  %55 = vmatpush1.msra.mxu0 0.0
  %56 = vmatprep.subr.mxu0 0.0
  %57 = vmatpush1.msra.mxu0 0.0
  %58 = vmatprep.subr.mxu0 0.0
  %59 = vmatpush1.msra.mxu0 0.0
  %60 = vmatprep.subr.mxu0 0.0
  %61 = vmatpush1.msra.mxu0 0.0
  %62 = vmatprep.subr.mxu0 0.0
  %63 = vmatpush1.msra.mxu0 0.0
  %64 = vmatprep.subr.mxu0 0.0
  %65 = vmatpush1.msra.mxu0 0.0
  %66 = vmatprep.subr.mxu0 0.0
  %67 = vmatpush1.msra.mxu0 0.0
  %68 = vmatprep.subr.mxu0 0.0
  %69 = vmatpush1.msra.mxu0 0.0
  %70 = vmatprep.subr.mxu0 0.0
  %71 = vmatpush1.msra.mxu0 0.0
  %72 = vmatprep.subr.mxu0 0.0
  %73 = vmatpush1.msra.mxu0 0.0
  %74 = vmatprep.subr.mxu0 0.0
  %75 = vmatpush1.msra.mxu0 0.0
  %76 = vmatprep.subr.mxu0 0.0
  %77 = vmatpush1.msra.mxu0 0.0
  %78 = vmatprep.subr.mxu0 0.0
  %79 = vmatpush1.msra.mxu0 0.0
  %80 = vmatprep.subr.mxu0 0.0
  %81 = vmatpush1.msra.mxu0 0.0
  %82 = vmatprep.subr.mxu0 0.0
  %83 = vmatpush1.msra.mxu0 0.0
  %84 = vmatprep.subr.mxu0 0.0
  %85 = vmatpush1.msra.mxu0 0.0
  %86 = vmatprep.subr.mxu0 0.0
  %87 = vmatpush1.msra.mxu0 0.0
  %88 = vmatprep.subr.mxu0 0.0
  %89 = vmatpush1.msra.mxu0 0.0
  %90 = vmatprep.subr.mxu0 0.0
  %91 = vmatpush1.msra.mxu0 0.0
  %92 = vmatprep.subr.mxu0 0.0
  %93 = vmatpush1.msra.mxu0 0.0
  %94 = vmatprep.subr.mxu0 0.0
  %95 = vmatpush1.msra.mxu0 0.0
  %96 = vmatprep.subr.mxu0 0.0
  %97 = vmatpush1.msra.mxu0 0.0
  %98 = vmatprep.subr.mxu0 0.0
  %99 = vmatpush1.msra.mxu0 0.0
  %100 = vmatprep.mubr.f32.mxu0 0.0
  %101 = vmatmul.mubr.f32.gmra.mrb[0].mxu0 %v31
  %v102 = vpop.f32.mrb[0].mxu0
  %v103 = vadd.f32 %v27, %v102
  %v104 = vpop.f32.mrb[0].mxu0
  %105 = vmatprep.mubr.f32.mxu0 0.0
  %106 = vmatmul.mubr.f32.gmra.mrb[0].mxu0 %v34
  %v107 = vpop.f32.mrb[0].mxu0
  %v108 = vadd.f32 %v27, %v107
  %v109 = vpop.f32.mrb[0].mxu0
  %110 = vdwg.mxu0
  %vm111 = vcmask 523264
  %112 = vst.msk [vmem:[%s3] sm:$0xff] %vm111, %v103
  %113 = vst.msk [vmem:[%s3 + $0x8] sm:$0xff] %vm111, %v108
  %116 = vrot.lane.b32.xlu0 %v103, 64
  %v117 = vpop.permute.xlu0 %116
  %118 = vrot.lane.b32.xlu0 %v108, 64
  %v119 = vpop.permute.xlu0 %118
  %122 = vst.msk [vmem:[%s4] sm:$0xff] %vm111, %v117
  %123 = vst.msk [vmem:[%s4 + $0x8] sm:$0xff] %vm111, %v119
  // Predicated region
  $region14: #{bilstm_maxpool_cls.4} parent=0 // pred_check
    _
  $region15: #{bilstm_maxpool_cls.4} parent=0 // pred_check_branch
    %125 = sbr.rel (0) target = $region17
  $region16: #{bilstm_maxpool_cls.4} parent=0 // pred_region
    _
  $region17: #{bilstm_maxpool_cls.4} parent=0 // pred_fallthru
    _
  // Predicated region
  $region18: #{bilstm_maxpool_cls.4} parent=0 // pred_check
    _
  $region19: #{bilstm_maxpool_cls.4} parent=0 // pred_check_branch
    %127 = sbr.rel (0) target = $region21
  $region20: #{bilstm_maxpool_cls.4} parent=0 // pred_region
    _
  $region21: #{bilstm_maxpool_cls.4} parent=0 // pred_fallthru
    _
  // Predicated region
  $region22: #{bilstm_maxpool_cls.4} parent=0 // pred_check
    _
  $region23: #{bilstm_maxpool_cls.4} parent=0 // pred_check_branch
    %129 = sbr.rel (0) target = $region25
  $region24: #{bilstm_maxpool_cls.4} parent=0 // pred_region
    _
  $region25: #{bilstm_maxpool_cls.4} parent=0 // pred_fallthru
    _
  // Predicated region
  $region26: #{bilstm_maxpool_cls.4} parent=0 // pred_check
    _
  $region27: #{bilstm_maxpool_cls.4} parent=0 // pred_check_branch
    %131 = sbr.rel (0) target = $region29
  $region28: #{bilstm_maxpool_cls.4} parent=0 // pred_region
    _
  $region29: #{bilstm_maxpool_cls.4} parent=0 // pred_fallthru
    _

// kernel: bilstm_maxpool_cls.5
$region0: #{bilstm_maxpool_cls.5}
  #allocation0 [shape = 'u32[]', space=smem, size = 0x4, offset = 0x4, fixed_abs, tag = 'smem constant byte address 0x4 - core index']
  #allocation1 [shape = 'u32[144,128]{1,0:T(1,128)}', space=vmem, size = 0x12000, scoped, tag = 'internal scratch']
  #allocation2 [shape = 'f32[2,16]{1,0:T(2,128)}', space=vmem, size = 0x400, scoped, tag = 'scratch operand']
  #allocation3 [shape = 'f32[2,16]{1,0:T(2,128)}', space=vmem, size = 0x400, scoped, tag = 'scratch operand']
  %s0 = inlined_call_operand.vmem [shape: f32[16,64], index: 0, kind: input, shape index: {}]
  %s1 = inlined_call_operand.vmem [shape: f32[16,64], index: 1, kind: input, shape index: {}]
  %s2 = inlined_call_operand.vmem [shape: s32[2,1], index: 2, kind: input, shape index: {}]
  %s3 = inlined_call_operand.vmem [shape: f32[16,16], index: 3, kind: output, shape index: {}]
  %s4 = sld [smem:[#allocation0]]
  $region26: #{bilstm_maxpool_cls.5} parent=0
    _
  %s6 = ssub.s32 1, %s4
  %s7 = scalar_select 0, %s6, %s4
  // Predicated region
  $region2: #{bilstm_maxpool_cls.5} parent=0 // pred_check
    _
  $region3: #{bilstm_maxpool_cls.5} parent=0 // pred_check_branch
    %9 = sbr.rel (0) target = $region5
  $region4: #{bilstm_maxpool_cls.5} parent=0 // pred_region
    _
  $region5: #{bilstm_maxpool_cls.5} parent=0 // pred_fallthru
    _
  // Predicated region
  $region6: #{bilstm_maxpool_cls.5} parent=0 // pred_check
    _
  $region7: #{bilstm_maxpool_cls.5} parent=0 // pred_check_branch
    %11 = sbr.rel (0) target = $region9
  $region8: #{bilstm_maxpool_cls.5} parent=0 // pred_region
    _
  $region9: #{bilstm_maxpool_cls.5} parent=0 // pred_fallthru
    _
  // Predicated region
  $region10: #{bilstm_maxpool_cls.5} parent=0 // pred_check
    _
  $region11: #{bilstm_maxpool_cls.5} parent=0 // pred_check_branch
    %13 = sbr.rel (0) target = $region13
  $region12: #{bilstm_maxpool_cls.5} parent=0 // pred_region
    _
  $region13: #{bilstm_maxpool_cls.5} parent=0 // pred_fallthru
    _
  %p14 = scmp.eq.s32.totalorder 0, 0
  // Predicated region
  $region14: #{bilstm_maxpool_cls.5} parent=0 // pred_check
    %p15 = pneg %p14
  $region15: #{bilstm_maxpool_cls.5} parent=0 // pred_check_branch
    %17 = sbr.rel (%p15) target = $region17
  $region16: #{bilstm_maxpool_cls.5} parent=0 // pred_region
    %vm18 = vcmask 123904
    %19 = vst.msk [vmem:[#allocation2] sm:$0x3] %vm18, 0.0
    %20 = vst.msk [vmem:[#allocation3] sm:$0x3] %vm18, 0.0
  $region17: #{bilstm_maxpool_cls.5} parent=0 // pred_fallthru
    _
  %v21 = vld [vmem:[%s1] sm:$0xff]
  %v22 = vld [vmem:[%s1 + $0x8] sm:$0xff]
  %v23 = vld [vmem:[%s2] sm:$0x3]
  %s24 = smul.u32 0, 8
  %v25 = vld [vmem:[%s0] sm:$0x3]
  %v26 = vld [vmem:[#allocation2] sm:$0x3]
  %vm27 = vcmask 130048
  %v29 = vsel %vm27, %v26, 0
  %31 = vmatprep.subr.mxu0 0.0
  %32 = vmatpush1.msra.mxu0 %v21
  %33 = vmatprep.subr.mxu0 0.0
  %34 = vmatpush1.msra.mxu0 %v22
  %35 = vmatprep.subr.mxu0 0.0
  %36 = vmatpush1.msra.mxu0 0.0
  %37 = vmatprep.subr.mxu0 0.0
  %38 = vmatpush1.msra.mxu0 0.0
  %39 = vmatprep.subr.mxu0 0.0
  %40 = vmatpush1.msra.mxu0 0.0
  %41 = vmatprep.subr.mxu0 0.0
  %42 = vmatpush1.msra.mxu0 0.0
  %43 = vmatprep.subr.mxu0 0.0
  %44 = vmatpush1.msra.mxu0 0.0
  %45 = vmatprep.subr.mxu0 0.0
  %46 = vmatpush1.msra.mxu0 0.0
  %47 = vmatprep.subr.mxu0 0.0
  %48 = vmatpush1.msra.mxu0 0.0
  %49 = vmatprep.subr.mxu0 0.0
  %50 = vmatpush1.msra.mxu0 0.0
  %51 = vmatprep.subr.mxu0 0.0
  %52 = vmatpush1.msra.mxu0 0.0
  %53 = vmatprep.subr.mxu0 0.0
  %54 = vmatpush1.msra.mxu0 0.0
  %55 = vmatprep.subr.mxu0 0.0
  %56 = vmatpush1.msra.mxu0 0.0
  %57 = vmatprep.subr.mxu0 0.0
  %58 = vmatpush1.msra.mxu0 0.0
  %59 = vmatprep.subr.mxu0 0.0
  %60 = vmatpush1.msra.mxu0 0.0
  %61 = vmatprep.subr.mxu0 0.0
  %62 = vmatpush1.msra.mxu0 0.0
  %63 = vmatprep.subr.mxu0 0.0
  %64 = vmatpush1.msra.mxu0 0.0
  %65 = vmatprep.subr.mxu0 0.0
  %66 = vmatpush1.msra.mxu0 0.0
  %67 = vmatprep.subr.mxu0 0.0
  %68 = vmatpush1.msra.mxu0 0.0
  %69 = vmatprep.subr.mxu0 0.0
  %70 = vmatpush1.msra.mxu0 0.0
  %71 = vmatprep.subr.mxu0 0.0
  %72 = vmatpush1.msra.mxu0 0.0
  %73 = vmatprep.subr.mxu0 0.0
  %74 = vmatpush1.msra.mxu0 0.0
  %75 = vmatprep.subr.mxu0 0.0
  %76 = vmatpush1.msra.mxu0 0.0
  %77 = vmatprep.subr.mxu0 0.0
  %78 = vmatpush1.msra.mxu0 0.0
  %79 = vmatprep.subr.mxu0 0.0
  %80 = vmatpush1.msra.mxu0 0.0
  %81 = vmatprep.subr.mxu0 0.0
  %82 = vmatpush1.msra.mxu0 0.0
  %83 = vmatprep.subr.mxu0 0.0
  %84 = vmatpush1.msra.mxu0 0.0
  %85 = vmatprep.subr.mxu0 0.0
  %86 = vmatpush1.msra.mxu0 0.0
  %87 = vmatprep.subr.mxu0 0.0
  %88 = vmatpush1.msra.mxu0 0.0
  %89 = vmatprep.subr.mxu0 0.0
  %90 = vmatpush1.msra.mxu0 0.0
  %91 = vmatprep.subr.mxu0 0.0
  %92 = vmatpush1.msra.mxu0 0.0
  %93 = vmatprep.subr.mxu0 0.0
  %94 = vmatpush1.msra.mxu0 0.0
  %95 = vmatprep.mubr.f32.mxu0 0.0
  %96 = vmatmul.mubr.f32.gmra.mrb[0].mxu0 %v29
  %v97 = vpop.f32.mrb[0].mxu0
  %v98 = vadd.f32 0.0, %v97
  %v99 = vpop.f32.mrb[0].mxu0
  %100 = vdwg.mxu0
  %v101 = vadd.f32 %v25, %v98
  %v102 = vxor.u32 %v101, 2147483648
  %v103 = vmul.f32 %v102, 1.442695
  %v104 = vpow.pop %v103
  %v105 = vadd.f32 %v104, 1.0
  %v106 = vrcp.pop %v105
  %v107 = vmul.f32 1.0, %v106
  %v108 = vtanh.pop %v101
  %v109 = vld [vmem:[#allocation3] sm:$0x3]
  %111 = vrot.lane.b32.xlu0 %v109, 16
  %v112 = vpop.permute.xlu0 %111
  %v114 = vmul.f32 %v107, %v112
  %116 = vrot.lane.b32.xlu0 %v108, 80
  %v117 = vpop.permute.xlu0 %116
  %v119 = vmul.f32 %v107, %v117
  %121 = vrot.lane.b32.xlu0 %v119, 16
  %v122 = vpop.permute.xlu0 %121
  %v124 = vadd.f32 %v114, %v122
  %v125 = vtanh.pop %v124
  %127 = vrot.lane.b32.xlu0 %v125, 16
  %v128 = vpop.permute.xlu0 %127
  %v130 = vmul.f32 %v107, %v128
  %v131 = vstv %s24
  %vm132 = vcmp.lt.s32.totalorder %v131, %v23
  %v133 = vsel %vm132, 1, 0
  %134 = vset.pattern.permute.xlu0 0
  %135 = vperm.xlu0 %134, %v133
  %v136 = vpop.permute.xlu0 %135
  %vm137 = vcmp.eq.s32.totalorder %v136, 1
  %v138 = vsel %vm137, %v124, %v112
  %140 = vrot.lane.b32.xlu0 %v138, 112
  %v141 = vpop.permute.xlu0 %140
  %vm143 = vcmask 123904
  %144 = vst.msk [vmem:[#allocation3] sm:$0x3] %vm143, %v141
  %v145 = vld [vmem:[#allocation2] sm:$0x3]
  %147 = vrot.lane.b32.xlu0 %v145, 32
  %v148 = vpop.permute.xlu0 %147
  %v150 = vsel %vm137, %v130, %v148
  %152 = vrot.lane.b32.xlu0 %v150, 96
  %v153 = vpop.permute.xlu0 %152
  %155 = vst.msk [vmem:[#allocation2] sm:$0x3] %vm143, %v153
  %v156 = vsel %vm137, %v130, 0.0
  %158 = vrot.lane.b32.xlu0 %v156, 96
  %v159 = vpop.permute.xlu0 %158
  %161 = vst.msk [vmem:[%s3] sm:$0x3] %vm143, %v159
  %s162 = sadd.s32 %s24, 1
  %v163 = vld [vmem:[%s0 + $0x2] sm:$0x3]
  %v164 = vld [vmem:[#allocation2] sm:$0x3]
  %v166 = vsel %vm27, %v164, 0
  %168 = vmatprep.subr.mxu0 0.0
  %169 = vmatpush1.msra.mxu0 %v21
  %170 = vmatprep.subr.mxu0 0.0
  %171 = vmatpush1.msra.mxu0 %v22
  %172 = vmatprep.subr.mxu0 0.0
  %173 = vmatpush1.msra.mxu0 0.0
  %174 = vmatprep.subr.mxu0 0.0
  %175 = vmatpush1.msra.mxu0 0.0
  %176 = vmatprep.subr.mxu0 0.0
  %177 = vmatpush1.msra.mxu0 0.0
  %178 = vmatprep.subr.mxu0 0.0
  %179 = vmatpush1.msra.mxu0 0.0
  %180 = vmatprep.subr.mxu0 0.0
  %181 = vmatpush1.msra.mxu0 0.0
  %182 = vmatprep.subr.mxu0 0.0
  %183 = vmatpush1.msra.mxu0 0.0
  %184 = vmatprep.subr.mxu0 0.0
  %185 = vmatpush1.msra.mxu0 0.0
  %186 = vmatprep.subr.mxu0 0.0
  %187 = vmatpush1.msra.mxu0 0.0
  %188 = vmatprep.subr.mxu0 0.0
  %189 = vmatpush1.msra.mxu0 0.0
  %190 = vmatprep.subr.mxu0 0.0
  %191 = vmatpush1.msra.mxu0 0.0
  %192 = vmatprep.subr.mxu0 0.0
  %193 = vmatpush1.msra.mxu0 0.0
  %194 = vmatprep.subr.mxu0 0.0
  %195 = vmatpush1.msra.mxu0 0.0
  %196 = vmatprep.subr.mxu0 0.0
  %197 = vmatpush1.msra.mxu0 0.0
  %198 = vmatprep.subr.mxu0 0.0
  %199 = vmatpush1.msra.mxu0 0.0
  %200 = vmatprep.subr.mxu0 0.0
  %201 = vmatpush1.msra.mxu0 0.0
  %202 = vmatprep.subr.mxu0 0.0
  %203 = vmatpush1.msra.mxu0 0.0
  %204 = vmatprep.subr.mxu0 0.0
  %205 = vmatpush1.msra.mxu0 0.0
  %206 = vmatprep.subr.mxu0 0.0
  %207 = vmatpush1.msra.mxu0 0.0
  %208 = vmatprep.subr.mxu0 0.0
  %209 = vmatpush1.msra.mxu0 0.0
  %210 = vmatprep.subr.mxu0 0.0
  %211 = vmatpush1.msra.mxu0 0.0
  %212 = vmatprep.subr.mxu0 0.0
  %213 = vmatpush1.msra.mxu0 0.0
  %214 = vmatprep.subr.mxu0 0.0
  %215 = vmatpush1.msra.mxu0 0.0
  %216 = vmatprep.subr.mxu0 0.0
  %217 = vmatpush1.msra.mxu0 0.0
  %218 = vmatprep.subr.mxu0 0.0
  %219 = vmatpush1.msra.mxu0 0.0
  %220 = vmatprep.subr.mxu0 0.0
  %221 = vmatpush1.msra.mxu0 0.0
  %222 = vmatprep.subr.mxu0 0.0
  %223 = vmatpush1.msra.mxu0 0.0
  %224 = vmatprep.subr.mxu0 0.0
  %225 = vmatpush1.msra.mxu0 0.0
  %226 = vmatprep.subr.mxu0 0.0
  %227 = vmatpush1.msra.mxu0 0.0
  %228 = vmatprep.subr.mxu0 0.0
  %229 = vmatpush1.msra.mxu0 0.0
  %230 = vmatprep.subr.mxu0 0.0
  %231 = vmatpush1.msra.mxu0 0.0
  %232 = vmatprep.mubr.f32.mxu0 0.0
  %233 = vmatmul.mubr.f32.gmra.mrb[0].mxu0 %v166
  %v234 = vpop.f32.mrb[0].mxu0
  %v235 = vadd.f32 0.0, %v234
  %v236 = vpop.f32.mrb[0].mxu0
  %237 = vdwg.mxu0
  %v238 = vadd.f32 %v163, %v235
  %v239 = vxor.u32 %v238, 2147483648
  %v240 = vmul.f32 %v239, 1.442695
  %v241 = vpow.pop %v240
  %v242 = vadd.f32 %v241, 1.0
  %v243 = vrcp.pop %v242
  %v244 = vmul.f32 1.0, %v243
  %v245 = vtanh.pop %v238
  %v246 = vld [vmem:[#allocation3] sm:$0x3]
  %248 = vrot.lane.b32.xlu0 %v246, 16
  %v249 = vpop.permute.xlu0 %248
  %v251 = vmul.f32 %v244, %v249
  %253 = vrot.lane.b32.xlu0 %v245, 80
  %v254 = vpop.permute.xlu0 %253
  %v256 = vmul.f32 %v244, %v254
  %258 = vrot.lane.b32.xlu0 %v256, 16
  %v259 = vpop.permute.xlu0 %258
  %v261 = vadd.f32 %v251, %v259
  %v262 = vtanh.pop %v261
  %264 = vrot.lane.b32.xlu0 %v262, 16
  %v265 = vpop.permute.xlu0 %264
  %v267 = vmul.f32 %v244, %v265
  %v268 = vstv %s162
  %vm269 = vcmp.lt.s32.totalorder %v268, %v23
  %v270 = vsel %vm269, 1, 0
  %271 = vset.pattern.permute.xlu0 0
  %272 = vperm.xlu0 %271, %v270
  %v273 = vpop.permute.xlu0 %272
  %vm274 = vcmp.eq.s32.totalorder %v273, 1
  %v275 = vsel %vm274, %v261, %v249
  %277 = vrot.lane.b32.xlu0 %v275, 112
  %v278 = vpop.permute.xlu0 %277
  %280 = vst.msk [vmem:[#allocation3] sm:$0x3] %vm143, %v278
  %v281 = vld [vmem:[#allocation2] sm:$0x3]
  %283 = vrot.lane.b32.xlu0 %v281, 32
  %v284 = vpop.permute.xlu0 %283
  %v286 = vsel %vm274, %v267, %v284
  %288 = vrot.lane.b32.xlu0 %v286, 96
  %v289 = vpop.permute.xlu0 %288
  %291 = vst.msk [vmem:[#allocation2] sm:$0x3] %vm143, %v289
  %v292 = vsel %vm274, %v267, 0.0
  %294 = vrot.lane.b32.xlu0 %v292, 96
  %v295 = vpop.permute.xlu0 %294
  %297 = vst.msk [vmem:[%s3 + $0x2] sm:$0x3] %vm143, %v295
  %s298 = sadd.s32 %s24, 2
  %v299 = vld [vmem:[%s0 + $0x4] sm:$0x3]
  %v300 = vld [vmem:[#allocation2] sm:$0x3]
  %v302 = vsel %vm27, %v300, 0
  %304 = vmatprep.subr.mxu0 0.0
  %305 = vmatpush1.msra.mxu0 %v21
  %306 = vmatprep.subr.mxu0 0.0
  %307 = vmatpush1.msra.mxu0 %v22
  %308 = vmatprep.subr.mxu0 0.0
  %309 = vmatpush1.msra.mxu0 0.0
  %310 = vmatprep.subr.mxu0 0.0
  %311 = vmatpush1.msra.mxu0 0.0
  %312 = vmatprep.subr.mxu0 0.0
  %313 = vmatpush1.msra.mxu0 0.0
  %314 = vmatprep.subr.mxu0 0.0
  %315 = vmatpush1.msra.mxu0 0.0
  %316 = vmatprep.subr.mxu0 0.0
  %317 = vmatpush1.msra.mxu0 0.0
  %318 = vmatprep.subr.mxu0 0.0
  %319 = vmatpush1.msra.mxu0 0.0
  %320 = vmatprep.subr.mxu0 0.0
  %321 = vmatpush1.msra.mxu0 0.0
  %322 = vmatprep.subr.mxu0 0.0
  %323 = vmatpush1.msra.mxu0 0.0
  %324 = vmatprep.subr.mxu0 0.0
  %325 = vmatpush1.msra.mxu0 0.0
  %326 = vmatprep.subr.mxu0 0.0
  %327 = vmatpush1.msra.mxu0 0.0
  %328 = vmatprep.subr.mxu0 0.0
  %329 = vmatpush1.msra.mxu0 0.0
  %330 = vmatprep.subr.mxu0 0.0
  %331 = vmatpush1.msra.mxu0 0.0
  %332 = vmatprep.subr.mxu0 0.0
  %333 = vmatpush1.msra.mxu0 0.0
  %334 = vmatprep.subr.mxu0 0.0
  %335 = vmatpush1.msra.mxu0 0.0
  %336 = vmatprep.subr.mxu0 0.0
  %337 = vmatpush1.msra.mxu0 0.0
  %338 = vmatprep.subr.mxu0 0.0
  %339 = vmatpush1.msra.mxu0 0.0
  %340 = vmatprep.subr.mxu0 0.0
  %341 = vmatpush1.msra.mxu0 0.0
  %342 = vmatprep.subr.mxu0 0.0
  %343 = vmatpush1.msra.mxu0 0.0
  %344 = vmatprep.subr.mxu0 0.0
  %345 = vmatpush1.msra.mxu0 0.0
  %346 = vmatprep.subr.mxu0 0.0
  %347 = vmatpush1.msra.mxu0 0.0
  %348 = vmatprep.subr.mxu0 0.0
  %349 = vmatpush1.msra.mxu0 0.0
  %350 = vmatprep.subr.mxu0 0.0
  %351 = vmatpush1.msra.mxu0 0.0
  %352 = vmatprep.subr.mxu0 0.0
  %353 = vmatpush1.msra.mxu0 0.0
  %354 = vmatprep.subr.mxu0 0.0
  %355 = vmatpush1.msra.mxu0 0.0
  %356 = vmatprep.subr.mxu0 0.0
  %357 = vmatpush1.msra.mxu0 0.0
  %358 = vmatprep.subr.mxu0 0.0
  %359 = vmatpush1.msra.mxu0 0.0
  %360 = vmatprep.subr.mxu0 0.0
  %361 = vmatpush1.msra.mxu0 0.0
  %362 = vmatprep.subr.mxu0 0.0
  %363 = vmatpush1.msra.mxu0 0.0
  %364 = vmatprep.subr.mxu0 0.0
  %365 = vmatpush1.msra.mxu0 0.0
  %366 = vmatprep.subr.mxu0 0.0
  %367 = vmatpush1.msra.mxu0 0.0
  %368 = vmatprep.mubr.f32.mxu0 0.0
  %369 = vmatmul.mubr.f32.gmra.mrb[0].mxu0 %v302
  %v370 = vpop.f32.mrb[0].mxu0
  %v371 = vadd.f32 0.0, %v370
  %v372 = vpop.f32.mrb[0].mxu0
  %373 = vdwg.mxu0
  %v374 = vadd.f32 %v299, %v371
  %v375 = vxor.u32 %v374, 2147483648
  %v376 = vmul.f32 %v375, 1.442695
  %v377 = vpow.pop %v376
  %v378 = vadd.f32 %v377, 1.0
  %v379 = vrcp.pop %v378
  %v380 = vmul.f32 1.0, %v379
  %v381 = vtanh.pop %v374
  %v382 = vld [vmem:[#allocation3] sm:$0x3]
  %384 = vrot.lane.b32.xlu0 %v382, 16
  %v385 = vpop.permute.xlu0 %384
  %v387 = vmul.f32 %v380, %v385
  %389 = vrot.lane.b32.xlu0 %v381, 80
  %v390 = vpop.permute.xlu0 %389
  %v392 = vmul.f32 %v380, %v390
  %394 = vrot.lane.b32.xlu0 %v392, 16
  %v395 = vpop.permute.xlu0 %394
  %v397 = vadd.f32 %v387, %v395
  %v398 = vtanh.pop %v397
  %400 = vrot.lane.b32.xlu0 %v398, 16
  %v401 = vpop.permute.xlu0 %400
  %v403 = vmul.f32 %v380, %v401
  %v404 = vstv %s298
  %vm405 = vcmp.lt.s32.totalorder %v404, %v23
  %v406 = vsel %vm405, 1, 0
  %407 = vset.pattern.permute.xlu0 0
  %408 = vperm.xlu0 %407, %v406
  %v409 = vpop.permute.xlu0 %408
  %vm410 = vcmp.eq.s32.totalorder %v409, 1
  %v411 = vsel %vm410, %v397, %v385
  %413 = vrot.lane.b32.xlu0 %v411, 112
  %v414 = vpop.permute.xlu0 %413
  %416 = vst.msk [vmem:[#allocation3] sm:$0x3] %vm143, %v414
  %v417 = vld [vmem:[#allocation2] sm:$0x3]
  %419 = vrot.lane.b32.xlu0 %v417, 32
  %v420 = vpop.permute.xlu0 %419
  %v422 = vsel %vm410, %v403, %v420
  %424 = vrot.lane.b32.xlu0 %v422, 96
  %v425 = vpop.permute.xlu0 %424
  %427 = vst.msk [vmem:[#allocation2] sm:$0x3] %vm143, %v425
  %v428 = vsel %vm410, %v403, 0.0
  %430 = vrot.lane.b32.xlu0 %v428, 96
  %v431 = vpop.permute.xlu0 %430
  %433 = vst.msk [vmem:[%s3 + $0x4] sm:$0x3] %vm143, %v431
  %s434 = sadd.s32 %s24, 3
  %v435 = vld [vmem:[%s0 + $0x6] sm:$0x3]
  %v436 = vld [vmem:[#allocation2] sm:$0x3]
  %v438 = vsel %vm27, %v436, 0
  %440 = vmatprep.subr.mxu0 0.0
  %441 = vmatpush1.msra.mxu0 %v21
  %442 = vmatprep.subr.mxu0 0.0
  %443 = vmatpush1.msra.mxu0 %v22
  %444 = vmatprep.subr.mxu0 0.0
  %445 = vmatpush1.msra.mxu0 0.0
  %446 = vmatprep.subr.mxu0 0.0
  %447 = vmatpush1.msra.mxu0 0.0
  %448 = vmatprep.subr.mxu0 0.0
  %449 = vmatpush1.msra.mxu0 0.0
  %450 = vmatprep.subr.mxu0 0.0
  %451 = vmatpush1.msra.mxu0 0.0
  %452 = vmatprep.subr.mxu0 0.0
  %453 = vmatpush1.msra.mxu0 0.0
  %454 = vmatprep.subr.mxu0 0.0
  %455 = vmatpush1.msra.mxu0 0.0
  %456 = vmatprep.subr.mxu0 0.0
  %457 = vmatpush1.msra.mxu0 0.0
  %458 = vmatprep.subr.mxu0 0.0
  %459 = vmatpush1.msra.mxu0 0.0
  %460 = vmatprep.subr.mxu0 0.0
  %461 = vmatpush1.msra.mxu0 0.0
  %462 = vmatprep.subr.mxu0 0.0
  %463 = vmatpush1.msra.mxu0 0.0
  %464 = vmatprep.subr.mxu0 0.0
  %465 = vmatpush1.msra.mxu0 0.0
  %466 = vmatprep.subr.mxu0 0.0
  %467 = vmatpush1.msra.mxu0 0.0
  %468 = vmatprep.subr.mxu0 0.0
  %469 = vmatpush1.msra.mxu0 0.0
  %470 = vmatprep.subr.mxu0 0.0
  %471 = vmatpush1.msra.mxu0 0.0
  %472 = vmatprep.subr.mxu0 0.0
  %473 = vmatpush1.msra.mxu0 0.0
  %474 = vmatprep.subr.mxu0 0.0
  %475 = vmatpush1.msra.mxu0 0.0
  %476 = vmatprep.subr.mxu0 0.0
  %477 = vmatpush1.msra.mxu0 0.0
  %478 = vmatprep.subr.mxu0 0.0
  %479 = vmatpush1.msra.mxu0 0.0
  %480 = vmatprep.subr.mxu0 0.0
  %481 = vmatpush1.msra.mxu0 0.0
  %482 = vmatprep.subr.mxu0 0.0
  %483 = vmatpush1.msra.mxu0 0.0
  %484 = vmatprep.subr.mxu0 0.0
  %485 = vmatpush1.msra.mxu0 0.0
  %486 = vmatprep.subr.mxu0 0.0
  %487 = vmatpush1.msra.mxu0 0.0
  %488 = vmatprep.subr.mxu0 0.0
  %489 = vmatpush1.msra.mxu0 0.0
  %490 = vmatprep.subr.mxu0 0.0
  %491 = vmatpush1.msra.mxu0 0.0
  %492 = vmatprep.subr.mxu0 0.0
  %493 = vmatpush1.msra.mxu0 0.0
  %494 = vmatprep.subr.mxu0 0.0
  %495 = vmatpush1.msra.mxu0 0.0
  %496 = vmatprep.subr.mxu0 0.0
  %497 = vmatpush1.msra.mxu0 0.0
  %498 = vmatprep.subr.mxu0 0.0
  %499 = vmatpush1.msra.mxu0 0.0
  %500 = vmatprep.subr.mxu0 0.0
  %501 = vmatpush1.msra.mxu0 0.0
  %502 = vmatprep.subr.mxu0 0.0
  %503 = vmatpush1.msra.mxu0 0.0
  %504 = vmatprep.mubr.f32.mxu0 0.0
  %505 = vmatmul.mubr.f32.gmra.mrb[0].mxu0 %v438
  %v506 = vpop.f32.mrb[0].mxu0
  %v507 = vadd.f32 0.0, %v506
  %v508 = vpop.f32.mrb[0].mxu0
  %509 = vdwg.mxu0
  %v510 = vadd.f32 %v435, %v507
  %v511 = vxor.u32 %v510, 2147483648
  %v512 = vmul.f32 %v511, 1.442695
  %v513 = vpow.pop %v512
  %v514 = vadd.f32 %v513, 1.0
  %v515 = vrcp.pop %v514
  %v516 = vmul.f32 1.0, %v515
  %v517 = vtanh.pop %v510
  %v518 = vld [vmem:[#allocation3] sm:$0x3]
  %520 = vrot.lane.b32.xlu0 %v518, 16
  %v521 = vpop.permute.xlu0 %520
  %v523 = vmul.f32 %v516, %v521
  %525 = vrot.lane.b32.xlu0 %v517, 80
  %v526 = vpop.permute.xlu0 %525
  %v528 = vmul.f32 %v516, %v526
  %530 = vrot.lane.b32.xlu0 %v528, 16
  %v531 = vpop.permute.xlu0 %530
  %v533 = vadd.f32 %v523, %v531
  %v534 = vtanh.pop %v533
  %536 = vrot.lane.b32.xlu0 %v534, 16
  %v537 = vpop.permute.xlu0 %536
  %v539 = vmul.f32 %v516, %v537
  %v540 = vstv %s434
  %vm541 = vcmp.lt.s32.totalorder %v540, %v23
  %v542 = vsel %vm541, 1, 0
  %543 = vset.pattern.permute.xlu0 0
  %544 = vperm.xlu0 %543, %v542
  %v545 = vpop.permute.xlu0 %544
  %vm546 = vcmp.eq.s32.totalorder %v545, 1
  %v547 = vsel %vm546, %v533, %v521
  %549 = vrot.lane.b32.xlu0 %v547, 112
  %v550 = vpop.permute.xlu0 %549
  %552 = vst.msk [vmem:[#allocation3] sm:$0x3] %vm143, %v550
  %v553 = vld [vmem:[#allocation2] sm:$0x3]
  %555 = vrot.lane.b32.xlu0 %v553, 32
  %v556 = vpop.permute.xlu0 %555
  %v558 = vsel %vm546, %v539, %v556
  %560 = vrot.lane.b32.xlu0 %v558, 96
  %v561 = vpop.permute.xlu0 %560
  %563 = vst.msk [vmem:[#allocation2] sm:$0x3] %vm143, %v561
  %v564 = vsel %vm546, %v539, 0.0
  %566 = vrot.lane.b32.xlu0 %v564, 96
  %v567 = vpop.permute.xlu0 %566
  %569 = vst.msk [vmem:[%s3 + $0x6] sm:$0x3] %vm143, %v567
  %s570 = sadd.s32 %s24, 4
  %v571 = vld [vmem:[%s0 + $0x8] sm:$0x3]
  %v572 = vld [vmem:[#allocation2] sm:$0x3]
  %v574 = vsel %vm27, %v572, 0
  %576 = vmatprep.subr.mxu0 0.0
  %577 = vmatpush1.msra.mxu0 %v21
  %578 = vmatprep.subr.mxu0 0.0
  %579 = vmatpush1.msra.mxu0 %v22
  %580 = vmatprep.subr.mxu0 0.0
  %581 = vmatpush1.msra.mxu0 0.0
  %582 = vmatprep.subr.mxu0 0.0
  %583 = vmatpush1.msra.mxu0 0.0
  %584 = vmatprep.subr.mxu0 0.0
  %585 = vmatpush1.msra.mxu0 0.0
  %586 = vmatprep.subr.mxu0 0.0
  %587 = vmatpush1.msra.mxu0 0.0
  %588 = vmatprep.subr.mxu0 0.0
  %589 = vmatpush1.msra.mxu0 0.0
  %590 = vmatprep.subr.mxu0 0.0
  %591 = vmatpush1.msra.mxu0 0.0
  %592 = vmatprep.subr.mxu0 0.0
  %593 = vmatpush1.msra.mxu0 0.0
  %594 = vmatprep.subr.mxu0 0.0
  %595 = vmatpush1.msra.mxu0 0.0
  %596 = vmatprep.subr.mxu0 0.0
  %597 = vmatpush1.msra.mxu0 0.0
  %598 = vmatprep.subr.mxu0 0.0
  %599 = vmatpush1.msra.mxu0 0.0
  %600 = vmatprep.subr.mxu0 0.0
  %601 = vmatpush1.msra.mxu0 0.0
  %602 = vmatprep.subr.mxu0 0.0
  %603 = vmatpush1.msra.mxu0 0.0
  %604 = vmatprep.subr.mxu0 0.0
  %605 = vmatpush1.msra.mxu0 0.0
  %606 = vmatprep.subr.mxu0 0.0
  %607 = vmatpush1.msra.mxu0 0.0
  %608 = vmatprep.subr.mxu0 0.0
  %609 = vmatpush1.msra.mxu0 0.0
  %610 = vmatprep.subr.mxu0 0.0
  %611 = vmatpush1.msra.mxu0 0.0
  %612 = vmatprep.subr.mxu0 0.0
  %613 = vmatpush1.msra.mxu0 0.0
  %614 = vmatprep.subr.mxu0 0.0
  %615 = vmatpush1.msra.mxu0 0.0
  %616 = vmatprep.subr.mxu0 0.0
  %617 = vmatpush1.msra.mxu0 0.0
  %618 = vmatprep.subr.mxu0 0.0
  %619 = vmatpush1.msra.mxu0 0.0
  %620 = vmatprep.subr.mxu0 0.0
  %621 = vmatpush1.msra.mxu0 0.0
  %622 = vmatprep.subr.mxu0 0.0
  %623 = vmatpush1.msra.mxu0 0.0
  %624 = vmatprep.subr.mxu0 0.0
  %625 = vmatpush1.msra.mxu0 0.0
  %626 = vmatprep.subr.mxu0 0.0
  %627 = vmatpush1.msra.mxu0 0.0
  %628 = vmatprep.subr.mxu0 0.0
  %629 = vmatpush1.msra.mxu0 0.0
  %630 = vmatprep.subr.mxu0 0.0
  %631 = vmatpush1.msra.mxu0 0.0
  %632 = vmatprep.subr.mxu0 0.0
  %633 = vmatpush1.msra.mxu0 0.0
  %634 = vmatprep.subr.mxu0 0.0
  %635 = vmatpush1.msra.mxu0 0.0
  %636 = vmatprep.subr.mxu0 0.0
  %637 = vmatpush1.msra.mxu0 0.0
  %638 = vmatprep.subr.mxu0 0.0
  %639 = vmatpush1.msra.mxu0 0.0
  %640 = vmatprep.mubr.f32.mxu0 0.0
  %641 = vmatmul.mubr.f32.gmra.mrb[0].mxu0 %v574
  %v642 = vpop.f32.mrb[0].mxu0
  %v643 = vadd.f32 0.0, %v642
  %v644 = vpop.f32.mrb[0].mxu0
  %645 = vdwg.mxu0
  %v646 = vadd.f32 %v571, %v643
  %v647 = vxor.u32 %v646, 2147483648
  %v648 = vmul.f32 %v647, 1.442695
  %v649 = vpow.pop %v648
  %v650 = vadd.f32 %v649, 1.0
  %v651 = vrcp.pop %v650
  %v652 = vmul.f32 1.0, %v651
  %v653 = vtanh.pop %v646
  %v654 = vld [vmem:[#allocation3] sm:$0x3]
  %656 = vrot.lane.b32.xlu0 %v654, 16
  %v657 = vpop.permute.xlu0 %656
  %v659 = vmul.f32 %v652, %v657
  %661 = vrot.lane.b32.xlu0 %v653, 80
  %v662 = vpop.permute.xlu0 %661
  %v664 = vmul.f32 %v652, %v662
  %666 = vrot.lane.b32.xlu0 %v664, 16
  %v667 = vpop.permute.xlu0 %666
  %v669 = vadd.f32 %v659, %v667
  %v670 = vtanh.pop %v669
  %672 = vrot.lane.b32.xlu0 %v670, 16
  %v673 = vpop.permute.xlu0 %672
  %v675 = vmul.f32 %v652, %v673
  %v676 = vstv %s570
  %vm677 = vcmp.lt.s32.totalorder %v676, %v23
  %v678 = vsel %vm677, 1, 0
  %679 = vset.pattern.permute.xlu0 0
  %680 = vperm.xlu0 %679, %v678
  %v681 = vpop.permute.xlu0 %680
  %vm682 = vcmp.eq.s32.totalorder %v681, 1
  %v683 = vsel %vm682, %v669, %v657
  %685 = vrot.lane.b32.xlu0 %v683, 112
  %v686 = vpop.permute.xlu0 %685
  %688 = vst.msk [vmem:[#allocation3] sm:$0x3] %vm143, %v686
  %v689 = vld [vmem:[#allocation2] sm:$0x3]
  %691 = vrot.lane.b32.xlu0 %v689, 32
  %v692 = vpop.permute.xlu0 %691
  %v694 = vsel %vm682, %v675, %v692
  %696 = vrot.lane.b32.xlu0 %v694, 96
  %v697 = vpop.permute.xlu0 %696
  %699 = vst.msk [vmem:[#allocation2] sm:$0x3] %vm143, %v697
  %v700 = vsel %vm682, %v675, 0.0
  %702 = vrot.lane.b32.xlu0 %v700, 96
  %v703 = vpop.permute.xlu0 %702
  %705 = vst.msk [vmem:[%s3 + $0x8] sm:$0x3] %vm143, %v703
  %s706 = sadd.s32 %s24, 5
  %v707 = vld [vmem:[%s0 + $0xa] sm:$0x3]
  %v708 = vld [vmem:[#allocation2] sm:$0x3]
  %v710 = vsel %vm27, %v708, 0
  %712 = vmatprep.subr.mxu0 0.0
  %713 = vmatpush1.msra.mxu0 %v21
  %714 = vmatprep.subr.mxu0 0.0
  %715 = vmatpush1.msra.mxu0 %v22
  %716 = vmatprep.subr.mxu0 0.0
  %717 = vmatpush1.msra.mxu0 0.0
  %718 = vmatprep.subr.mxu0 0.0
  %719 = vmatpush1.msra.mxu0 0.0
  %720 = vmatprep.subr.mxu0 0.0
  %721 = vmatpush1.msra.mxu0 0.0
  %722 = vmatprep.subr.mxu0 0.0
  %723 = vmatpush1.msra.mxu0 0.0
  %724 = vmatprep.subr.mxu0 0.0
  %725 = vmatpush1.msra.mxu0 0.0
  %726 = vmatprep.subr.mxu0 0.0
  %727 = vmatpush1.msra.mxu0 0.0
  %728 = vmatprep.subr.mxu0 0.0
  %729 = vmatpush1.msra.mxu0 0.0
  %730 = vmatprep.subr.mxu0 0.0
  %731 = vmatpush1.msra.mxu0 0.0
  %732 = vmatprep.subr.mxu0 0.0
  %733 = vmatpush1.msra.mxu0 0.0
  %734 = vmatprep.subr.mxu0 0.0
  %735 = vmatpush1.msra.mxu0 0.0
  %736 = vmatprep.subr.mxu0 0.0
  %737 = vmatpush1.msra.mxu0 0.0
  %738 = vmatprep.subr.mxu0 0.0
  %739 = vmatpush1.msra.mxu0 0.0
  %740 = vmatprep.subr.mxu0 0.0
  %741 = vmatpush1.msra.mxu0 0.0
  %742 = vmatprep.subr.mxu0 0.0
  %743 = vmatpush1.msra.mxu0 0.0
  %744 = vmatprep.subr.mxu0 0.0
  %745 = vmatpush1.msra.mxu0 0.0
  %746 = vmatprep.subr.mxu0 0.0
  %747 = vmatpush1.msra.mxu0 0.0
  %748 = vmatprep.subr.mxu0 0.0
  %749 = vmatpush1.msra.mxu0 0.0
  %750 = vmatprep.subr.mxu0 0.0
  %751 = vmatpush1.msra.mxu0 0.0
  %752 = vmatprep.subr.mxu0 0.0
  %753 = vmatpush1.msra.mxu0 0.0
  %754 = vmatprep.subr.mxu0 0.0
  %755 = vmatpush1.msra.mxu0 0.0
  %756 = vmatprep.subr.mxu0 0.0
  %757 = vmatpush1.msra.mxu0 0.0
  %758 = vmatprep.subr.mxu0 0.0
  %759 = vmatpush1.msra.mxu0 0.0
  %760 = vmatprep.subr.mxu0 0.0
  %761 = vmatpush1.msra.mxu0 0.0
  %762 = vmatprep.subr.mxu0 0.0
  %763 = vmatpush1.msra.mxu0 0.0
  %764 = vmatprep.subr.mxu0 0.0
  %765 = vmatpush1.msra.mxu0 0.0
  %766 = vmatprep.subr.mxu0 0.0
  %767 = vmatpush1.msra.mxu0 0.0
  %768 = vmatprep.subr.mxu0 0.0
  %769 = vmatpush1.msra.mxu0 0.0
  %770 = vmatprep.subr.mxu0 0.0
  %771 = vmatpush1.msra.mxu0 0.0
  %772 = vmatprep.subr.mxu0 0.0
  %773 = vmatpush1.msra.mxu0 0.0
  %774 = vmatprep.subr.mxu0 0.0
  %775 = vmatpush1.msra.mxu0 0.0
  %776 = vmatprep.mubr.f32.mxu0 0.0
  %777 = vmatmul.mubr.f32.gmra.mrb[0].mxu0 %v710
  %v778 = vpop.f32.mrb[0].mxu0
  %v779 = vadd.f32 0.0, %v778
  %v780 = vpop.f32.mrb[0].mxu0
  %781 = vdwg.mxu0
  %v782 = vadd.f32 %v707, %v779
  %v783 = vxor.u32 %v782, 2147483648
  %v784 = vmul.f32 %v783, 1.442695
  %v785 = vpow.pop %v784
  %v786 = vadd.f32 %v785, 1.0
  %v787 = vrcp.pop %v786
  %v788 = vmul.f32 1.0, %v787
  %v789 = vtanh.pop %v782
  %v790 = vld [vmem:[#allocation3] sm:$0x3]
  %792 = vrot.lane.b32.xlu0 %v790, 16
  %v793 = vpop.permute.xlu0 %792
  %v795 = vmul.f32 %v788, %v793
  %797 = vrot.lane.b32.xlu0 %v789, 80
  %v798 = vpop.permute.xlu0 %797
  %v800 = vmul.f32 %v788, %v798
  %802 = vrot.lane.b32.xlu0 %v800, 16
  %v803 = vpop.permute.xlu0 %802
  %v805 = vadd.f32 %v795, %v803
  %v806 = vtanh.pop %v805
  %808 = vrot.lane.b32.xlu0 %v806, 16
  %v809 = vpop.permute.xlu0 %808
  %v811 = vmul.f32 %v788, %v809
  %v812 = vstv %s706
  %vm813 = vcmp.lt.s32.totalorder %v812, %v23
  %v814 = vsel %vm813, 1, 0
  %815 = vset.pattern.permute.xlu0 0
  %816 = vperm.xlu0 %815, %v814
  %v817 = vpop.permute.xlu0 %816
  %vm818 = vcmp.eq.s32.totalorder %v817, 1
  %v819 = vsel %vm818, %v805, %v793
  %821 = vrot.lane.b32.xlu0 %v819, 112
  %v822 = vpop.permute.xlu0 %821
  %824 = vst.msk [vmem:[#allocation3] sm:$0x3] %vm143, %v822
  %v825 = vld [vmem:[#allocation2] sm:$0x3]
  %827 = vrot.lane.b32.xlu0 %v825, 32
  %v828 = vpop.permute.xlu0 %827
  %v830 = vsel %vm818, %v811, %v828
  %832 = vrot.lane.b32.xlu0 %v830, 96
  %v833 = vpop.permute.xlu0 %832
  %835 = vst.msk [vmem:[#allocation2] sm:$0x3] %vm143, %v833
  %v836 = vsel %vm818, %v811, 0.0
  %838 = vrot.lane.b32.xlu0 %v836, 96
  %v839 = vpop.permute.xlu0 %838
  %841 = vst.msk [vmem:[%s3 + $0xa] sm:$0x3] %vm143, %v839
  %s842 = sadd.s32 %s24, 6
  %v843 = vld [vmem:[%s0 + $0xc] sm:$0x3]
  %v844 = vld [vmem:[#allocation2] sm:$0x3]
  %v846 = vsel %vm27, %v844, 0
  %848 = vmatprep.subr.mxu0 0.0
  %849 = vmatpush1.msra.mxu0 %v21
  %850 = vmatprep.subr.mxu0 0.0
  %851 = vmatpush1.msra.mxu0 %v22
  %852 = vmatprep.subr.mxu0 0.0
  %853 = vmatpush1.msra.mxu0 0.0
  %854 = vmatprep.subr.mxu0 0.0
  %855 = vmatpush1.msra.mxu0 0.0
  %856 = vmatprep.subr.mxu0 0.0
  %857 = vmatpush1.msra.mxu0 0.0
  %858 = vmatprep.subr.mxu0 0.0
  %859 = vmatpush1.msra.mxu0 0.0
  %860 = vmatprep.subr.mxu0 0.0
  %861 = vmatpush1.msra.mxu0 0.0
  %862 = vmatprep.subr.mxu0 0.0
  %863 = vmatpush1.msra.mxu0 0.0
  %864 = vmatprep.subr.mxu0 0.0
  %865 = vmatpush1.msra.mxu0 0.0
  %866 = vmatprep.subr.mxu0 0.0
  %867 = vmatpush1.msra.mxu0 0.0
  %868 = vmatprep.subr.mxu0 0.0
  %869 = vmatpush1.msra.mxu0 0.0
  %870 = vmatprep.subr.mxu0 0.0
  %871 = vmatpush1.msra.mxu0 0.0
  %872 = vmatprep.subr.mxu0 0.0
  %873 = vmatpush1.msra.mxu0 0.0
  %874 = vmatprep.subr.mxu0 0.0
  %875 = vmatpush1.msra.mxu0 0.0
  %876 = vmatprep.subr.mxu0 0.0
  %877 = vmatpush1.msra.mxu0 0.0
  %878 = vmatprep.subr.mxu0 0.0
  %879 = vmatpush1.msra.mxu0 0.0
  %880 = vmatprep.subr.mxu0 0.0
  %881 = vmatpush1.msra.mxu0 0.0
  %882 = vmatprep.subr.mxu0 0.0
  %883 = vmatpush1.msra.mxu0 0.0
  %884 = vmatprep.subr.mxu0 0.0
  %885 = vmatpush1.msra.mxu0 0.0
  %886 = vmatprep.subr.mxu0 0.0
  %887 = vmatpush1.msra.mxu0 0.0
  %888 = vmatprep.subr.mxu0 0.0
  %889 = vmatpush1.msra.mxu0 0.0
  %890 = vmatprep.subr.mxu0 0.0
  %891 = vmatpush1.msra.mxu0 0.0
  %892 = vmatprep.subr.mxu0 0.0
  %893 = vmatpush1.msra.mxu0 0.0
  %894 = vmatprep.subr.mxu0 0.0
  %895 = vmatpush1.msra.mxu0 0.0
  %896 = vmatprep.subr.mxu0 0.0
  %897 = vmatpush1.msra.mxu0 0.0
  %898 = vmatprep.subr.mxu0 0.0
  %899 = vmatpush1.msra.mxu0 0.0
  %900 = vmatprep.subr.mxu0 0.0
  %901 = vmatpush1.msra.mxu0 0.0
  %902 = vmatprep.subr.mxu0 0.0
  %903 = vmatpush1.msra.mxu0 0.0
  %904 = vmatprep.subr.mxu0 0.0
  %905 = vmatpush1.msra.mxu0 0.0
  %906 = vmatprep.subr.mxu0 0.0
  %907 = vmatpush1.msra.mxu0 0.0
  %908 = vmatprep.subr.mxu0 0.0
  %909 = vmatpush1.msra.mxu0 0.0
  %910 = vmatprep.subr.mxu0 0.0
  %911 = vmatpush1.msra.mxu0 0.0
  %912 = vmatprep.mubr.f32.mxu0 0.0
  %913 = vmatmul.mubr.f32.gmra.mrb[0].mxu0 %v846
  %v914 = vpop.f32.mrb[0].mxu0
  %v915 = vadd.f32 0.0, %v914
  %v916 = vpop.f32.mrb[0].mxu0
  %917 = vdwg.mxu0
  %v918 = vadd.f32 %v843, %v915
  %v919 = vxor.u32 %v918, 2147483648
  %v920 = vmul.f32 %v919, 1.442695
  %v921 = vpow.pop %v920
  %v922 = vadd.f32 %v921, 1.0
  %v923 = vrcp.pop %v922
  %v924 = vmul.f32 1.0, %v923
  %v925 = vtanh.pop %v918
  %v926 = vld [vmem:[#allocation3] sm:$0x3]
  %928 = vrot.lane.b32.xlu0 %v926, 16
  %v929 = vpop.permute.xlu0 %928
  %v931 = vmul.f32 %v924, %v929
  %933 = vrot.lane.b32.xlu0 %v925, 80
  %v934 = vpop.permute.xlu0 %933
  %v936 = vmul.f32 %v924, %v934
  %938 = vrot.lane.b32.xlu0 %v936, 16
  %v939 = vpop.permute.xlu0 %938
  %v941 = vadd.f32 %v931, %v939
  %v942 = vtanh.pop %v941
  %944 = vrot.lane.b32.xlu0 %v942, 16
  %v945 = vpop.permute.xlu0 %944
  %v947 = vmul.f32 %v924, %v945
  %v948 = vstv %s842
  %vm949 = vcmp.lt.s32.totalorder %v948, %v23
  %v950 = vsel %vm949, 1, 0
  %951 = vset.pattern.permute.xlu0 0
  %952 = vperm.xlu0 %951, %v950
  %v953 = vpop.permute.xlu0 %952
  %vm954 = vcmp.eq.s32.totalorder %v953, 1
  %v955 = vsel %vm954, %v941, %v929
  %957 = vrot.lane.b32.xlu0 %v955, 112
  %v958 = vpop.permute.xlu0 %957
  %960 = vst.msk [vmem:[#allocation3] sm:$0x3] %vm143, %v958
  %v961 = vld [vmem:[#allocation2] sm:$0x3]
  %963 = vrot.lane.b32.xlu0 %v961, 32
  %v964 = vpop.permute.xlu0 %963
  %v966 = vsel %vm954, %v947, %v964
  %968 = vrot.lane.b32.xlu0 %v966, 96
  %v969 = vpop.permute.xlu0 %968
  %971 = vst.msk [vmem:[#allocation2] sm:$0x3] %vm143, %v969
  %v972 = vsel %vm954, %v947, 0.0
  %974 = vrot.lane.b32.xlu0 %v972, 96
  %v975 = vpop.permute.xlu0 %974
  %977 = vst.msk [vmem:[%s3 + $0xc] sm:$0x3] %vm143, %v975
  %s978 = sadd.s32 %s24, 7
  %v979 = vld [vmem:[%s0 + $0xe] sm:$0x3]
  %v980 = vld [vmem:[#allocation2] sm:$0x3]
  %v982 = vsel %vm27, %v980, 0
  %984 = vmatprep.subr.mxu0 0.0
  %985 = vmatpush1.msra.mxu0 %v21
  %986 = vmatprep.subr.mxu0 0.0
  %987 = vmatpush1.msra.mxu0 %v22
  %988 = vmatprep.subr.mxu0 0.0
  %989 = vmatpush1.msra.mxu0 0.0
  %990 = vmatprep.subr.mxu0 0.0
  %991 = vmatpush1.msra.mxu0 0.0
  %992 = vmatprep.subr.mxu0 0.0
  %993 = vmatpush1.msra.mxu0 0.0
  %994 = vmatprep.subr.mxu0 0.0
  %995 = vmatpush1.msra.mxu0 0.0
  %996 = vmatprep.subr.mxu0 0.0
  %997 = vmatpush1.msra.mxu0 0.0
  %998 = vmatprep.subr.mxu0 0.0
  %999 = vmatpush1.msra.mxu0 0.0
  %1000 = vmatprep.subr.mxu0 0.0
  %1001 = vmatpush1.msra.mxu0 0.0
  %1002 = vmatprep.subr.mxu0 0.0
  %1003 = vmatpush1.msra.mxu0 0.0
  %1004 = vmatprep.subr.mxu0 0.0
  %1005 = vmatpush1.msra.mxu0 0.0
  %1006 = vmatprep.subr.mxu0 0.0
  %1007 = vmatpush1.msra.mxu0 0.0
  %1008 = vmatprep.subr.mxu0 0.0
  %1009 = vmatpush1.msra.mxu0 0.0
  %1010 = vmatprep.subr.mxu0 0.0
  %1011 = vmatpush1.msra.mxu0 0.0
  %1012 = vmatprep.subr.mxu0 0.0
  %1013 = vmatpush1.msra.mxu0 0.0
  %1014 = vmatprep.subr.mxu0 0.0
  %1015 = vmatpush1.msra.mxu0 0.0
  %1016 = vmatprep.subr.mxu0 0.0
  %1017 = vmatpush1.msra.mxu0 0.0
  %1018 = vmatprep.subr.mxu0 0.0
  %1019 = vmatpush1.msra.mxu0 0.0
  %1020 = vmatprep.subr.mxu0 0.0
  %1021 = vmatpush1.msra.mxu0 0.0
  %1022 = vmatprep.subr.mxu0 0.0
  %1023 = vmatpush1.msra.mxu0 0.0
  %1024 = vmatprep.subr.mxu0 0.0
  %1025 = vmatpush1.msra.mxu0 0.0
  %1026 = vmatprep.subr.mxu0 0.0
  %1027 = vmatpush1.msra.mxu0 0.0
  %1028 = vmatprep.subr.mxu0 0.0
  %1029 = vmatpush1.msra.mxu0 0.0
  %1030 = vmatprep.subr.mxu0 0.0
  %1031 = vmatpush1.msra.mxu0 0.0
  %1032 = vmatprep.subr.mxu0 0.0
  %1033 = vmatpush1.msra.mxu0 0.0
  %1034 = vmatprep.subr.mxu0 0.0
  %1035 = vmatpush1.msra.mxu0 0.0
  %1036 = vmatprep.subr.mxu0 0.0
  %1037 = vmatpush1.msra.mxu0 0.0
  %1038 = vmatprep.subr.mxu0 0.0
  %1039 = vmatpush1.msra.mxu0 0.0
  %1040 = vmatprep.subr.mxu0 0.0
  %1041 = vmatpush1.msra.mxu0 0.0
  %1042 = vmatprep.subr.mxu0 0.0
  %1043 = vmatpush1.msra.mxu0 0.0
  %1044 = vmatprep.subr.mxu0 0.0
  %1045 = vmatpush1.msra.mxu0 0.0
  %1046 = vmatprep.subr.mxu0 0.0
  %1047 = vmatpush1.msra.mxu0 0.0
  %1048 = vmatprep.mubr.f32.mxu0 0.0
  %1049 = vmatmul.mubr.f32.gmra.mrb[0].mxu0 %v982
  %v1050 = vpop.f32.mrb[0].mxu0
  %v1051 = vadd.f32 0.0, %v1050
  %v1052 = vpop.f32.mrb[0].mxu0
  %1053 = vdwg.mxu0
  %v1054 = vadd.f32 %v979, %v1051
  %v1055 = vxor.u32 %v1054, 2147483648
  %v1056 = vmul.f32 %v1055, 1.442695
  %v1057 = vpow.pop %v1056
  %v1058 = vadd.f32 %v1057, 1.0
  %v1059 = vrcp.pop %v1058
  %v1060 = vmul.f32 1.0, %v1059
  %v1061 = vtanh.pop %v1054
  %v1062 = vld [vmem:[#allocation3] sm:$0x3]
  %1064 = vrot.lane.b32.xlu0 %v1062, 16
  %v1065 = vpop.permute.xlu0 %1064
  %v1067 = vmul.f32 %v1060, %v1065
  %1069 = vrot.lane.b32.xlu0 %v1061, 80
  %v1070 = vpop.permute.xlu0 %1069
  %v1072 = vmul.f32 %v1060, %v1070
  %1074 = vrot.lane.b32.xlu0 %v1072, 16
  %v1075 = vpop.permute.xlu0 %1074
  %v1077 = vadd.f32 %v1067, %v1075
  %v1078 = vtanh.pop %v1077
  %1080 = vrot.lane.b32.xlu0 %v1078, 16
  %v1081 = vpop.permute.xlu0 %1080
  %v1083 = vmul.f32 %v1060, %v1081
  %v1084 = vstv %s978
  %vm1085 = vcmp.lt.s32.totalorder %v1084, %v23
  %v1086 = vsel %vm1085, 1, 0
  %1087 = vset.pattern.permute.xlu0 0
  %1088 = vperm.xlu0 %1087, %v1086
  %v1089 = vpop.permute.xlu0 %1088
  %vm1090 = vcmp.eq.s32.totalorder %v1089, 1
  %v1091 = vsel %vm1090, %v1077, %v1065
  %1093 = vrot.lane.b32.xlu0 %v1091, 112
  %v1094 = vpop.permute.xlu0 %1093
  %1096 = vst.msk [vmem:[#allocation3] sm:$0x3] %vm143, %v1094
  %v1097 = vld [vmem:[#allocation2] sm:$0x3]
  %1099 = vrot.lane.b32.xlu0 %v1097, 32
  %v1100 = vpop.permute.xlu0 %1099
  %v1102 = vsel %vm1090, %v1083, %v1100
  %1104 = vrot.lane.b32.xlu0 %v1102, 96
  %v1105 = vpop.permute.xlu0 %1104
  %1107 = vst.msk [vmem:[#allocation2] sm:$0x3] %vm143, %v1105
  %v1108 = vsel %vm1090, %v1083, 0.0
  %1110 = vrot.lane.b32.xlu0 %v1108, 96
  %v1111 = vpop.permute.xlu0 %1110
  %1113 = vst.msk [vmem:[%s3 + $0xe] sm:$0x3] %vm143, %v1111
  // Predicated region
  $region18: #{bilstm_maxpool_cls.5} parent=0 // pred_check
    _
  $region19: #{bilstm_maxpool_cls.5} parent=0 // pred_check_branch
    %1115 = sbr.rel (0) target = $region21
  $region20: #{bilstm_maxpool_cls.5} parent=0 // pred_region
    _
  $region21: #{bilstm_maxpool_cls.5} parent=0 // pred_fallthru
    _
  // Predicated region
  $region22: #{bilstm_maxpool_cls.5} parent=0 // pred_check
    _
  $region23: #{bilstm_maxpool_cls.5} parent=0 // pred_check_branch
    %1117 = sbr.rel (0) target = $region25
  $region24: #{bilstm_maxpool_cls.5} parent=0 // pred_region
    _
  $region25: #{bilstm_maxpool_cls.5} parent=0 // pred_fallthru
    _

// kernel: bilstm_maxpool_cls.6
$region0: #{bilstm_maxpool_cls.6}
  #allocation0 [shape = 'u32[]', space=smem, size = 0x4, offset = 0x4, fixed_abs, tag = 'smem constant byte address 0x4 - core index']
  #allocation1 [shape = 'u32[144,128]{1,0:T(1,128)}', space=vmem, size = 0x12000, scoped, tag = 'internal scratch']
  #allocation2 [shape = 'f32[2,16]{1,0:T(2,128)}', space=vmem, size = 0x400, scoped, tag = 'scratch operand']
  #allocation3 [shape = 'f32[2,16]{1,0:T(2,128)}', space=vmem, size = 0x400, scoped, tag = 'scratch operand']
  %s0 = inlined_call_operand.vmem [shape: f32[16,64], index: 0, kind: input, shape index: {}]
  %s1 = inlined_call_operand.vmem [shape: f32[16,64], index: 1, kind: input, shape index: {}]
  %s2 = inlined_call_operand.vmem [shape: s32[2,1], index: 2, kind: input, shape index: {}]
  %s3 = inlined_call_operand.vmem [shape: f32[16,16], index: 3, kind: output, shape index: {}]
  %s4 = sld [smem:[#allocation0]]
  $region26: #{bilstm_maxpool_cls.6} parent=0
    _
  %s6 = ssub.s32 1, %s4
  %s7 = scalar_select 0, %s6, %s4
  // Predicated region
  $region2: #{bilstm_maxpool_cls.6} parent=0 // pred_check
    _
  $region3: #{bilstm_maxpool_cls.6} parent=0 // pred_check_branch
    %9 = sbr.rel (0) target = $region5
  $region4: #{bilstm_maxpool_cls.6} parent=0 // pred_region
    %s10 = ssub.s32 0, 0
    %s11 = smul.u32 2, %s10
    %p12 = scmp.lt.s32.totalorder %s11, 1
    %s13 = scalar_select %p12, %s11, 1
    %s14 = smul.addr %s13, 8
    %s15 = scalar_lea.vmem %s0, %s14
    %s16 = ssub.s32 0, 0
    %s17 = smul.u32 2, %s16
  $region5: #{bilstm_maxpool_cls.6} parent=0 // pred_fallthru
    _
  // Predicated region
  $region6: #{bilstm_maxpool_cls.6} parent=0 // pred_check
    _
  $region7: #{bilstm_maxpool_cls.6} parent=0 // pred_check_branch
    %19 = sbr.rel (0) target = $region9
  $region8: #{bilstm_maxpool_cls.6} parent=0 // pred_region
    _
  $region9: #{bilstm_maxpool_cls.6} parent=0 // pred_fallthru
    _
  // Predicated region
  $region10: #{bilstm_maxpool_cls.6} parent=0 // pred_check
    _
  $region11: #{bilstm_maxpool_cls.6} parent=0 // pred_check_branch
    %21 = sbr.rel (0) target = $region13
  $region12: #{bilstm_maxpool_cls.6} parent=0 // pred_region
    _
  $region13: #{bilstm_maxpool_cls.6} parent=0 // pred_fallthru
    _
  %s22 = ssub.s32 0, 0
  %s23 = smul.u32 2, %s22
  %p24 = scmp.lt.s32.totalorder %s23, 1
  %s25 = scalar_select %p24, %s23, 1
  %s26 = smul.addr %s25, 8
  %s27 = scalar_lea.vmem %s0, %s26
  %s28 = ssub.s32 0, 0
  %s29 = smul.u32 2, %s28
  %p30 = scmp.lt.s32.totalorder %s29, 1
  %s31 = scalar_select %p30, %s29, 1
  %s32 = smul.addr %s31, 8
  %s33 = scalar_lea.vmem %s3, %s32
  %s34 = ssub.s32 0, 0
  %s35 = smul.u32 2, %s34
  %p36 = scmp.lt.s32.totalorder %s35, 1
  %s37 = scalar_select %p36, %s35, 1
  %s38 = smul.addr %s37, 8
  %s39 = scalar_lea.vmem %s0, %s38
  %s40 = ssub.s32 0, 0
  %s41 = smul.u32 2, %s40
  %s42 = ssub.s32 0, 0
  %s43 = smul.u32 2, %s42
  %p44 = scmp.lt.s32.totalorder %s43, 1
  %s45 = scalar_select %p44, %s43, 1
  %s46 = smul.addr %s45, 8
  %s47 = scalar_lea.vmem %s3, %s46
  %s48 = ssub.s32 0, 0
  %s49 = smul.u32 2, %s48
  %p50 = scmp.eq.s32.totalorder 0, 0
  // Predicated region
  $region14: #{bilstm_maxpool_cls.6} parent=0 // pred_check
    %p51 = pneg %p50
  $region15: #{bilstm_maxpool_cls.6} parent=0 // pred_check_branch
    %53 = sbr.rel (%p51) target = $region17
  $region16: #{bilstm_maxpool_cls.6} parent=0 // pred_region
    %vm54 = vcmask 123904
    %55 = vst.msk [vmem:[#allocation2] sm:$0x3] %vm54, 0.0
    %56 = vst.msk [vmem:[#allocation3] sm:$0x3] %vm54, 0.0
  $region17: #{bilstm_maxpool_cls.6} parent=0 // pred_fallthru
    _
  %v57 = vld [vmem:[%s1] sm:$0xff]
  %v58 = vld [vmem:[%s1 + $0x8] sm:$0xff]
  %v59 = vld [vmem:[%s2] sm:$0x3]
  %s60 = ssub.s32 0, 0
  %s61 = smul.u32 %s60, 8
  %s62 = sadd.s32 %s61, 7
  %v63 = vld [vmem:[%s39 + $0xe] sm:$0x3]
  %v64 = vld [vmem:[#allocation2] sm:$0x3]
  %vm65 = vcmask 130048
  %v67 = vsel %vm65, %v64, 0
  %69 = vmatprep.subr.mxu0 0.0
  %70 = vmatpush1.msra.mxu0 %v57
  %71 = vmatprep.subr.mxu0 0.0
  %72 = vmatpush1.msra.mxu0 %v58
  %73 = vmatprep.subr.mxu0 0.0
  %74 = vmatpush1.msra.mxu0 0.0
  %75 = vmatprep.subr.mxu0 0.0
  %76 = vmatpush1.msra.mxu0 0.0
  %77 = vmatprep.subr.mxu0 0.0
  %78 = vmatpush1.msra.mxu0 0.0
  %79 = vmatprep.subr.mxu0 0.0
  %80 = vmatpush1.msra.mxu0 0.0
  %81 = vmatprep.subr.mxu0 0.0
  %82 = vmatpush1.msra.mxu0 0.0
  %83 = vmatprep.subr.mxu0 0.0
  %84 = vmatpush1.msra.mxu0 0.0
  %85 = vmatprep.subr.mxu0 0.0
  %86 = vmatpush1.msra.mxu0 0.0
  %87 = vmatprep.subr.mxu0 0.0
  %88 = vmatpush1.msra.mxu0 0.0
  %89 = vmatprep.subr.mxu0 0.0
  %90 = vmatpush1.msra.mxu0 0.0
  %91 = vmatprep.subr.mxu0 0.0
  %92 = vmatpush1.msra.mxu0 0.0
  %93 = vmatprep.subr.mxu0 0.0
  %94 = vmatpush1.msra.mxu0 0.0
  %95 = vmatprep.subr.mxu0 0.0
  %96 = vmatpush1.msra.mxu0 0.0
  %97 = vmatprep.subr.mxu0 0.0
  %98 = vmatpush1.msra.mxu0 0.0
  %99 = vmatprep.subr.mxu0 0.0
  %100 = vmatpush1.msra.mxu0 0.0
  %101 = vmatprep.subr.mxu0 0.0
  %102 = vmatpush1.msra.mxu0 0.0
  %103 = vmatprep.subr.mxu0 0.0
  %104 = vmatpush1.msra.mxu0 0.0
  %105 = vmatprep.subr.mxu0 0.0
  %106 = vmatpush1.msra.mxu0 0.0
  %107 = vmatprep.subr.mxu0 0.0
  %108 = vmatpush1.msra.mxu0 0.0
  %109 = vmatprep.subr.mxu0 0.0
  %110 = vmatpush1.msra.mxu0 0.0
  %111 = vmatprep.subr.mxu0 0.0
  %112 = vmatpush1.msra.mxu0 0.0
  %113 = vmatprep.subr.mxu0 0.0
  %114 = vmatpush1.msra.mxu0 0.0
  %115 = vmatprep.subr.mxu0 0.0
  %116 = vmatpush1.msra.mxu0 0.0
  %117 = vmatprep.subr.mxu0 0.0
  %118 = vmatpush1.msra.mxu0 0.0
  %119 = vmatprep.subr.mxu0 0.0
  %120 = vmatpush1.msra.mxu0 0.0
  %121 = vmatprep.subr.mxu0 0.0
  %122 = vmatpush1.msra.mxu0 0.0
  %123 = vmatprep.subr.mxu0 0.0
  %124 = vmatpush1.msra.mxu0 0.0
  %125 = vmatprep.subr.mxu0 0.0
  %126 = vmatpush1.msra.mxu0 0.0
  %127 = vmatprep.subr.mxu0 0.0
  %128 = vmatpush1.msra.mxu0 0.0
  %129 = vmatprep.subr.mxu0 0.0
  %130 = vmatpush1.msra.mxu0 0.0
  %131 = vmatprep.subr.mxu0 0.0
  %132 = vmatpush1.msra.mxu0 0.0
  %133 = vmatprep.mubr.f32.mxu0 0.0
  %134 = vmatmul.mubr.f32.gmra.mrb[0].mxu0 %v67
  %v135 = vpop.f32.mrb[0].mxu0
  %v136 = vadd.f32 0.0, %v135
  %v137 = vpop.f32.mrb[0].mxu0
  %138 = vdwg.mxu0
  %v139 = vadd.f32 %v63, %v136
  %v140 = vxor.u32 %v139, 2147483648
  %v141 = vmul.f32 %v140, 1.442695
  %v142 = vpow.pop %v141
  %v143 = vadd.f32 %v142, 1.0
  %v144 = vrcp.pop %v143
  %v145 = vmul.f32 1.0, %v144
  %v146 = vtanh.pop %v139
  %v147 = vld [vmem:[#allocation3] sm:$0x3]
  %149 = vrot.lane.b32.xlu0 %v147, 16
  %v150 = vpop.permute.xlu0 %149
  %v152 = vmul.f32 %v145, %v150
  %154 = vrot.lane.b32.xlu0 %v146, 80
  %v155 = vpop.permute.xlu0 %154
  %v157 = vmul.f32 %v145, %v155
  %159 = vrot.lane.b32.xlu0 %v157, 16
  %v160 = vpop.permute.xlu0 %159
  %v162 = vadd.f32 %v152, %v160
  %v163 = vtanh.pop %v162
  %165 = vrot.lane.b32.xlu0 %v163, 16
  %v166 = vpop.permute.xlu0 %165
  %v168 = vmul.f32 %v145, %v166
  %v169 = vstv %s62
  %vm170 = vcmp.lt.s32.totalorder %v169, %v59
  %v171 = vsel %vm170, 1, 0
  %172 = vset.pattern.permute.xlu0 0
  %173 = vperm.xlu0 %172, %v171
  %v174 = vpop.permute.xlu0 %173
  %vm175 = vcmp.eq.s32.totalorder %v174, 1
  %v176 = vsel %vm175, %v162, %v150
  %178 = vrot.lane.b32.xlu0 %v176, 112
  %v179 = vpop.permute.xlu0 %178
  %vm181 = vcmask 123904
  %182 = vst.msk [vmem:[#allocation3] sm:$0x3] %vm181, %v179
  %v183 = vld [vmem:[#allocation2] sm:$0x3]
  %185 = vrot.lane.b32.xlu0 %v183, 32
  %v186 = vpop.permute.xlu0 %185
  %v188 = vsel %vm175, %v168, %v186
  %190 = vrot.lane.b32.xlu0 %v188, 96
  %v191 = vpop.permute.xlu0 %190
  %193 = vst.msk [vmem:[#allocation2] sm:$0x3] %vm181, %v191
  %v194 = vsel %vm175, %v168, 0.0
  %196 = vrot.lane.b32.xlu0 %v194, 96
  %v197 = vpop.permute.xlu0 %196
  %199 = vst.msk [vmem:[%s47 + $0xe] sm:$0x3] %vm181, %v197
  %s200 = sadd.s32 %s61, 6
  %v201 = vld [vmem:[%s39 + $0xc] sm:$0x3]
  %v202 = vld [vmem:[#allocation2] sm:$0x3]
  %v204 = vsel %vm65, %v202, 0
  %206 = vmatprep.subr.mxu0 0.0
  %207 = vmatpush1.msra.mxu0 %v57
  %208 = vmatprep.subr.mxu0 0.0
  %209 = vmatpush1.msra.mxu0 %v58
  %210 = vmatprep.subr.mxu0 0.0
  %211 = vmatpush1.msra.mxu0 0.0
  %212 = vmatprep.subr.mxu0 0.0
  %213 = vmatpush1.msra.mxu0 0.0
  %214 = vmatprep.subr.mxu0 0.0
  %215 = vmatpush1.msra.mxu0 0.0
  %216 = vmatprep.subr.mxu0 0.0
  %217 = vmatpush1.msra.mxu0 0.0
  %218 = vmatprep.subr.mxu0 0.0
  %219 = vmatpush1.msra.mxu0 0.0
  %220 = vmatprep.subr.mxu0 0.0
  %221 = vmatpush1.msra.mxu0 0.0
  %222 = vmatprep.subr.mxu0 0.0
  %223 = vmatpush1.msra.mxu0 0.0
  %224 = vmatprep.subr.mxu0 0.0
  %225 = vmatpush1.msra.mxu0 0.0
  %226 = vmatprep.subr.mxu0 0.0
  %227 = vmatpush1.msra.mxu0 0.0
  %228 = vmatprep.subr.mxu0 0.0
  %229 = vmatpush1.msra.mxu0 0.0
  %230 = vmatprep.subr.mxu0 0.0
  %231 = vmatpush1.msra.mxu0 0.0
  %232 = vmatprep.subr.mxu0 0.0
  %233 = vmatpush1.msra.mxu0 0.0
  %234 = vmatprep.subr.mxu0 0.0
  %235 = vmatpush1.msra.mxu0 0.0
  %236 = vmatprep.subr.mxu0 0.0
  %237 = vmatpush1.msra.mxu0 0.0
  %238 = vmatprep.subr.mxu0 0.0
  %239 = vmatpush1.msra.mxu0 0.0
  %240 = vmatprep.subr.mxu0 0.0
  %241 = vmatpush1.msra.mxu0 0.0
  %242 = vmatprep.subr.mxu0 0.0
  %243 = vmatpush1.msra.mxu0 0.0
  %244 = vmatprep.subr.mxu0 0.0
  %245 = vmatpush1.msra.mxu0 0.0
  %246 = vmatprep.subr.mxu0 0.0
  %247 = vmatpush1.msra.mxu0 0.0
  %248 = vmatprep.subr.mxu0 0.0
  %249 = vmatpush1.msra.mxu0 0.0
  %250 = vmatprep.subr.mxu0 0.0
  %251 = vmatpush1.msra.mxu0 0.0
  %252 = vmatprep.subr.mxu0 0.0
  %253 = vmatpush1.msra.mxu0 0.0
  %254 = vmatprep.subr.mxu0 0.0
  %255 = vmatpush1.msra.mxu0 0.0
  %256 = vmatprep.subr.mxu0 0.0
  %257 = vmatpush1.msra.mxu0 0.0
  %258 = vmatprep.subr.mxu0 0.0
  %259 = vmatpush1.msra.mxu0 0.0
  %260 = vmatprep.subr.mxu0 0.0
  %261 = vmatpush1.msra.mxu0 0.0
  %262 = vmatprep.subr.mxu0 0.0
  %263 = vmatpush1.msra.mxu0 0.0
  %264 = vmatprep.subr.mxu0 0.0
  %265 = vmatpush1.msra.mxu0 0.0
  %266 = vmatprep.subr.mxu0 0.0
  %267 = vmatpush1.msra.mxu0 0.0
  %268 = vmatprep.subr.mxu0 0.0
  %269 = vmatpush1.msra.mxu0 0.0
  %270 = vmatprep.mubr.f32.mxu0 0.0
  %271 = vmatmul.mubr.f32.gmra.mrb[0].mxu0 %v204
  %v272 = vpop.f32.mrb[0].mxu0
  %v273 = vadd.f32 0.0, %v272
  %v274 = vpop.f32.mrb[0].mxu0
  %275 = vdwg.mxu0
  %v276 = vadd.f32 %v201, %v273
  %v277 = vxor.u32 %v276, 2147483648
  %v278 = vmul.f32 %v277, 1.442695
  %v279 = vpow.pop %v278
  %v280 = vadd.f32 %v279, 1.0
  %v281 = vrcp.pop %v280
  %v282 = vmul.f32 1.0, %v281
  %v283 = vtanh.pop %v276
  %v284 = vld [vmem:[#allocation3] sm:$0x3]
  %286 = vrot.lane.b32.xlu0 %v284, 16
  %v287 = vpop.permute.xlu0 %286
  %v289 = vmul.f32 %v282, %v287
  %291 = vrot.lane.b32.xlu0 %v283, 80
  %v292 = vpop.permute.xlu0 %291
  %v294 = vmul.f32 %v282, %v292
  %296 = vrot.lane.b32.xlu0 %v294, 16
  %v297 = vpop.permute.xlu0 %296
  %v299 = vadd.f32 %v289, %v297
  %v300 = vtanh.pop %v299
  %302 = vrot.lane.b32.xlu0 %v300, 16
  %v303 = vpop.permute.xlu0 %302
  %v305 = vmul.f32 %v282, %v303
  %v306 = vstv %s200
  %vm307 = vcmp.lt.s32.totalorder %v306, %v59
  %v308 = vsel %vm307, 1, 0
  %309 = vset.pattern.permute.xlu0 0
  %310 = vperm.xlu0 %309, %v308
  %v311 = vpop.permute.xlu0 %310
  %vm312 = vcmp.eq.s32.totalorder %v311, 1
  %v313 = vsel %vm312, %v299, %v287
  %315 = vrot.lane.b32.xlu0 %v313, 112
  %v316 = vpop.permute.xlu0 %315
  %318 = vst.msk [vmem:[#allocation3] sm:$0x3] %vm181, %v316
  %v319 = vld [vmem:[#allocation2] sm:$0x3]
  %321 = vrot.lane.b32.xlu0 %v319, 32
  %v322 = vpop.permute.xlu0 %321
  %v324 = vsel %vm312, %v305, %v322
  %326 = vrot.lane.b32.xlu0 %v324, 96
  %v327 = vpop.permute.xlu0 %326
  %329 = vst.msk [vmem:[#allocation2] sm:$0x3] %vm181, %v327
  %v330 = vsel %vm312, %v305, 0.0
  %332 = vrot.lane.b32.xlu0 %v330, 96
  %v333 = vpop.permute.xlu0 %332
  %335 = vst.msk [vmem:[%s47 + $0xc] sm:$0x3] %vm181, %v333
  %s336 = sadd.s32 %s61, 5
  %v337 = vld [vmem:[%s39 + $0xa] sm:$0x3]
  %v338 = vld [vmem:[#allocation2] sm:$0x3]
  %v340 = vsel %vm65, %v338, 0
  %342 = vmatprep.subr.mxu0 0.0
  %343 = vmatpush1.msra.mxu0 %v57
  %344 = vmatprep.subr.mxu0 0.0
  %345 = vmatpush1.msra.mxu0 %v58
  %346 = vmatprep.subr.mxu0 0.0
  %347 = vmatpush1.msra.mxu0 0.0
  %348 = vmatprep.subr.mxu0 0.0
  %349 = vmatpush1.msra.mxu0 0.0
  %350 = vmatprep.subr.mxu0 0.0
  %351 = vmatpush1.msra.mxu0 0.0
  %352 = vmatprep.subr.mxu0 0.0
  %353 = vmatpush1.msra.mxu0 0.0
  %354 = vmatprep.subr.mxu0 0.0
  %355 = vmatpush1.msra.mxu0 0.0
  %356 = vmatprep.subr.mxu0 0.0
  %357 = vmatpush1.msra.mxu0 0.0
  %358 = vmatprep.subr.mxu0 0.0
  %359 = vmatpush1.msra.mxu0 0.0
  %360 = vmatprep.subr.mxu0 0.0
  %361 = vmatpush1.msra.mxu0 0.0
  %362 = vmatprep.subr.mxu0 0.0
  %363 = vmatpush1.msra.mxu0 0.0
  %364 = vmatprep.subr.mxu0 0.0
  %365 = vmatpush1.msra.mxu0 0.0
  %366 = vmatprep.subr.mxu0 0.0
  %367 = vmatpush1.msra.mxu0 0.0
  %368 = vmatprep.subr.mxu0 0.0
  %369 = vmatpush1.msra.mxu0 0.0
  %370 = vmatprep.subr.mxu0 0.0
  %371 = vmatpush1.msra.mxu0 0.0
  %372 = vmatprep.subr.mxu0 0.0
  %373 = vmatpush1.msra.mxu0 0.0
  %374 = vmatprep.subr.mxu0 0.0
  %375 = vmatpush1.msra.mxu0 0.0
  %376 = vmatprep.subr.mxu0 0.0
  %377 = vmatpush1.msra.mxu0 0.0
  %378 = vmatprep.subr.mxu0 0.0
  %379 = vmatpush1.msra.mxu0 0.0
  %380 = vmatprep.subr.mxu0 0.0
  %381 = vmatpush1.msra.mxu0 0.0
  %382 = vmatprep.subr.mxu0 0.0
  %383 = vmatpush1.msra.mxu0 0.0
  %384 = vmatprep.subr.mxu0 0.0
  %385 = vmatpush1.msra.mxu0 0.0
  %386 = vmatprep.subr.mxu0 0.0
  %387 = vmatpush1.msra.mxu0 0.0
  %388 = vmatprep.subr.mxu0 0.0
  %389 = vmatpush1.msra.mxu0 0.0
  %390 = vmatprep.subr.mxu0 0.0
  %391 = vmatpush1.msra.mxu0 0.0
  %392 = vmatprep.subr.mxu0 0.0
  %393 = vmatpush1.msra.mxu0 0.0
  %394 = vmatprep.subr.mxu0 0.0
  %395 = vmatpush1.msra.mxu0 0.0
  %396 = vmatprep.subr.mxu0 0.0
  %397 = vmatpush1.msra.mxu0 0.0
  %398 = vmatprep.subr.mxu0 0.0
  %399 = vmatpush1.msra.mxu0 0.0
  %400 = vmatprep.subr.mxu0 0.0
  %401 = vmatpush1.msra.mxu0 0.0
  %402 = vmatprep.subr.mxu0 0.0
  %403 = vmatpush1.msra.mxu0 0.0
  %404 = vmatprep.subr.mxu0 0.0
  %405 = vmatpush1.msra.mxu0 0.0
  %406 = vmatprep.mubr.f32.mxu0 0.0
  %407 = vmatmul.mubr.f32.gmra.mrb[0].mxu0 %v340
  %v408 = vpop.f32.mrb[0].mxu0
  %v409 = vadd.f32 0.0, %v408
  %v410 = vpop.f32.mrb[0].mxu0
  %411 = vdwg.mxu0
  %v412 = vadd.f32 %v337, %v409
  %v413 = vxor.u32 %v412, 2147483648
  %v414 = vmul.f32 %v413, 1.442695
  %v415 = vpow.pop %v414
  %v416 = vadd.f32 %v415, 1.0
  %v417 = vrcp.pop %v416
  %v418 = vmul.f32 1.0, %v417
  %v419 = vtanh.pop %v412
  %v420 = vld [vmem:[#allocation3] sm:$0x3]
  %422 = vrot.lane.b32.xlu0 %v420, 16
  %v423 = vpop.permute.xlu0 %422
  %v425 = vmul.f32 %v418, %v423
  %427 = vrot.lane.b32.xlu0 %v419, 80
  %v428 = vpop.permute.xlu0 %427
  %v430 = vmul.f32 %v418, %v428
  %432 = vrot.lane.b32.xlu0 %v430, 16
  %v433 = vpop.permute.xlu0 %432
  %v435 = vadd.f32 %v425, %v433
  %v436 = vtanh.pop %v435
  %438 = vrot.lane.b32.xlu0 %v436, 16
  %v439 = vpop.permute.xlu0 %438
  %v441 = vmul.f32 %v418, %v439
  %v442 = vstv %s336
  %vm443 = vcmp.lt.s32.totalorder %v442, %v59
  %v444 = vsel %vm443, 1, 0
  %445 = vset.pattern.permute.xlu0 0
  %446 = vperm.xlu0 %445, %v444
  %v447 = vpop.permute.xlu0 %446
  %vm448 = vcmp.eq.s32.totalorder %v447, 1
  %v449 = vsel %vm448, %v435, %v423
  %451 = vrot.lane.b32.xlu0 %v449, 112
  %v452 = vpop.permute.xlu0 %451
  %454 = vst.msk [vmem:[#allocation3] sm:$0x3] %vm181, %v452
  %v455 = vld [vmem:[#allocation2] sm:$0x3]
  %457 = vrot.lane.b32.xlu0 %v455, 32
  %v458 = vpop.permute.xlu0 %457
  %v460 = vsel %vm448, %v441, %v458
  %462 = vrot.lane.b32.xlu0 %v460, 96
  %v463 = vpop.permute.xlu0 %462
  %465 = vst.msk [vmem:[#allocation2] sm:$0x3] %vm181, %v463
  %v466 = vsel %vm448, %v441, 0.0
  %468 = vrot.lane.b32.xlu0 %v466, 96
  %v469 = vpop.permute.xlu0 %468
  %471 = vst.msk [vmem:[%s47 + $0xa] sm:$0x3] %vm181, %v469
  %s472 = sadd.s32 %s61, 4
  %v473 = vld [vmem:[%s39 + $0x8] sm:$0x3]
  %v474 = vld [vmem:[#allocation2] sm:$0x3]
  %v476 = vsel %vm65, %v474, 0
  %478 = vmatprep.subr.mxu0 0.0
  %479 = vmatpush1.msra.mxu0 %v57
  %480 = vmatprep.subr.mxu0 0.0
  %481 = vmatpush1.msra.mxu0 %v58
  %482 = vmatprep.subr.mxu0 0.0
  %483 = vmatpush1.msra.mxu0 0.0
  %484 = vmatprep.subr.mxu0 0.0
  %485 = vmatpush1.msra.mxu0 0.0
  %486 = vmatprep.subr.mxu0 0.0
  %487 = vmatpush1.msra.mxu0 0.0
  %488 = vmatprep.subr.mxu0 0.0
  %489 = vmatpush1.msra.mxu0 0.0
  %490 = vmatprep.subr.mxu0 0.0
  %491 = vmatpush1.msra.mxu0 0.0
  %492 = vmatprep.subr.mxu0 0.0
  %493 = vmatpush1.msra.mxu0 0.0
  %494 = vmatprep.subr.mxu0 0.0
  %495 = vmatpush1.msra.mxu0 0.0
  %496 = vmatprep.subr.mxu0 0.0
  %497 = vmatpush1.msra.mxu0 0.0
  %498 = vmatprep.subr.mxu0 0.0
  %499 = vmatpush1.msra.mxu0 0.0
  %500 = vmatprep.subr.mxu0 0.0
  %501 = vmatpush1.msra.mxu0 0.0
  %502 = vmatprep.subr.mxu0 0.0
  %503 = vmatpush1.msra.mxu0 0.0
  %504 = vmatprep.subr.mxu0 0.0
  %505 = vmatpush1.msra.mxu0 0.0
  %506 = vmatprep.subr.mxu0 0.0
  %507 = vmatpush1.msra.mxu0 0.0
  %508 = vmatprep.subr.mxu0 0.0
  %509 = vmatpush1.msra.mxu0 0.0
  %510 = vmatprep.subr.mxu0 0.0
  %511 = vmatpush1.msra.mxu0 0.0
  %512 = vmatprep.subr.mxu0 0.0
  %513 = vmatpush1.msra.mxu0 0.0
  %514 = vmatprep.subr.mxu0 0.0
  %515 = vmatpush1.msra.mxu0 0.0
  %516 = vmatprep.subr.mxu0 0.0
  %517 = vmatpush1.msra.mxu0 0.0
  %518 = vmatprep.subr.mxu0 0.0
  %519 = vmatpush1.msra.mxu0 0.0
  %520 = vmatprep.subr.mxu0 0.0
  %521 = vmatpush1.msra.mxu0 0.0
  %522 = vmatprep.subr.mxu0 0.0
  %523 = vmatpush1.msra.mxu0 0.0
  %524 = vmatprep.subr.mxu0 0.0
  %525 = vmatpush1.msra.mxu0 0.0
  %526 = vmatprep.subr.mxu0 0.0
  %527 = vmatpush1.msra.mxu0 0.0
  %528 = vmatprep.subr.mxu0 0.0
  %529 = vmatpush1.msra.mxu0 0.0
  %530 = vmatprep.subr.mxu0 0.0
  %531 = vmatpush1.msra.mxu0 0.0
  %532 = vmatprep.subr.mxu0 0.0
  %533 = vmatpush1.msra.mxu0 0.0
  %534 = vmatprep.subr.mxu0 0.0
  %535 = vmatpush1.msra.mxu0 0.0
  %536 = vmatprep.subr.mxu0 0.0
  %537 = vmatpush1.msra.mxu0 0.0
  %538 = vmatprep.subr.mxu0 0.0
  %539 = vmatpush1.msra.mxu0 0.0
  %540 = vmatprep.subr.mxu0 0.0
  %541 = vmatpush1.msra.mxu0 0.0
  %542 = vmatprep.mubr.f32.mxu0 0.0
  %543 = vmatmul.mubr.f32.gmra.mrb[0].mxu0 %v476
  %v544 = vpop.f32.mrb[0].mxu0
  %v545 = vadd.f32 0.0, %v544
  %v546 = vpop.f32.mrb[0].mxu0
  %547 = vdwg.mxu0
  %v548 = vadd.f32 %v473, %v545
  %v549 = vxor.u32 %v548, 2147483648
  %v550 = vmul.f32 %v549, 1.442695
  %v551 = vpow.pop %v550
  %v552 = vadd.f32 %v551, 1.0
  %v553 = vrcp.pop %v552
  %v554 = vmul.f32 1.0, %v553
  %v555 = vtanh.pop %v548
  %v556 = vld [vmem:[#allocation3] sm:$0x3]
  %558 = vrot.lane.b32.xlu0 %v556, 16
  %v559 = vpop.permute.xlu0 %558
  %v561 = vmul.f32 %v554, %v559
  %563 = vrot.lane.b32.xlu0 %v555, 80
  %v564 = vpop.permute.xlu0 %563
  %v566 = vmul.f32 %v554, %v564
  %568 = vrot.lane.b32.xlu0 %v566, 16
  %v569 = vpop.permute.xlu0 %568
  %v571 = vadd.f32 %v561, %v569
  %v572 = vtanh.pop %v571
  %574 = vrot.lane.b32.xlu0 %v572, 16
  %v575 = vpop.permute.xlu0 %574
  %v577 = vmul.f32 %v554, %v575
  %v578 = vstv %s472
  %vm579 = vcmp.lt.s32.totalorder %v578, %v59
  %v580 = vsel %vm579, 1, 0
  %581 = vset.pattern.permute.xlu0 0
  %582 = vperm.xlu0 %581, %v580
  %v583 = vpop.permute.xlu0 %582
  %vm584 = vcmp.eq.s32.totalorder %v583, 1
  %v585 = vsel %vm584, %v571, %v559
  %587 = vrot.lane.b32.xlu0 %v585, 112
  %v588 = vpop.permute.xlu0 %587
  %590 = vst.msk [vmem:[#allocation3] sm:$0x3] %vm181, %v588
  %v591 = vld [vmem:[#allocation2] sm:$0x3]
  %593 = vrot.lane.b32.xlu0 %v591, 32
  %v594 = vpop.permute.xlu0 %593
  %v596 = vsel %vm584, %v577, %v594
  %598 = vrot.lane.b32.xlu0 %v596, 96
  %v599 = vpop.permute.xlu0 %598
  %601 = vst.msk [vmem:[#allocation2] sm:$0x3] %vm181, %v599
  %v602 = vsel %vm584, %v577, 0.0
  %604 = vrot.lane.b32.xlu0 %v602, 96
  %v605 = vpop.permute.xlu0 %604
  %607 = vst.msk [vmem:[%s47 + $0x8] sm:$0x3] %vm181, %v605
  %s608 = sadd.s32 %s61, 3
  %v609 = vld [vmem:[%s39 + $0x6] sm:$0x3]
  %v610 = vld [vmem:[#allocation2] sm:$0x3]
  %v612 = vsel %vm65, %v610, 0
  %614 = vmatprep.subr.mxu0 0.0
  %615 = vmatpush1.msra.mxu0 %v57
  %616 = vmatprep.subr.mxu0 0.0
  %617 = vmatpush1.msra.mxu0 %v58
  %618 = vmatprep.subr.mxu0 0.0
  %619 = vmatpush1.msra.mxu0 0.0
  %620 = vmatprep.subr.mxu0 0.0
  %621 = vmatpush1.msra.mxu0 0.0
  %622 = vmatprep.subr.mxu0 0.0
  %623 = vmatpush1.msra.mxu0 0.0
  %624 = vmatprep.subr.mxu0 0.0
  %625 = vmatpush1.msra.mxu0 0.0
  %626 = vmatprep.subr.mxu0 0.0
  %627 = vmatpush1.msra.mxu0 0.0
  %628 = vmatprep.subr.mxu0 0.0
  %629 = vmatpush1.msra.mxu0 0.0
  %630 = vmatprep.subr.mxu0 0.0
  %631 = vmatpush1.msra.mxu0 0.0
  %632 = vmatprep.subr.mxu0 0.0
  %633 = vmatpush1.msra.mxu0 0.0
  %634 = vmatprep.subr.mxu0 0.0
  %635 = vmatpush1.msra.mxu0 0.0
  %636 = vmatprep.subr.mxu0 0.0
  %637 = vmatpush1.msra.mxu0 0.0
  %638 = vmatprep.subr.mxu0 0.0
  %639 = vmatpush1.msra.mxu0 0.0
  %640 = vmatprep.subr.mxu0 0.0
  %641 = vmatpush1.msra.mxu0 0.0
  %642 = vmatprep.subr.mxu0 0.0
  %643 = vmatpush1.msra.mxu0 0.0
  %644 = vmatprep.subr.mxu0 0.0
  %645 = vmatpush1.msra.mxu0 0.0
  %646 = vmatprep.subr.mxu0 0.0
  %647 = vmatpush1.msra.mxu0 0.0
  %648 = vmatprep.subr.mxu0 0.0
  %649 = vmatpush1.msra.mxu0 0.0
  %650 = vmatprep.subr.mxu0 0.0
  %651 = vmatpush1.msra.mxu0 0.0
  %652 = vmatprep.subr.mxu0 0.0
  %653 = vmatpush1.msra.mxu0 0.0
  %654 = vmatprep.subr.mxu0 0.0
  %655 = vmatpush1.msra.mxu0 0.0
  %656 = vmatprep.subr.mxu0 0.0
  %657 = vmatpush1.msra.mxu0 0.0
  %658 = vmatprep.subr.mxu0 0.0
  %659 = vmatpush1.msra.mxu0 0.0
  %660 = vmatprep.subr.mxu0 0.0
  %661 = vmatpush1.msra.mxu0 0.0
  %662 = vmatprep.subr.mxu0 0.0
  %663 = vmatpush1.msra.mxu0 0.0
  %664 = vmatprep.subr.mxu0 0.0
  %665 = vmatpush1.msra.mxu0 0.0
  %666 = vmatprep.subr.mxu0 0.0
  %667 = vmatpush1.msra.mxu0 0.0
  %668 = vmatprep.subr.mxu0 0.0
  %669 = vmatpush1.msra.mxu0 0.0
  %670 = vmatprep.subr.mxu0 0.0
  %671 = vmatpush1.msra.mxu0 0.0
  %672 = vmatprep.subr.mxu0 0.0
  %673 = vmatpush1.msra.mxu0 0.0
  %674 = vmatprep.subr.mxu0 0.0
  %675 = vmatpush1.msra.mxu0 0.0
  %676 = vmatprep.subr.mxu0 0.0
  %677 = vmatpush1.msra.mxu0 0.0
  %678 = vmatprep.mubr.f32.mxu0 0.0
  %679 = vmatmul.mubr.f32.gmra.mrb[0].mxu0 %v612
  %v680 = vpop.f32.mrb[0].mxu0
  %v681 = vadd.f32 0.0, %v680
  %v682 = vpop.f32.mrb[0].mxu0
  %683 = vdwg.mxu0
  %v684 = vadd.f32 %v609, %v681
  %v685 = vxor.u32 %v684, 2147483648
  %v686 = vmul.f32 %v685, 1.442695
  %v687 = vpow.pop %v686
  %v688 = vadd.f32 %v687, 1.0
  %v689 = vrcp.pop %v688
  %v690 = vmul.f32 1.0, %v689
  %v691 = vtanh.pop %v684
  %v692 = vld [vmem:[#allocation3] sm:$0x3]
  %694 = vrot.lane.b32.xlu0 %v692, 16
  %v695 = vpop.permute.xlu0 %694
  %v697 = vmul.f32 %v690, %v695
  %699 = vrot.lane.b32.xlu0 %v691, 80
  %v700 = vpop.permute.xlu0 %699
  %v702 = vmul.f32 %v690, %v700
  %704 = vrot.lane.b32.xlu0 %v702, 16
  %v705 = vpop.permute.xlu0 %704
  %v707 = vadd.f32 %v697, %v705
  %v708 = vtanh.pop %v707
  %710 = vrot.lane.b32.xlu0 %v708, 16
  %v711 = vpop.permute.xlu0 %710
  %v713 = vmul.f32 %v690, %v711
  %v714 = vstv %s608
  %vm715 = vcmp.lt.s32.totalorder %v714, %v59
  %v716 = vsel %vm715, 1, 0
  %717 = vset.pattern.permute.xlu0 0
  %718 = vperm.xlu0 %717, %v716
  %v719 = vpop.permute.xlu0 %718
  %vm720 = vcmp.eq.s32.totalorder %v719, 1
  %v721 = vsel %vm720, %v707, %v695
  %723 = vrot.lane.b32.xlu0 %v721, 112
  %v724 = vpop.permute.xlu0 %723
  %726 = vst.msk [vmem:[#allocation3] sm:$0x3] %vm181, %v724
  %v727 = vld [vmem:[#allocation2] sm:$0x3]
  %729 = vrot.lane.b32.xlu0 %v727, 32
  %v730 = vpop.permute.xlu0 %729
  %v732 = vsel %vm720, %v713, %v730
  %734 = vrot.lane.b32.xlu0 %v732, 96
  %v735 = vpop.permute.xlu0 %734
  %737 = vst.msk [vmem:[#allocation2] sm:$0x3] %vm181, %v735
  %v738 = vsel %vm720, %v713, 0.0
  %740 = vrot.lane.b32.xlu0 %v738, 96
  %v741 = vpop.permute.xlu0 %740
  %743 = vst.msk [vmem:[%s47 + $0x6] sm:$0x3] %vm181, %v741
  %s744 = sadd.s32 %s61, 2
  %v745 = vld [vmem:[%s39 + $0x4] sm:$0x3]
  %v746 = vld [vmem:[#allocation2] sm:$0x3]
  %v748 = vsel %vm65, %v746, 0
  %750 = vmatprep.subr.mxu0 0.0
  %751 = vmatpush1.msra.mxu0 %v57
  %752 = vmatprep.subr.mxu0 0.0
  %753 = vmatpush1.msra.mxu0 %v58
  %754 = vmatprep.subr.mxu0 0.0
  %755 = vmatpush1.msra.mxu0 0.0
  %756 = vmatprep.subr.mxu0 0.0
  %757 = vmatpush1.msra.mxu0 0.0
  %758 = vmatprep.subr.mxu0 0.0
  %759 = vmatpush1.msra.mxu0 0.0
  %760 = vmatprep.subr.mxu0 0.0
  %761 = vmatpush1.msra.mxu0 0.0
  %762 = vmatprep.subr.mxu0 0.0
  %763 = vmatpush1.msra.mxu0 0.0
  %764 = vmatprep.subr.mxu0 0.0
  %765 = vmatpush1.msra.mxu0 0.0
  %766 = vmatprep.subr.mxu0 0.0
  %767 = vmatpush1.msra.mxu0 0.0
  %768 = vmatprep.subr.mxu0 0.0
  %769 = vmatpush1.msra.mxu0 0.0
  %770 = vmatprep.subr.mxu0 0.0
  %771 = vmatpush1.msra.mxu0 0.0
  %772 = vmatprep.subr.mxu0 0.0
  %773 = vmatpush1.msra.mxu0 0.0
  %774 = vmatprep.subr.mxu0 0.0
  %775 = vmatpush1.msra.mxu0 0.0
  %776 = vmatprep.subr.mxu0 0.0
  %777 = vmatpush1.msra.mxu0 0.0
  %778 = vmatprep.subr.mxu0 0.0
  %779 = vmatpush1.msra.mxu0 0.0
  %780 = vmatprep.subr.mxu0 0.0
  %781 = vmatpush1.msra.mxu0 0.0
  %782 = vmatprep.subr.mxu0 0.0
  %783 = vmatpush1.msra.mxu0 0.0
  %784 = vmatprep.subr.mxu0 0.0
  %785 = vmatpush1.msra.mxu0 0.0
  %786 = vmatprep.subr.mxu0 0.0
  %787 = vmatpush1.msra.mxu0 0.0
  %788 = vmatprep.subr.mxu0 0.0
  %789 = vmatpush1.msra.mxu0 0.0
  %790 = vmatprep.subr.mxu0 0.0
  %791 = vmatpush1.msra.mxu0 0.0
  %792 = vmatprep.subr.mxu0 0.0
  %793 = vmatpush1.msra.mxu0 0.0
  %794 = vmatprep.subr.mxu0 0.0
  %795 = vmatpush1.msra.mxu0 0.0
  %796 = vmatprep.subr.mxu0 0.0
  %797 = vmatpush1.msra.mxu0 0.0
  %798 = vmatprep.subr.mxu0 0.0
  %799 = vmatpush1.msra.mxu0 0.0
  %800 = vmatprep.subr.mxu0 0.0
  %801 = vmatpush1.msra.mxu0 0.0
  %802 = vmatprep.subr.mxu0 0.0
  %803 = vmatpush1.msra.mxu0 0.0
  %804 = vmatprep.subr.mxu0 0.0
  %805 = vmatpush1.msra.mxu0 0.0
  %806 = vmatprep.subr.mxu0 0.0
  %807 = vmatpush1.msra.mxu0 0.0
  %808 = vmatprep.subr.mxu0 0.0
  %809 = vmatpush1.msra.mxu0 0.0
  %810 = vmatprep.subr.mxu0 0.0
  %811 = vmatpush1.msra.mxu0 0.0
  %812 = vmatprep.subr.mxu0 0.0
  %813 = vmatpush1.msra.mxu0 0.0
  %814 = vmatprep.mubr.f32.mxu0 0.0
  %815 = vmatmul.mubr.f32.gmra.mrb[0].mxu0 %v748
  %v816 = vpop.f32.mrb[0].mxu0
  %v817 = vadd.f32 0.0, %v816
  %v818 = vpop.f32.mrb[0].mxu0
  %819 = vdwg.mxu0
  %v820 = vadd.f32 %v745, %v817
  %v821 = vxor.u32 %v820, 2147483648
  %v822 = vmul.f32 %v821, 1.442695
  %v823 = vpow.pop %v822
  %v824 = vadd.f32 %v823, 1.0
  %v825 = vrcp.pop %v824
  %v826 = vmul.f32 1.0, %v825
  %v827 = vtanh.pop %v820
  %v828 = vld [vmem:[#allocation3] sm:$0x3]
  %830 = vrot.lane.b32.xlu0 %v828, 16
  %v831 = vpop.permute.xlu0 %830
  %v833 = vmul.f32 %v826, %v831
  %835 = vrot.lane.b32.xlu0 %v827, 80
  %v836 = vpop.permute.xlu0 %835
  %v838 = vmul.f32 %v826, %v836
  %840 = vrot.lane.b32.xlu0 %v838, 16
  %v841 = vpop.permute.xlu0 %840
  %v843 = vadd.f32 %v833, %v841
  %v844 = vtanh.pop %v843
  %846 = vrot.lane.b32.xlu0 %v844, 16
  %v847 = vpop.permute.xlu0 %846
  %v849 = vmul.f32 %v826, %v847
  %v850 = vstv %s744
  %vm851 = vcmp.lt.s32.totalorder %v850, %v59
  %v852 = vsel %vm851, 1, 0
  %853 = vset.pattern.permute.xlu0 0
  %854 = vperm.xlu0 %853, %v852
  %v855 = vpop.permute.xlu0 %854
  %vm856 = vcmp.eq.s32.totalorder %v855, 1
  %v857 = vsel %vm856, %v843, %v831
  %859 = vrot.lane.b32.xlu0 %v857, 112
  %v860 = vpop.permute.xlu0 %859
  %862 = vst.msk [vmem:[#allocation3] sm:$0x3] %vm181, %v860
  %v863 = vld [vmem:[#allocation2] sm:$0x3]
  %865 = vrot.lane.b32.xlu0 %v863, 32
  %v866 = vpop.permute.xlu0 %865
  %v868 = vsel %vm856, %v849, %v866
  %870 = vrot.lane.b32.xlu0 %v868, 96
  %v871 = vpop.permute.xlu0 %870
  %873 = vst.msk [vmem:[#allocation2] sm:$0x3] %vm181, %v871
  %v874 = vsel %vm856, %v849, 0.0
  %876 = vrot.lane.b32.xlu0 %v874, 96
  %v877 = vpop.permute.xlu0 %876
  %879 = vst.msk [vmem:[%s47 + $0x4] sm:$0x3] %vm181, %v877
  %s880 = sadd.s32 %s61, 1
  %v881 = vld [vmem:[%s39 + $0x2] sm:$0x3]
  %v882 = vld [vmem:[#allocation2] sm:$0x3]
  %v884 = vsel %vm65, %v882, 0
  %886 = vmatprep.subr.mxu0 0.0
  %887 = vmatpush1.msra.mxu0 %v57
  %888 = vmatprep.subr.mxu0 0.0
  %889 = vmatpush1.msra.mxu0 %v58
  %890 = vmatprep.subr.mxu0 0.0
  %891 = vmatpush1.msra.mxu0 0.0
  %892 = vmatprep.subr.mxu0 0.0
  %893 = vmatpush1.msra.mxu0 0.0
  %894 = vmatprep.subr.mxu0 0.0
  %895 = vmatpush1.msra.mxu0 0.0
  %896 = vmatprep.subr.mxu0 0.0
  %897 = vmatpush1.msra.mxu0 0.0
  %898 = vmatprep.subr.mxu0 0.0
  %899 = vmatpush1.msra.mxu0 0.0
  %900 = vmatprep.subr.mxu0 0.0
  %901 = vmatpush1.msra.mxu0 0.0
  %902 = vmatprep.subr.mxu0 0.0
  %903 = vmatpush1.msra.mxu0 0.0
  %904 = vmatprep.subr.mxu0 0.0
  %905 = vmatpush1.msra.mxu0 0.0
  %906 = vmatprep.subr.mxu0 0.0
  %907 = vmatpush1.msra.mxu0 0.0
  %908 = vmatprep.subr.mxu0 0.0
  %909 = vmatpush1.msra.mxu0 0.0
  %910 = vmatprep.subr.mxu0 0.0
  %911 = vmatpush1.msra.mxu0 0.0
  %912 = vmatprep.subr.mxu0 0.0
  %913 = vmatpush1.msra.mxu0 0.0
  %914 = vmatprep.subr.mxu0 0.0
  %915 = vmatpush1.msra.mxu0 0.0
  %916 = vmatprep.subr.mxu0 0.0
  %917 = vmatpush1.msra.mxu0 0.0
  %918 = vmatprep.subr.mxu0 0.0
  %919 = vmatpush1.msra.mxu0 0.0
  %920 = vmatprep.subr.mxu0 0.0
  %921 = vmatpush1.msra.mxu0 0.0
  %922 = vmatprep.subr.mxu0 0.0
  %923 = vmatpush1.msra.mxu0 0.0
  %924 = vmatprep.subr.mxu0 0.0
  %925 = vmatpush1.msra.mxu0 0.0
  %926 = vmatprep.subr.mxu0 0.0
  %927 = vmatpush1.msra.mxu0 0.0
  %928 = vmatprep.subr.mxu0 0.0
  %929 = vmatpush1.msra.mxu0 0.0
  %930 = vmatprep.subr.mxu0 0.0
  %931 = vmatpush1.msra.mxu0 0.0
  %932 = vmatprep.subr.mxu0 0.0
  %933 = vmatpush1.msra.mxu0 0.0
  %934 = vmatprep.subr.mxu0 0.0
  %935 = vmatpush1.msra.mxu0 0.0
  %936 = vmatprep.subr.mxu0 0.0
  %937 = vmatpush1.msra.mxu0 0.0
  %938 = vmatprep.subr.mxu0 0.0
  %939 = vmatpush1.msra.mxu0 0.0
  %940 = vmatprep.subr.mxu0 0.0
  %941 = vmatpush1.msra.mxu0 0.0
  %942 = vmatprep.subr.mxu0 0.0
  %943 = vmatpush1.msra.mxu0 0.0
  %944 = vmatprep.subr.mxu0 0.0
  %945 = vmatpush1.msra.mxu0 0.0
  %946 = vmatprep.subr.mxu0 0.0
  %947 = vmatpush1.msra.mxu0 0.0
  %948 = vmatprep.subr.mxu0 0.0
  %949 = vmatpush1.msra.mxu0 0.0
  %950 = vmatprep.mubr.f32.mxu0 0.0
  %951 = vmatmul.mubr.f32.gmra.mrb[0].mxu0 %v884
  %v952 = vpop.f32.mrb[0].mxu0
  %v953 = vadd.f32 0.0, %v952
  %v954 = vpop.f32.mrb[0].mxu0
  %955 = vdwg.mxu0
  %v956 = vadd.f32 %v881, %v953
  %v957 = vxor.u32 %v956, 2147483648
  %v958 = vmul.f32 %v957, 1.442695
  %v959 = vpow.pop %v958
  %v960 = vadd.f32 %v959, 1.0
  %v961 = vrcp.pop %v960
  %v962 = vmul.f32 1.0, %v961
  %v963 = vtanh.pop %v956
  %v964 = vld [vmem:[#allocation3] sm:$0x3]
  %966 = vrot.lane.b32.xlu0 %v964, 16
  %v967 = vpop.permute.xlu0 %966
  %v969 = vmul.f32 %v962, %v967
  %971 = vrot.lane.b32.xlu0 %v963, 80
  %v972 = vpop.permute.xlu0 %971
  %v974 = vmul.f32 %v962, %v972
  %976 = vrot.lane.b32.xlu0 %v974, 16
  %v977 = vpop.permute.xlu0 %976
  %v979 = vadd.f32 %v969, %v977
  %v980 = vtanh.pop %v979
  %982 = vrot.lane.b32.xlu0 %v980, 16
  %v983 = vpop.permute.xlu0 %982
  %v985 = vmul.f32 %v962, %v983
  %v986 = vstv %s880
  %vm987 = vcmp.lt.s32.totalorder %v986, %v59
  %v988 = vsel %vm987, 1, 0
  %989 = vset.pattern.permute.xlu0 0
  %990 = vperm.xlu0 %989, %v988
  %v991 = vpop.permute.xlu0 %990
  %vm992 = vcmp.eq.s32.totalorder %v991, 1
  %v993 = vsel %vm992, %v979, %v967
  %995 = vrot.lane.b32.xlu0 %v993, 112
  %v996 = vpop.permute.xlu0 %995
  %998 = vst.msk [vmem:[#allocation3] sm:$0x3] %vm181, %v996
  %v999 = vld [vmem:[#allocation2] sm:$0x3]
  %1001 = vrot.lane.b32.xlu0 %v999, 32
  %v1002 = vpop.permute.xlu0 %1001
  %v1004 = vsel %vm992, %v985, %v1002
  %1006 = vrot.lane.b32.xlu0 %v1004, 96
  %v1007 = vpop.permute.xlu0 %1006
  %1009 = vst.msk [vmem:[#allocation2] sm:$0x3] %vm181, %v1007
  %v1010 = vsel %vm992, %v985, 0.0
  %1012 = vrot.lane.b32.xlu0 %v1010, 96
  %v1013 = vpop.permute.xlu0 %1012
  %1015 = vst.msk [vmem:[%s47 + $0x2] sm:$0x3] %vm181, %v1013
  %v1016 = vld [vmem:[%s39] sm:$0x3]
  %v1017 = vld [vmem:[#allocation2] sm:$0x3]
  %v1019 = vsel %vm65, %v1017, 0
  %1021 = vmatprep.subr.mxu0 0.0
  %1022 = vmatpush1.msra.mxu0 %v57
  %1023 = vmatprep.subr.mxu0 0.0
  %1024 = vmatpush1.msra.mxu0 %v58
  %1025 = vmatprep.subr.mxu0 0.0
  %1026 = vmatpush1.msra.mxu0 0.0
  %1027 = vmatprep.subr.mxu0 0.0
  %1028 = vmatpush1.msra.mxu0 0.0
  %1029 = vmatprep.subr.mxu0 0.0
  %1030 = vmatpush1.msra.mxu0 0.0
  %1031 = vmatprep.subr.mxu0 0.0
  %1032 = vmatpush1.msra.mxu0 0.0
  %1033 = vmatprep.subr.mxu0 0.0
  %1034 = vmatpush1.msra.mxu0 0.0
  %1035 = vmatprep.subr.mxu0 0.0
  %1036 = vmatpush1.msra.mxu0 0.0
  %1037 = vmatprep.subr.mxu0 0.0
  %1038 = vmatpush1.msra.mxu0 0.0
  %1039 = vmatprep.subr.mxu0 0.0
  %1040 = vmatpush1.msra.mxu0 0.0
  %1041 = vmatprep.subr.mxu0 0.0
  %1042 = vmatpush1.msra.mxu0 0.0
  %1043 = vmatprep.subr.mxu0 0.0
  %1044 = vmatpush1.msra.mxu0 0.0
  %1045 = vmatprep.subr.mxu0 0.0
  %1046 = vmatpush1.msra.mxu0 0.0
  %1047 = vmatprep.subr.mxu0 0.0
  %1048 = vmatpush1.msra.mxu0 0.0
  %1049 = vmatprep.subr.mxu0 0.0
  %1050 = vmatpush1.msra.mxu0 0.0
  %1051 = vmatprep.subr.mxu0 0.0
  %1052 = vmatpush1.msra.mxu0 0.0
  %1053 = vmatprep.subr.mxu0 0.0
  %1054 = vmatpush1.msra.mxu0 0.0
  %1055 = vmatprep.subr.mxu0 0.0
  %1056 = vmatpush1.msra.mxu0 0.0
  %1057 = vmatprep.subr.mxu0 0.0
  %1058 = vmatpush1.msra.mxu0 0.0
  %1059 = vmatprep.subr.mxu0 0.0
  %1060 = vmatpush1.msra.mxu0 0.0
  %1061 = vmatprep.subr.mxu0 0.0
  %1062 = vmatpush1.msra.mxu0 0.0
  %1063 = vmatprep.subr.mxu0 0.0
  %1064 = vmatpush1.msra.mxu0 0.0
  %1065 = vmatprep.subr.mxu0 0.0
  %1066 = vmatpush1.msra.mxu0 0.0
  %1067 = vmatprep.subr.mxu0 0.0
  %1068 = vmatpush1.msra.mxu0 0.0
  %1069 = vmatprep.subr.mxu0 0.0
  %1070 = vmatpush1.msra.mxu0 0.0
  %1071 = vmatprep.subr.mxu0 0.0
  %1072 = vmatpush1.msra.mxu0 0.0
  %1073 = vmatprep.subr.mxu0 0.0
  %1074 = vmatpush1.msra.mxu0 0.0
  %1075 = vmatprep.subr.mxu0 0.0
  %1076 = vmatpush1.msra.mxu0 0.0
  %1077 = vmatprep.subr.mxu0 0.0
  %1078 = vmatpush1.msra.mxu0 0.0
  %1079 = vmatprep.subr.mxu0 0.0
  %1080 = vmatpush1.msra.mxu0 0.0
  %1081 = vmatprep.subr.mxu0 0.0
  %1082 = vmatpush1.msra.mxu0 0.0
  %1083 = vmatprep.subr.mxu0 0.0
  %1084 = vmatpush1.msra.mxu0 0.0
  %1085 = vmatprep.mubr.f32.mxu0 0.0
  %1086 = vmatmul.mubr.f32.gmra.mrb[0].mxu0 %v1019
  %v1087 = vpop.f32.mrb[0].mxu0
  %v1088 = vadd.f32 0.0, %v1087
  %v1089 = vpop.f32.mrb[0].mxu0
  %1090 = vdwg.mxu0
  %v1091 = vadd.f32 %v1016, %v1088
  %v1092 = vxor.u32 %v1091, 2147483648
  %v1093 = vmul.f32 %v1092, 1.442695
  %v1094 = vpow.pop %v1093
  %v1095 = vadd.f32 %v1094, 1.0
  %v1096 = vrcp.pop %v1095
  %v1097 = vmul.f32 1.0, %v1096
  %v1098 = vtanh.pop %v1091
  %v1099 = vld [vmem:[#allocation3] sm:$0x3]
  %1101 = vrot.lane.b32.xlu0 %v1099, 16
  %v1102 = vpop.permute.xlu0 %1101
  %v1104 = vmul.f32 %v1097, %v1102
  %1106 = vrot.lane.b32.xlu0 %v1098, 80
  %v1107 = vpop.permute.xlu0 %1106
  %v1109 = vmul.f32 %v1097, %v1107
  %1111 = vrot.lane.b32.xlu0 %v1109, 16
  %v1112 = vpop.permute.xlu0 %1111
  %v1114 = vadd.f32 %v1104, %v1112
  %v1115 = vtanh.pop %v1114
  %1117 = vrot.lane.b32.xlu0 %v1115, 16
  %v1118 = vpop.permute.xlu0 %1117
  %v1120 = vmul.f32 %v1097, %v1118
  %v1121 = vstv %s61
  %vm1122 = vcmp.lt.s32.totalorder %v1121, %v59
  %v1123 = vsel %vm1122, 1, 0
  %1124 = vset.pattern.permute.xlu0 0
  %1125 = vperm.xlu0 %1124, %v1123
  %v1126 = vpop.permute.xlu0 %1125
  %vm1127 = vcmp.eq.s32.totalorder %v1126, 1
  %v1128 = vsel %vm1127, %v1114, %v1102
  %1130 = vrot.lane.b32.xlu0 %v1128, 112
  %v1131 = vpop.permute.xlu0 %1130
  %1133 = vst.msk [vmem:[#allocation3] sm:$0x3] %vm181, %v1131
  %v1134 = vld [vmem:[#allocation2] sm:$0x3]
  %1136 = vrot.lane.b32.xlu0 %v1134, 32
  %v1137 = vpop.permute.xlu0 %1136
  %v1139 = vsel %vm1127, %v1120, %v1137
  %1141 = vrot.lane.b32.xlu0 %v1139, 96
  %v1142 = vpop.permute.xlu0 %1141
  %1144 = vst.msk [vmem:[#allocation2] sm:$0x3] %vm181, %v1142
  %v1145 = vsel %vm1127, %v1120, 0.0
  %1147 = vrot.lane.b32.xlu0 %v1145, 96
  %v1148 = vpop.permute.xlu0 %1147
  %1150 = vst.msk [vmem:[%s47] sm:$0x3] %vm181, %v1148
  %s1151 = ssub.s32 0, 0
  %s1152 = smul.u32 2, %s1151
  %p1153 = scmp.lt.s32.totalorder %s1152, 1
  %s1154 = scalar_select %p1153, %s1152, 1
  %s1155 = smul.addr %s1154, 8
  %s1156 = scalar_lea.vmem %s3, %s1155
  // Predicated region
  $region18: #{bilstm_maxpool_cls.6} parent=0 // pred_check
    _
  $region19: #{bilstm_maxpool_cls.6} parent=0 // pred_check_branch
    %1158 = sbr.rel (0) target = $region21
  $region20: #{bilstm_maxpool_cls.6} parent=0 // pred_region
    %s1159 = ssub.s32 0, 0
    %s1160 = smul.u32 2, %s1159
  $region21: #{bilstm_maxpool_cls.6} parent=0 // pred_fallthru
    _
  // Predicated region
  $region22: #{bilstm_maxpool_cls.6} parent=0 // pred_check
    _
  $region23: #{bilstm_maxpool_cls.6} parent=0 // pred_check_branch
    %1162 = sbr.rel (0) target = $region25
  $region24: #{bilstm_maxpool_cls.6} parent=0 // pred_region
    %s1163 = ssub.s32 0, 0
    %s1164 = smul.u32 2, %s1163
    %p1165 = scmp.lt.s32.totalorder %s1164, 1
    %s1166 = scalar_select %p1165, %s1164, 1
    %s1167 = smul.addr %s1166, 8
    %s1168 = scalar_lea.vmem %s3, %s1167
  $region25: #{bilstm_maxpool_cls.6} parent=0 // pred_fallthru
    _

</llo_original>
